<compile_context>
chip_gen: v5e
topology: v5e:2x2
jax: 0.10.0
libtpu: 0.0.40
codegen_flags: <defaults>
</compile_context>

<pallas_src>
import jax
import jax.numpy as jnp
from jax.experimental import pallas as pl
from jax.experimental.pallas import tpu as pltpu

ALPHA = 0.15                      # CrossNormalization.alpha
PATHWAY_SCALE = (0.5, 0.45, 0.4)  # CrossNormalization.pathway_scale init
BN_EPS = 1e-5

# ----------------------------------------------------------------------------
# Per-generation VMEM budget / lane-tile sizing
# ----------------------------------------------------------------------------
_VMEM_LIMIT_CACHE = None


def _vmem_limit():
    """vmem_limit_bytes per generation: ~96 MiB on v5e/v6e (128 MiB physical),
    ~48 MiB on v7x (64 MiB physical).  Falls back to 48 MiB if the query fails."""
    global _VMEM_LIMIT_CACHE
    if _VMEM_LIMIT_CACHE is None:
        try:
            cap = int(getattr(pltpu.get_tpu_info(), "vmem_capacity_bytes", 0)) or (64 << 20)
        except Exception:
            cap = 64 << 20
        _VMEM_LIMIT_CACHE = min((cap * 3) // 4, 100 << 20)
    return _VMEM_LIMIT_CACHE


def _lane_tile(n, bytes_per_col, budget):
    """Largest 128-multiple divisor of n whose double-buffered block fits `budget`,
    preferring >= 2 grid steps (keeps both v7x TensorCores busy)."""
    if n < 256 or n % 128 != 0:
        return n
    cands = [t for t in range(128, n + 1, 128) if n % t == 0]
    fit = [t for t in cands if 2 * t * bytes_per_col <= budget]
    t = max(fit) if fit else cands[0]
    if t == n:
        smaller = [c for c in cands if c < n]
        if smaller:
            t = max(smaller)
    return t


# ----------------------------------------------------------------------------
# Pallas kernels
# ----------------------------------------------------------------------------
def _conv_bn_relu_kernel(x_ref, w_ref, s_ref, b_ref, o_ref):
    # x: (K, TN) bf16 im2col columns; w: (Cout, K) bf16; s/b: (Cout, 1) f32 folded BN.
    y = jnp.dot(w_ref[...], x_ref[...], preferred_element_type=jnp.float32)
    o_ref[...] = jnp.maximum(y * s_ref[...] + b_ref[...], 0.0).astype(o_ref.dtype)


def _conv_bn_relu_pool_kernel(x_ref, w_ref, s_ref, b_ref, o_ref, acc_ref):
    # Pool-window position is a grid axis: per step one (K, TJ) bf16 slab is streamed,
    # BN+ReLU applied, and the running max kept in a f32 VMEM scratch.
    wp = pl.program_id(1)
    y = jnp.dot(w_ref[...], x_ref[0], preferred_element_type=jnp.float32)
    y = jnp.maximum(y * s_ref[...] + b_ref[...], 0.0)

    @pl.when(wp == 0)
    def _():
        acc_ref[...] = y

    @pl.when(wp > 0)
    def _():
        acc_ref[...] = jnp.maximum(acc_ref[...], y)

    @pl.when(wp == pl.num_programs(1) - 1)
    def _():
        o_ref[...] = acc_ref[...]


def _make_attn_kernel(inv_spatial):
    """Reduce pass: cross-normalized M pathway -> per-(channel,batch) spatial mean ->
    gate Linear -> softmax, producing the (3, B) attention weights."""

    def kernel(m_ref, p_ref, k_ref, wg_ref, bg_ref, attn_ref, acc_ref):
        si = pl.program_id(0)
        ns = pl.num_programs(0)
        _, s1, s2 = PATHWAY_SCALE
        m = m_ref[...]                                    # (C, B, St) f32
        p = p_ref[...]
        k = k_ref[...]
        p_mean = jnp.mean(p, axis=0, keepdims=True)       # channel mean per column
        k_mean = jnp.mean(k, axis=0, keepdims=True)
        mn = m / (1.0 + ALPHA * (s1 * p_mean + s2 * k_mean))
        part = jnp.sum(mn, axis=2)                        # (C, B) partial spatial sum

        @pl.when(si == 0)
        def _():
            acc_ref[...] = jnp.zeros_like(acc_ref)

        acc_ref[...] += part

        @pl.when(si == ns - 1)
        def _():
            m_pool = acc_ref[...] * inv_spatial                                # (C, B)
            logits = jnp.dot(wg_ref[...], m_pool,
                             preferred_element_type=jnp.float32) + bg_ref[...]  # (3, B)
            logits = logits - jnp.max(logits, axis=0, keepdims=True)
            e = jnp.exp(logits)
            attn_ref[...] = e / jnp.sum(e, axis=0, keepdims=True)

    return kernel


def _apply_kernel(m_ref, p_ref, k_ref, a_ref, o_ref):
    # Apply pass: recompute the (cheap, column-local) cross-normalization and combine
    # with per-channel gate weights via VPU broadcast multiplies (a: (C, 3)).
    s0, s1, s2 = PATHWAY_SCALE
    m = m_ref[...]
    p = p_ref[...]
    k = k_ref[...]
    m_mean = jnp.mean(m, axis=0, keepdims=True)
    p_mean = jnp.mean(p, axis=0, keepdims=True)
    k_mean = jnp.mean(k, axis=0, keepdims=True)
    mn = m / (1.0 + ALPHA * (s1 * p_mean + s2 * k_mean))
    pn = p / (1.0 + ALPHA * (s0 * m_mean + s2 * k_mean))
    kn = k / (1.0 + ALPHA * (s0 * m_mean + s1 * p_mean))
    o_ref[...] = mn * a_ref[:, 0:1] + pn * a_ref[:, 1:2] + kn * a_ref[:, 2:3]


# ----------------------------------------------------------------------------
# Pallas wrappers
# ----------------------------------------------------------------------------
def conv3d_bn_relu(x_cf, w, scale, bias, pad, out_dtype=jnp.bfloat16):
    """x_cf: (Cin, B, D, H, W); w: (Cout, Cin, KD, KH, KW) torch OIDHW.
    Conv3d + folded BN + ReLU as one matmul per lane tile (taps folded into K).
    im2col slab and weights are fed in bf16; accumulation and epilogue in f32."""
    Cin, B, D, H, W = x_cf.shape
    Cout, _, KD, KH, KW = w.shape
    N = B * D * H * W
    K = KD * KH * KW * Cin

    xp = jnp.pad(x_cf, ((0, 0), (0, 0), (pad, pad), (pad, pad), (pad, pad)))
    cols = [xp[:, :, kd:kd + D, kh:kh + H, kw:kw + W].reshape(Cin, N)
            for kd in range(KD) for kh in range(KH) for kw in range(KW)]
    xmat = jnp.stack(cols, axis=0).reshape(K, N).astype(jnp.bfloat16)     # row = tap*Cin + cin
    wmat = jnp.transpose(w, (0, 2, 3, 4, 1)).reshape(Cout, K).astype(jnp.bfloat16)

    vmem = _vmem_limit()
    TN = _lane_tile(N, bytes_per_col=2 * K + 4 * Cout, budget=vmem // 2)
    out = pl.pallas_call(
        _conv_bn_relu_kernel,
        out_shape=jax.ShapeDtypeStruct((Cout, N), out_dtype),
        grid_spec=pltpu.PrefetchScalarGridSpec(
            num_scalar_prefetch=0,
            grid=(N // TN,),
            in_specs=[
                pl.BlockSpec((K, TN), lambda j: (0, j)),
                pl.BlockSpec((Cout, K), lambda j: (0, 0)),
                pl.BlockSpec((Cout, 1), lambda j: (0, 0)),
                pl.BlockSpec((Cout, 1), lambda j: (0, 0)),
            ],
            out_specs=pl.BlockSpec((Cout, TN), lambda j: (0, j)),
        ),
        compiler_params=pltpu.CompilerParams(
            dimension_semantics=("parallel",), vmem_limit_bytes=vmem),
    )(xmat, wmat, scale.reshape(Cout, 1), bias.reshape(Cout, 1))
    return out.reshape(Cout, B, D, H, W)


def conv3d_bn_relu_pool(y_cf, wfull, scale, bias):
    """Conv3d(3x3x3, pad=1) + folded BN + ReLU + MaxPool3d(2), fully fused.
    y_cf: (C1, B, D, H, W); wfull: (Cout, C1, 3, 3, 3) (block-diagonal for groups).
    The 8 pool-window positions are an 'arbitrary' grid axis with a running-max
    scratch, so each streamed input block is only (27*C1, TJ)."""
    C1, B, D, H, W = y_cf.shape
    Cout = wfull.shape[0]
    assert D % 2 == 0 and H % 2 == 0 and W % 2 == 0, "MaxPool3d(2) needs even spatial dims"
    Dh, Hh, Wh = D // 2, H // 2, W // 2
    Np = B * Dh * Hh * Wh
    K = 27 * C1

    yp = jnp.pad(y_cf, ((0, 0), (0, 0), (1, 1), (1, 1), (1, 1)))
    taps = []
    for kd in range(3):
        for kh in range(3):
            for kw in range(3):
                s = yp[:, :, kd:kd + D, kh:kh + H, kw:kw + W]
                s = s.reshape(C1, B, Dh, 2, Hh, 2, Wh, 2)
                # -> (dd, hh, ww, C1, B, Dh, Hh, Wh): pool-window position outermost
                s = jnp.transpose(s, (3, 5, 7, 0, 1, 2, 4, 6))
                taps.append(s.reshape(8, C1, Np))
    xt = jnp.stack(taps, axis=1).reshape(8, K, Np).astype(jnp.bfloat16)    # row = tap*C1 + c
    wmat = jnp.transpose(wfull, (0, 2, 3, 4, 1)).reshape(Cout, K).astype(jnp.bfloat16)

    vmem = _vmem_limit()
    TJ = _lane_tile(Np, bytes_per_col=2 * K + 8 * Cout, budget=vmem // 2)
    out = pl.pallas_call(
        _conv_bn_relu_pool_kernel,
        out_shape=jax.ShapeDtypeStruct((Cout, Np), jnp.float32),
        grid_spec=pltpu.PrefetchScalarGridSpec(
            num_scalar_prefetch=0,
            grid=(Np // TJ, 8),
            in_specs=[
                pl.BlockSpec((1, K, TJ), lambda j, wp: (wp, 0, j)),
                pl.BlockSpec((Cout, K), lambda j, wp: (0, 0)),
                pl.BlockSpec((Cout, 1), lambda j, wp: (0, 0)),
                pl.BlockSpec((Cout, 1), lambda j, wp: (0, 0)),
            ],
            out_specs=pl.BlockSpec((Cout, TJ), lambda j, wp: (0, j)),
            scratch_shapes=[pltpu.VMEM((Cout, TJ), jnp.float32)],
        ),
        compiler_params=pltpu.CompilerParams(
            dimension_semantics=("parallel", "arbitrary"), vmem_limit_bytes=vmem),
    )(xt, wmat, scale.reshape(Cout, 1), bias.reshape(Cout, 1))
    return out.reshape(Cout, B, Dh, Hh, Wh)


def cross_norm_gate_combine(m_cf, p_cf, k_cf, gate_w, gate_b):
    """m/p/k: (C, B, Dh, Hh, Wh) pooled pathway features (f32); returns combined."""
    C, B, Dh, Hh, Wh = m_cf.shape
    # The PyTorch `m * attn[:, 0]` broadcast aligns per-sample attention with the
    # channel axis; it only works when batch == out_channels.  Fail loudly otherwise.
    assert B == C, (
        "AdvancedMPKBlock3D's `m * attn[:, 0]` broadcast requires batch == "
        f"out_channels (got batch={B}, out_channels={C}).")
    S = Dh * Hh * Wh
    Np = B * S
    vmem = _vmem_limit()

    # ---- pass 1 (reduce): attention logits + softmax -> (3, B) ----
    m3 = m_cf.reshape(C, B, S)
    p3 = p_cf.reshape(C, B, S)
    k3 = k_cf.reshape(C, B, S)
    gate_wt = jnp.transpose(gate_w).astype(jnp.float32)      # (3, C)
    gate_bc = gate_b.reshape(3, 1).astype(jnp.float32)

    St = _lane_tile(S, bytes_per_col=3 * C * B * 4, budget=vmem // 2)
    ns = S // St
    attn = pl.pallas_call(
        _make_attn_kernel(1.0 / float(S)),
        out_shape=jax.ShapeDtypeStruct((3, B), jnp.float32),
        grid_spec=pltpu.PrefetchScalarGridSpec(
            num_scalar_prefetch=0,
            grid=(ns,),
            in_specs=[
                pl.BlockSpec((C, B, St), lambda s: (0, 0, s)),
                pl.BlockSpec((C, B, St), lambda s: (0, 0, s)),
                pl.BlockSpec((C, B, St), lambda s: (0, 0, s)),
                pl.BlockSpec((3, C), lambda s: (0, 0)),
                pl.BlockSpec((3, 1), lambda s: (0, 0)),
            ],
            out_specs=pl.BlockSpec((3, B), lambda s: (0, 0)),
            scratch_shapes=[pltpu.VMEM((C, B), jnp.float32)],
        ),
        compiler_params=pltpu.CompilerParams(
            dimension_semantics=("arbitrary",), vmem_limit_bytes=vmem),
    )(m3, p3, k3, gate_wt, gate_bc)

    # ---- pass 2 (apply): lane-parallel cross-norm + gated combine ----
    attn_ct = jnp.transpose(attn)                             # (B == C, 3), row c = attn[:, c]
    mf = m_cf.reshape(C, Np)
    pf = p_cf.reshape(C, Np)
    kf = k_cf.reshape(C, Np)
    TJ = _lane_tile(Np, bytes_per_col=16 * C, budget=vmem // 2)
    out = pl.pallas_call(
        _apply_kernel,
        out_shape=jax.ShapeDtypeStruct((C, Np), jnp.float32),
        grid_spec=pltpu.PrefetchScalarGridSpec(
            num_scalar_prefetch=0,
            grid=(Np // TJ,),
            in_specs=[
                pl.BlockSpec((C, TJ), lambda j: (0, j)),
                pl.BlockSpec((C, TJ), lambda j: (0, j)),
                pl.BlockSpec((C, TJ), lambda j: (0, j)),
                pl.BlockSpec((C, 3), lambda j: (0, 0)),
            ],
            out_specs=pl.BlockSpec((C, TJ), lambda j: (0, j)),
        ),
        compiler_params=pltpu.CompilerParams(
            dimension_semantics=("parallel",), vmem_limit_bytes=vmem),
    )(mf, pf, kf, attn_ct)
    return out.reshape(C, B, Dh, Hh, Wh)


# ----------------------------------------------------------------------------
# Parameter setup / BN folding
# ----------------------------------------------------------------------------
def fold_bn(conv_bias, bn):
    gamma, beta, mean, var = bn
    scale = gamma / jnp.sqrt(var + BN_EPS)
    bias = (conv_bias - mean) * scale + beta
    return scale, bias


def init_params(key, cin, oc):
    keys = iter(jax.random.split(key, 64))

    def w(shape):
        fan_in = 1
        for d in shape[1:]:
            fan_in *= d
        return (jax.random.normal(next(keys), shape, jnp.float32)
                / jnp.sqrt(float(max(fan_in, 1))))

    def cb(c):
        return 0.1 * jax.random.normal(next(keys), (c,), jnp.float32)

    def bn(c):
        return (1.0 + 0.1 * jax.random.normal(next(keys), (c,), jnp.float32),  # gamma
                0.1 * jax.random.normal(next(keys), (c,), jnp.float32),        # beta
                0.1 * jax.random.normal(next(keys), (c,), jnp.float32),        # running_mean
                jax.random.uniform(next(keys), (c,), jnp.float32, 0.5, 1.5))   # running_var

    c2 = oc * 2
    return dict(
        m1_w=w((c2, cin, 5, 5, 5)), m1_b=cb(c2), m1_bn=bn(c2),
        m2_w=w((oc, c2, 3, 3, 3)), m2_b=cb(oc), m2_bn=bn(oc),
        p1_w=w((c2, cin, 3, 3, 3)), p1_b=cb(c2), p1_bn=bn(c2),
        p2_w=w((oc, c2, 3, 3, 3)), p2_b=cb(oc), p2_bn=bn(oc),
        k1_w=w((oc, cin, 3, 3, 3)), k1_b=cb(oc), k1_bn=bn(oc),
        k2_wg=w((oc, oc // 2, 3, 3, 3)), k2_b=cb(oc), k2_bn=bn(oc),
        gate_w=w((oc, 3)), gate_b=cb(3),
    )


# ----------------------------------------------------------------------------
# Full forward pass (Pallas)
# ----------------------------------------------------------------------------
def forward_pallas(x_ncdhw, params):
    oc = params['m2_w'].shape[0]
    assert oc % 2 == 0, "groups=2 conv requires even out_channels"
    x_cf = jnp.transpose(x_ncdhw, (1, 0, 2, 3, 4))            # (Cin, B, D, H, W)

    # ---- stage 1: M1(5^3) + P1 + K1 (3^3 zero-embedded into 5^3/pad=2), ONE call ----
    s_m1, b_m1 = fold_bn(params['m1_b'], params['m1_bn'])
    s_p1, b_p1 = fold_bn(params['p1_b'], params['p1_bn'])
    s_k1, b_k1 = fold_bn(params['k1_b'], params['k1_bn'])
    pad3 = ((0, 0), (0, 0), (1, 1), (1, 1), (1, 1))
    w1 = jnp.concatenate([params['m1_w'],
                          jnp.pad(params['p1_w'], pad3),
                          jnp.pad(params['k1_w'], pad3)], axis=0)
    s1v = jnp.concatenate([s_m1, s_p1, s_k1])
    b1v = jnp.concatenate([b_m1, b_p1, b_k1])
    y1 = conv3d_bn_relu(x_cf, w1, s1v, b1v, pad=2, out_dtype=jnp.bfloat16)
    # y1: (5*oc, B, D, H, W) = [m1 (2oc) ; p1 (2oc) ; k1 (oc)]

    # ---- stage 2: M2 + P2 + K2(groups=2) as one block-diagonal conv + BN+ReLU+pool ----
    c2 = 2 * oc
    hc = oc // 2
    w2 = jnp.zeros((3 * oc, 5 * oc, 3, 3, 3), jnp.float32)
    w2 = w2.at[0:oc, 0:c2].set(params['m2_w'])
    w2 = w2.at[oc:2 * oc, c2:2 * c2].set(params['p2_w'])
    w2 = w2.at[2 * oc:2 * oc + hc, 2 * c2:2 * c2 + hc].set(params['k2_wg'][:hc])
    w2 = w2.at[2 * oc + hc:3 * oc, 2 * c2 + hc:5 * oc].set(params['k2_wg'][hc:])
    s_m2, b_m2 = fold_bn(params['m2_b'], params['m2_bn'])
    s_p2, b_p2 = fold_bn(params['p2_b'], params['p2_bn'])
    s_k2, b_k2 = fold_bn(params['k2_b'], params['k2_bn'])
    s2v = jnp.concatenate([s_m2, s_p2, s_k2])
    b2v = jnp.concatenate([b_m2, b_p2, b_k2])
    y2 = conv3d_bn_relu_pool(y1, w2, s2v, b2v)                 # (3*oc, B, Dh, Hh, Wh), f32

    # ---- cross-norm + gate + softmax + weighted combine (two tiled kernels) ----
    m = y2[0:oc]
    p = y2[oc:2 * oc]
    k = y2[2 * oc:3 * oc]
    combined = cross_norm_gate_combine(m, p, k, params['gate_w'], params['gate_b'])
    return jnp.transpose(combined, (1, 0, 2, 3, 4))            # -> NCDHW


# ----------------------------------------------------------------------------
# Pure-JAX reference (mirrors the PyTorch forward, eval-mode BN, f32 HIGHEST)
# ----------------------------------------------------------------------------
def reference_forward(x, params):
    def conv_bn_relu(xin, w, b, bn, pad, groups=1):
        y = jax.lax.conv_general_dilated(
            xin, w, window_strides=(1, 1, 1), padding=[(pad, pad)] * 3,
            dimension_numbers=('NCDHW', 'OIDHW', 'NCDHW'),
            feature_group_count=groups, precision=jax.lax.Precision.HIGHEST)
        gamma, beta, mean, var = bn
        rs = lambda v: v.reshape(1, -1, 1, 1, 1)
        y = y + rs(b)
        y = (y - rs(mean)) * (rs(gamma) / jnp.sqrt(rs(var) + BN_EPS)) + rs(beta)
        return jnp.maximum(y, 0.0)

    def maxpool(xin):
        return jax.lax.reduce_window(xin, -jnp.inf, jax.lax.max,
                                     (1, 1, 2, 2, 2), (1, 1, 2, 2, 2), 'VALID')

    m = conv_bn_relu(x, params['m1_w'], params['m1_b'], params['m1_bn'], 2)
    m = maxpool(conv_bn_relu(m, params['m2_w'], params['m2_b'], params['m2_bn'], 1))
    p = conv_bn_relu(x, params['p1_w'], params['p1_b'], params['p1_bn'], 1)
    p = maxpool(conv_bn_relu(p, params['p2_w'], params['p2_b'], params['p2_bn'], 1))
    k = conv_bn_relu(x, params['k1_w'], params['k1_b'], params['k1_bn'], 1)
    k = maxpool(conv_bn_relu(k, params['k2_wg'], params['k2_b'], params['k2_bn'], 1,
                             groups=2))

    s = jnp.asarray(PATHWAY_SCALE, jnp.float32)
    m_mean = m.mean(axis=1, keepdims=True)
    p_mean = p.mean(axis=1, keepdims=True)
    k_mean = k.mean(axis=1, keepdims=True)
    m = m / (1 + ALPHA * (s[1] * p_mean + s[2] * k_mean))
    p = p / (1 + ALPHA * (s[0] * m_mean + s[2] * k_mean))
    k = k / (1 + ALPHA * (s[0] * m_mean + s[1] * p_mean))

    m_pool = m.mean(axis=(2, 3, 4))
    attn = jax.nn.softmax(m_pool @ params['gate_w'] + params['gate_b'], axis=1)
    attn = attn[..., None, None, None]
    return m * attn[:, 0] + p * attn[:, 1] + k * attn[:, 2]


# ----------------------------------------------------------------------------
if __name__ == "__main__":
    B, CIN, OC, D = 4, 2, 4, 8          # B == OC required by the torch broadcast quirk
    key = jax.random.PRNGKey(0)
    kx, kp = jax.random.split(key)
    x = jax.random.normal(kx, (B, CIN, D, D, D), jnp.float32)
    params = init_params(kp, CIN, OC)

    out = jax.block_until_ready(jax.jit(forward_pallas)(x, params))
    assert out.shape == (B, OC, D // 2, D // 2, D // 2), out.shape

    ref = reference_forward(x, params)
    err = float(jnp.max(jnp.abs(out - ref)))
    # bf16 MXU inputs (per perf review) loosen the achievable tolerance vs the
    # f32 HIGHEST-precision reference; real bugs would produce O(1) errors.
    assert err < 1e-1, f"max abs error too large: {err}"

    print("KERNEL_OK")
</pallas_src>

<mosaic_0001>
module attributes {stable_mosaic.version = 11 : i64} {
  func.func @_conv_bn_relu_kernel(%arg0: i32, %arg1: memref<250x1024xbf16, #tpu.memory_space<vmem>>, %arg2: memref<20x250xbf16, #tpu.memory_space<vmem>>, %arg3: memref<20x1xf32, #tpu.memory_space<vmem>>, %arg4: memref<20x1xf32, #tpu.memory_space<vmem>>, %arg5: memref<20x1024xbf16, #tpu.memory_space<vmem>>) attributes {dimension_semantics = [#tpu.dimension_semantics<parallel>], iteration_bounds = array<i64: 2>, scalar_prefetch = 0 : i64, scratch_operands = 0 : i64, tpu.core_type = #tpu.core_type<tc>, window_params = [{transform_indices = @transform_0, window_bounds = array<i64: 250, 1024>}, {pipeline_mode = #tpu.pipeline_mode<synchronous>, transform_indices = @transform_1, window_bounds = array<i64: 20, 250>}, {pipeline_mode = #tpu.pipeline_mode<synchronous>, transform_indices = @transform_2, window_bounds = array<i64: 20, 1>}, {pipeline_mode = #tpu.pipeline_mode<synchronous>, transform_indices = @transform_3, window_bounds = array<i64: 20, 1>}, {transform_indices = @transform_4, window_bounds = array<i64: 20, 1024>}]} {
    %c0 = arith.constant 0 : index
    %c0_0 = arith.constant 0 : index
    %0 = vector.load %arg2[%c0, %c0_0] : memref<20x250xbf16, #tpu.memory_space<vmem>>, vector<20x250xbf16>
    %c0_1 = arith.constant 0 : index
    %c0_2 = arith.constant 0 : index
    %1 = vector.load %arg1[%c0_1, %c0_2] : memref<250x1024xbf16, #tpu.memory_space<vmem>>, vector<250x1024xbf16>
    %cst = arith.constant dense<0.000000e+00> : vector<20x1024xf32>
    %2 = tpu.matmul %0, %1, %cst {dimension_numbers = #tpu.dot_dimension_numbers<[1], [0], [0], [1], [0, 0, 1, 1], [], []>} : vector<20x250xbf16>, vector<250x1024xbf16>, vector<20x1024xf32> -> vector<20x1024xf32>
    %c0_3 = arith.constant 0 : index
    %c0_4 = arith.constant 0 : index
    %3 = vector.load %arg3[%c0_3, %c0_4] : memref<20x1xf32, #tpu.memory_space<vmem>>, vector<20x1xf32>
    %4 = vector.broadcast %3 : vector<20x1xf32> to vector<20x1024xf32>
    %5 = arith.mulf %2, %4 : vector<20x1024xf32>
    %c0_5 = arith.constant 0 : index
    %c0_6 = arith.constant 0 : index
    %6 = vector.load %arg4[%c0_5, %c0_6] : memref<20x1xf32, #tpu.memory_space<vmem>>, vector<20x1xf32>
    %7 = vector.broadcast %6 : vector<20x1xf32> to vector<20x1024xf32>
    %8 = arith.addf %5, %7 : vector<20x1024xf32>
    %cst_7 = arith.constant 0.000000e+00 : f32
    %9 = vector.broadcast %cst_7 : f32 to vector<20x1024xf32>
    %10 = arith.maximumf %8, %9 : vector<20x1024xf32>
    %11 = arith.truncf %10 : vector<20x1024xf32> to vector<20x1024xbf16>
    %c0_8 = arith.constant 0 : index
    %c0_9 = arith.constant 0 : index
    %12 = vector.load %arg5[%c0_8, %c0_9] : memref<20x1024xbf16, #tpu.memory_space<vmem>>, vector<20x1024xbf16>
    tpu.vector_store %arg5[%c0_8, %c0_9], %11 {strides = array<i32>} : memref<20x1024xbf16, #tpu.memory_space<vmem>>, vector<20x1024xbf16>,
    return
  }
  func.func @transform_0(%arg0: i32) -> (i32, i32) {
    %c0_i32 = arith.constant 0 : i32
    %c0_i32_0 = arith.constant 0 : i32
    return %c0_i32, %arg0 : i32, i32
  }
  func.func @transform_1(%arg0: i32) -> (i32, i32) {
    %c0_i32 = arith.constant 0 : i32
    %c0_i32_0 = arith.constant 0 : i32
    %c0_i32_1 = arith.constant 0 : i32
    return %c0_i32, %c0_i32_0 : i32, i32
  }
  func.func @transform_2(%arg0: i32) -> (i32, i32) {
    %c0_i32 = arith.constant 0 : i32
    %c0_i32_0 = arith.constant 0 : i32
    %c0_i32_1 = arith.constant 0 : i32
    return %c0_i32, %c0_i32_0 : i32, i32
  }
  func.func @transform_3(%arg0: i32) -> (i32, i32) {
    %c0_i32 = arith.constant 0 : i32
    %c0_i32_0 = arith.constant 0 : i32
    %c0_i32_1 = arith.constant 0 : i32
    return %c0_i32, %c0_i32_0 : i32, i32
  }
  func.func @transform_4(%arg0: i32) -> (i32, i32) {
    %c0_i32 = arith.constant 0 : i32
    %c0_i32_0 = arith.constant 0 : i32
    return %c0_i32, %arg0 : i32, i32
  }
}

module attributes {stable_mosaic.version = 11 : i64} {
  func.func @_conv_bn_relu_pool_kernel(%arg0: i32, %arg1: i32, %arg2: memref<1x540x128xbf16, #tpu.memory_space<vmem>>, %arg3: memref<12x540xbf16, #tpu.memory_space<vmem>>, %arg4: memref<12x1xf32, #tpu.memory_space<vmem>>, %arg5: memref<12x1xf32, #tpu.memory_space<vmem>>, %arg6: memref<12x128xf32, #tpu.memory_space<vmem>>, %arg7: memref<12x128xf32, #tpu.memory_space<vmem>>) attributes {dimension_semantics = [#tpu.dimension_semantics<parallel>, #tpu.dimension_semantics<arbitrary>], iteration_bounds = array<i64: 2, 8>, scalar_prefetch = 0 : i64, scratch_operands = 1 : i64, tpu.core_type = #tpu.core_type<tc>, window_params = [{transform_indices = @transform_0, window_bounds = array<i64: 1, 540, 128>}, {pipeline_mode = #tpu.pipeline_mode<synchronous>, transform_indices = @transform_1, window_bounds = array<i64: 12, 540>}, {pipeline_mode = #tpu.pipeline_mode<synchronous>, transform_indices = @transform_2, window_bounds = array<i64: 12, 1>}, {pipeline_mode = #tpu.pipeline_mode<synchronous>, transform_indices = @transform_3, window_bounds = array<i64: 12, 1>}, {transform_indices = @transform_4, window_bounds = array<i64: 12, 128>}]} {
    %c0 = arith.constant 0 : index
    %c0_0 = arith.constant 0 : index
    %0 = vector.load %arg3[%c0, %c0_0] : memref<12x540xbf16, #tpu.memory_space<vmem>>, vector<12x540xbf16>
    %c0_1 = arith.constant 0 : index
    %c0_2 = arith.constant 0 : index
    %c0_3 = arith.constant 0 : index
    %1 = vector.load %arg2[%c0_1, %c0_2, %c0_3] : memref<1x540x128xbf16, #tpu.memory_space<vmem>>, vector<1x540x128xbf16>
    %2 = vector.shape_cast %1 : vector<1x540x128xbf16> to vector<540x128xbf16>
    %cst = arith.constant dense<0.000000e+00> : vector<12x128xf32>
    %3 = tpu.matmul %0, %2, %cst {dimension_numbers = #tpu.dot_dimension_numbers<[1], [0], [0], [1], [0, 0, 1, 1], [], []>} : vector<12x540xbf16>, vector<540x128xbf16>, vector<12x128xf32> -> vector<12x128xf32>
    %c0_4 = arith.constant 0 : index
    %c0_5 = arith.constant 0 : index
    %4 = vector.load %arg4[%c0_4, %c0_5] : memref<12x1xf32, #tpu.memory_space<vmem>>, vector<12x1xf32>
    %5 = vector.broadcast %4 : vector<12x1xf32> to vector<12x128xf32>
    %6 = arith.mulf %3, %5 : vector<12x128xf32>
    %c0_6 = arith.constant 0 : index
    %c0_7 = arith.constant 0 : index
    %7 = vector.load %arg5[%c0_6, %c0_7] : memref<12x1xf32, #tpu.memory_space<vmem>>, vector<12x1xf32>
    %8 = vector.broadcast %7 : vector<12x1xf32> to vector<12x128xf32>
    %9 = arith.addf %6, %8 : vector<12x128xf32>
    %cst_8 = arith.constant 0.000000e+00 : f32
    %10 = vector.broadcast %cst_8 : f32 to vector<12x128xf32>
    %11 = arith.maximumf %9, %10 : vector<12x128xf32>
    %c0_i32 = arith.constant 0 : i32
    %12 = arith.cmpi eq, %arg1, %c0_i32 : i32
    %13 = arith.extui %12 : i1 to i32
    %c0_i32_9 = arith.constant 0 : i32
    %14 = arith.cmpi ne, %13, %c0_i32_9 : i32
    scf.if %14 {
      %c0_13 = arith.constant 0 : index
      %c0_14 = arith.constant 0 : index
      %21 = vector.load %arg7[%c0_13, %c0_14] : memref<12x128xf32, #tpu.memory_space<vmem>>, vector<12x128xf32>
      tpu.vector_store %arg7[%c0_13, %c0_14], %11 {strides = array<i32>} : memref<12x128xf32, #tpu.memory_space<vmem>>, vector<12x128xf32>,
    } else {
    }
    %c0_i32_10 = arith.constant 0 : i32
    %15 = arith.cmpi sgt, %arg1, %c0_i32_10 : i32
    %16 = arith.extui %15 : i1 to i32
    %c0_i32_11 = arith.constant 0 : i32
    %17 = arith.cmpi ne, %16, %c0_i32_11 : i32
    scf.if %17 {
      %c0_13 = arith.constant 0 : index
      %c0_14 = arith.constant 0 : index
      %21 = vector.load %arg7[%c0_13, %c0_14] : memref<12x128xf32, #tpu.memory_space<vmem>>, vector<12x128xf32>
      %22 = arith.maximumf %21, %11 : vector<12x128xf32>
      %c0_15 = arith.constant 0 : index
      %c0_16 = arith.constant 0 : index
      %23 = vector.load %arg7[%c0_15, %c0_16] : memref<12x128xf32, #tpu.memory_space<vmem>>, vector<12x128xf32>
      tpu.vector_store %arg7[%c0_15, %c0_16], %22 {strides = array<i32>} : memref<12x128xf32, #tpu.memory_space<vmem>>, vector<12x128xf32>,
    } else {
    }
    %c7_i32 = arith.constant 7 : i32
    %18 = arith.cmpi eq, %arg1, %c7_i32 : i32
    %19 = arith.extui %18 : i1 to i32
    %c0_i32_12 = arith.constant 0 : i32
    %20 = arith.cmpi ne, %19, %c0_i32_12 : i32
    scf.if %20 {
      %c0_13 = arith.constant 0 : index
      %c0_14 = arith.constant 0 : index
      %21 = vector.load %arg7[%c0_13, %c0_14] : memref<12x128xf32, #tpu.memory_space<vmem>>, vector<12x128xf32>
      %c0_15 = arith.constant 0 : index
      %c0_16 = arith.constant 0 : index
      %22 = vector.load %arg6[%c0_15, %c0_16] : memref<12x128xf32, #tpu.memory_space<vmem>>, vector<12x128xf32>
      tpu.vector_store %arg6[%c0_15, %c0_16], %21 {strides = array<i32>} : memref<12x128xf32, #tpu.memory_space<vmem>>, vector<12x128xf32>,
    } else {
    }
    return
  }
  func.func @transform_0(%arg0: i32, %arg1: i32) -> (i32, i32, i32) {
    %c0_i32 = arith.constant 0 : i32
    %c0_i32_0 = arith.constant 0 : i32
    return %arg1, %c0_i32, %arg0 : i32, i32, i32
  }
  func.func @transform_1(%arg0: i32, %arg1: i32) -> (i32, i32) {
    %c0_i32 = arith.constant 0 : i32
    %c0_i32_0 = arith.constant 0 : i32
    %c0_i32_1 = arith.constant 0 : i32
    return %c0_i32, %c0_i32_0 : i32, i32
  }
  func.func @transform_2(%arg0: i32, %arg1: i32) -> (i32, i32) {
    %c0_i32 = arith.constant 0 : i32
    %c0_i32_0 = arith.constant 0 : i32
    %c0_i32_1 = arith.constant 0 : i32
    return %c0_i32, %c0_i32_0 : i32, i32
  }
  func.func @transform_3(%arg0: i32, %arg1: i32) -> (i32, i32) {
    %c0_i32 = arith.constant 0 : i32
    %c0_i32_0 = arith.constant 0 : i32
    %c0_i32_1 = arith.constant 0 : i32
    return %c0_i32, %c0_i32_0 : i32, i32
  }
  func.func @transform_4(%arg0: i32, %arg1: i32) -> (i32, i32) {
    %c0_i32 = arith.constant 0 : i32
    %c0_i32_0 = arith.constant 0 : i32
    return %c0_i32, %arg0 : i32, i32
  }
}

module attributes {stable_mosaic.version = 11 : i64} {
  func.func @kernel(%arg0: i32, %arg1: memref<4x4x64xf32, #tpu.memory_space<vmem>>, %arg2: memref<4x4x64xf32, #tpu.memory_space<vmem>>, %arg3: memref<4x4x64xf32, #tpu.memory_space<vmem>>, %arg4: memref<3x4xf32, #tpu.memory_space<vmem>>, %arg5: memref<3x1xf32, #tpu.memory_space<vmem>>, %arg6: memref<3x4xf32, #tpu.memory_space<vmem>>, %arg7: memref<4x4xf32, #tpu.memory_space<vmem>>) attributes {dimension_semantics = [#tpu.dimension_semantics<arbitrary>], iteration_bounds = array<i64: 1>, scalar_prefetch = 0 : i64, scratch_operands = 1 : i64, tpu.core_type = #tpu.core_type<tc>, window_params = [{transform_indices = @transform_0, window_bounds = array<i64: 4, 4, 64>}, {transform_indices = @transform_1, window_bounds = array<i64: 4, 4, 64>}, {transform_indices = @transform_2, window_bounds = array<i64: 4, 4, 64>}, {pipeline_mode = #tpu.pipeline_mode<synchronous>, transform_indices = @transform_3, window_bounds = array<i64: 3, 4>}, {pipeline_mode = #tpu.pipeline_mode<synchronous>, transform_indices = @transform_4, window_bounds = array<i64: 3, 1>}, {pipeline_mode = #tpu.pipeline_mode<synchronous>, transform_indices = @transform_5, window_bounds = array<i64: 3, 4>}]} {
    %c0 = arith.constant 0 : index
    %c0_0 = arith.constant 0 : index
    %c0_1 = arith.constant 0 : index
    %0 = vector.load %arg1[%c0, %c0_0, %c0_1] : memref<4x4x64xf32, #tpu.memory_space<vmem>>, vector<4x4x64xf32>
    %c0_2 = arith.constant 0 : index
    %c0_3 = arith.constant 0 : index
    %c0_4 = arith.constant 0 : index
    %1 = vector.load %arg2[%c0_2, %c0_3, %c0_4] : memref<4x4x64xf32, #tpu.memory_space<vmem>>, vector<4x4x64xf32>
    %c0_5 = arith.constant 0 : index
    %c0_6 = arith.constant 0 : index
    %c0_7 = arith.constant 0 : index
    %2 = vector.load %arg3[%c0_5, %c0_6, %c0_7] : memref<4x4x64xf32, #tpu.memory_space<vmem>>, vector<4x4x64xf32>
    %cst = arith.constant dense<0.000000e+00> : vector<4x64xf32>
    %3 = vector.multi_reduction <add>, %1, %cst [0] : vector<4x4x64xf32> to vector<4x64xf32>
    %4 = vector.shape_cast %3 : vector<4x64xf32> to vector<1x4x64xf32>
    %cst_8 = arith.constant 4.000000e+00 : f32
    %5 = vector.broadcast %cst_8 : f32 to vector<1x4x64xf32>
    %6 = arith.divf %4, %5 : vector<1x4x64xf32>
    %cst_9 = arith.constant dense<0.000000e+00> : vector<4x64xf32>
    %7 = vector.multi_reduction <add>, %2, %cst_9 [0] : vector<4x4x64xf32> to vector<4x64xf32>
    %8 = vector.shape_cast %7 : vector<4x64xf32> to vector<1x4x64xf32>
    %cst_10 = arith.constant 4.000000e+00 : f32
    %9 = vector.broadcast %cst_10 : f32 to vector<1x4x64xf32>
    %10 = arith.divf %8, %9 : vector<1x4x64xf32>
    %cst_11 = arith.constant 4.500000e-01 : f32
    %11 = vector.broadcast %cst_11 : f32 to vector<1x4x64xf32>
    %12 = arith.mulf %11, %6 : vector<1x4x64xf32>
    %cst_12 = arith.constant 4.000000e-01 : f32
    %13 = vector.broadcast %cst_12 : f32 to vector<1x4x64xf32>
    %14 = arith.mulf %13, %10 : vector<1x4x64xf32>
    %15 = arith.addf %12, %14 : vector<1x4x64xf32>
    %cst_13 = arith.constant 1.500000e-01 : f32
    %16 = vector.broadcast %cst_13 : f32 to vector<1x4x64xf32>
    %17 = arith.mulf %16, %15 : vector<1x4x64xf32>
    %cst_14 = arith.constant 1.000000e+00 : f32
    %18 = vector.broadcast %cst_14 : f32 to vector<1x4x64xf32>
    %19 = arith.addf %18, %17 : vector<1x4x64xf32>
    %20 = vector.broadcast %19 : vector<1x4x64xf32> to vector<4x4x64xf32>
    %21 = arith.divf %0, %20 : vector<4x4x64xf32>
    %cst_15 = arith.constant dense<0.000000e+00> : vector<4x4xf32>
    %22 = vector.multi_reduction <add>, %21, %cst_15 [2] : vector<4x4x64xf32> to vector<4x4xf32>
    %c0_i32 = arith.constant 0 : i32
    %23 = arith.cmpi eq, %arg0, %c0_i32 : i32
    %24 = arith.extui %23 : i1 to i32
    %c0_i32_16 = arith.constant 0 : i32
    %25 = arith.cmpi ne, %24, %c0_i32_16 : i32
    scf.if %25 {
      %cst_23 = arith.constant 0.000000e+00 : f32
      %32 = vector.broadcast %cst_23 : f32 to vector<4x4xf32>
      %c0_24 = arith.constant 0 : index
      %c0_25 = arith.constant 0 : index
      %33 = vector.load %arg7[%c0_24, %c0_25] : memref<4x4xf32, #tpu.memory_space<vmem>>, vector<4x4xf32>
      tpu.vector_store %arg7[%c0_24, %c0_25], %32 {strides = array<i32>} : memref<4x4xf32, #tpu.memory_space<vmem>>, vector<4x4xf32>,
    } else {
    }
    %c0_17 = arith.constant 0 : index
    %c0_18 = arith.constant 0 : index
    %26 = vector.load %arg7[%c0_17, %c0_18] : memref<4x4xf32, #tpu.memory_space<vmem>>, vector<4x4xf32>
    %27 = arith.addf %26, %22 : vector<4x4xf32>
    %c0_19 = arith.constant 0 : index
    %c0_20 = arith.constant 0 : index
    %28 = vector.load %arg7[%c0_19, %c0_20] : memref<4x4xf32, #tpu.memory_space<vmem>>, vector<4x4xf32>
    tpu.vector_store %arg7[%c0_19, %c0_20], %27 {strides = array<i32>} : memref<4x4xf32, #tpu.memory_space<vmem>>, vector<4x4xf32>,
    %c0_i32_21 = arith.constant 0 : i32
    %29 = arith.cmpi eq, %arg0, %c0_i32_21 : i32
    %30 = arith.extui %29 : i1 to i32
    %c0_i32_22 = arith.constant 0 : i32
    %31 = arith.cmpi ne, %30, %c0_i32_22 : i32
    scf.if %31 {
      %c0_23 = arith.constant 0 : index
      %c0_24 = arith.constant 0 : index
      %32 = vector.load %arg7[%c0_23, %c0_24] : memref<4x4xf32, #tpu.memory_space<vmem>>, vector<4x4xf32>
      %cst_25 = arith.constant 1.562500e-02 : f32
      %33 = vector.broadcast %cst_25 : f32 to vector<4x4xf32>
      %34 = arith.mulf %32, %33 : vector<4x4xf32>
      %c0_26 = arith.constant 0 : index
      %c0_27 = arith.constant 0 : index
      %35 = vector.load %arg4[%c0_26, %c0_27] : memref<3x4xf32, #tpu.memory_space<vmem>>, vector<3x4xf32>
      %cst_28 = arith.constant dense<0.000000e+00> : vector<3x4xf32>
      %36 = tpu.matmul %35, %34, %cst_28 {dimension_numbers = #tpu.dot_dimension_numbers<[1], [0], [0], [1], [0, 0, 1, 1], [], []>} : vector<3x4xf32>, vector<4x4xf32>, vector<3x4xf32> -> vector<3x4xf32>
      %c0_29 = arith.constant 0 : index
      %c0_30 = arith.constant 0 : index
      %37 = vector.load %arg5[%c0_29, %c0_30] : memref<3x1xf32, #tpu.memory_space<vmem>>, vector<3x1xf32>
      %38 = vector.broadcast %37 : vector<3x1xf32> to vector<3x4xf32>
      %39 = arith.addf %36, %38 : vector<3x4xf32>
      %cst_31 = arith.constant dense<0xFF800000> : vector<4xf32>
      %40 = vector.multi_reduction <maximumf>, %39, %cst_31 [0] : vector<3x4xf32> to vector<4xf32>
      %41 = vector.shape_cast %40 : vector<4xf32> to vector<1x4xf32>
      %42 = vector.broadcast %41 : vector<1x4xf32> to vector<3x4xf32>
      %43 = arith.subf %39, %42 : vector<3x4xf32>
      %44 = math.exp %43 : vector<3x4xf32>
      %cst_32 = arith.constant dense<0.000000e+00> : vector<4xf32>
      %45 = vector.multi_reduction <add>, %44, %cst_32 [0] : vector<3x4xf32> to vector<4xf32>
      %46 = vector.shape_cast %45 : vector<4xf32> to vector<1x4xf32>
      %47 = vector.broadcast %46 : vector<1x4xf32> to vector<3x4xf32>
      %48 = arith.divf %44, %47 : vector<3x4xf32>
      %c0_33 = arith.constant 0 : index
      %c0_34 = arith.constant 0 : index
      %49 = vector.load %arg6[%c0_33, %c0_34] : memref<3x4xf32, #tpu.memory_space<vmem>>, vector<3x4xf32>
      tpu.vector_store %arg6[%c0_33, %c0_34], %48 {strides = array<i32>} : memref<3x4xf32, #tpu.memory_space<vmem>>, vector<3x4xf32>,
    } else {
    }
    return
  }
  func.func @transform_0(%arg0: i32) -> (i32, i32, i32) {
    %c0_i32 = arith.constant 0 : i32
    %c0_i32_0 = arith.constant 0 : i32
    %c0_i32_1 = arith.constant 0 : i32
    return %c0_i32, %c0_i32_0, %arg0 : i32, i32, i32
  }
  func.func @transform_1(%arg0: i32) -> (i32, i32, i32) {
    %c0_i32 = arith.constant 0 : i32
    %c0_i32_0 = arith.constant 0 : i32
    %c0_i32_1 = arith.constant 0 : i32
    return %c0_i32, %c0_i32_0, %arg0 : i32, i32, i32
  }
  func.func @transform_2(%arg0: i32) -> (i32, i32, i32) {
    %c0_i32 = arith.constant 0 : i32
    %c0_i32_0 = arith.constant 0 : i32
    %c0_i32_1 = arith.constant 0 : i32
    return %c0_i32, %c0_i32_0, %arg0 : i32, i32, i32
  }
  func.func @transform_3(%arg0: i32) -> (i32, i32) {
    %c0_i32 = arith.constant 0 : i32
    %c0_i32_0 = arith.constant 0 : i32
    %c0_i32_1 = arith.constant 0 : i32
    return %c0_i32, %c0_i32_0 : i32, i32
  }
  func.func @transform_4(%arg0: i32) -> (i32, i32) {
    %c0_i32 = arith.constant 0 : i32
    %c0_i32_0 = arith.constant 0 : i32
    %c0_i32_1 = arith.constant 0 : i32
    return %c0_i32, %c0_i32_0 : i32, i32
  }
  func.func @transform_5(%arg0: i32) -> (i32, i32) {
    %c0_i32 = arith.constant 0 : i32
    %c0_i32_0 = arith.constant 0 : i32
    %c0_i32_1 = arith.constant 0 : i32
    return %c0_i32, %c0_i32_0 : i32, i32
  }
}

module attributes {stable_mosaic.version = 11 : i64} {
  func.func @_apply_kernel(%arg0: i32, %arg1: memref<4x128xf32, #tpu.memory_space<vmem>>, %arg2: memref<4x128xf32, #tpu.memory_space<vmem>>, %arg3: memref<4x128xf32, #tpu.memory_space<vmem>>, %arg4: memref<4x3xf32, #tpu.memory_space<vmem>>, %arg5: memref<4x128xf32, #tpu.memory_space<vmem>>) attributes {dimension_semantics = [#tpu.dimension_semantics<parallel>], iteration_bounds = array<i64: 2>, scalar_prefetch = 0 : i64, scratch_operands = 0 : i64, tpu.core_type = #tpu.core_type<tc>, window_params = [{transform_indices = @transform_0, window_bounds = array<i64: 4, 128>}, {transform_indices = @transform_1, window_bounds = array<i64: 4, 128>}, {transform_indices = @transform_2, window_bounds = array<i64: 4, 128>}, {pipeline_mode = #tpu.pipeline_mode<synchronous>, transform_indices = @transform_3, window_bounds = array<i64: 4, 3>}, {transform_indices = @transform_4, window_bounds = array<i64: 4, 128>}]} {
    %c0 = arith.constant 0 : index
    %c0_0 = arith.constant 0 : index
    %0 = vector.load %arg1[%c0, %c0_0] : memref<4x128xf32, #tpu.memory_space<vmem>>, vector<4x128xf32>
    %c0_1 = arith.constant 0 : index
    %c0_2 = arith.constant 0 : index
    %1 = vector.load %arg2[%c0_1, %c0_2] : memref<4x128xf32, #tpu.memory_space<vmem>>, vector<4x128xf32>
    %c0_3 = arith.constant 0 : index
    %c0_4 = arith.constant 0 : index
    %2 = vector.load %arg3[%c0_3, %c0_4] : memref<4x128xf32, #tpu.memory_space<vmem>>, vector<4x128xf32>
    %cst = arith.constant dense<0.000000e+00> : vector<128xf32>
    %3 = vector.multi_reduction <add>, %0, %cst [0] : vector<4x128xf32> to vector<128xf32>
    %4 = vector.shape_cast %3 : vector<128xf32> to vector<1x128xf32>
    %cst_5 = arith.constant 4.000000e+00 : f32
    %5 = vector.broadcast %cst_5 : f32 to vector<1x128xf32>
    %6 = arith.divf %4, %5 : vector<1x128xf32>
    %cst_6 = arith.constant dense<0.000000e+00> : vector<128xf32>
    %7 = vector.multi_reduction <add>, %1, %cst_6 [0] : vector<4x128xf32> to vector<128xf32>
    %8 = vector.shape_cast %7 : vector<128xf32> to vector<1x128xf32>
    %cst_7 = arith.constant 4.000000e+00 : f32
    %9 = vector.broadcast %cst_7 : f32 to vector<1x128xf32>
    %10 = arith.divf %8, %9 : vector<1x128xf32>
    %cst_8 = arith.constant dense<0.000000e+00> : vector<128xf32>
    %11 = vector.multi_reduction <add>, %2, %cst_8 [0] : vector<4x128xf32> to vector<128xf32>
    %12 = vector.shape_cast %11 : vector<128xf32> to vector<1x128xf32>
    %cst_9 = arith.constant 4.000000e+00 : f32
    %13 = vector.broadcast %cst_9 : f32 to vector<1x128xf32>
    %14 = arith.divf %12, %13 : vector<1x128xf32>
    %cst_10 = arith.constant 4.500000e-01 : f32
    %15 = vector.broadcast %cst_10 : f32 to vector<1x128xf32>
    %16 = arith.mulf %15, %10 : vector<1x128xf32>
    %cst_11 = arith.constant 4.000000e-01 : f32
    %17 = vector.broadcast %cst_11 : f32 to vector<1x128xf32>
    %18 = arith.mulf %17, %14 : vector<1x128xf32>
    %19 = arith.addf %16, %18 : vector<1x128xf32>
    %cst_12 = arith.constant 1.500000e-01 : f32
    %20 = vector.broadcast %cst_12 : f32 to vector<1x128xf32>
    %21 = arith.mulf %20, %19 : vector<1x128xf32>
    %cst_13 = arith.constant 1.000000e+00 : f32
    %22 = vector.broadcast %cst_13 : f32 to vector<1x128xf32>
    %23 = arith.addf %22, %21 : vector<1x128xf32>
    %24 = vector.broadcast %23 : vector<1x128xf32> to vector<4x128xf32>
    %25 = arith.divf %0, %24 : vector<4x128xf32>
    %cst_14 = arith.constant 5.000000e-01 : f32
    %26 = vector.broadcast %cst_14 : f32 to vector<1x128xf32>
    %27 = arith.mulf %26, %6 : vector<1x128xf32>
    %cst_15 = arith.constant 4.000000e-01 : f32
    %28 = vector.broadcast %cst_15 : f32 to vector<1x128xf32>
    %29 = arith.mulf %28, %14 : vector<1x128xf32>
    %30 = arith.addf %27, %29 : vector<1x128xf32>
    %cst_16 = arith.constant 1.500000e-01 : f32
    %31 = vector.broadcast %cst_16 : f32 to vector<1x128xf32>
    %32 = arith.mulf %31, %30 : vector<1x128xf32>
    %cst_17 = arith.constant 1.000000e+00 : f32
    %33 = vector.broadcast %cst_17 : f32 to vector<1x128xf32>
    %34 = arith.addf %33, %32 : vector<1x128xf32>
    %35 = vector.broadcast %34 : vector<1x128xf32> to vector<4x128xf32>
    %36 = arith.divf %1, %35 : vector<4x128xf32>
    %cst_18 = arith.constant 5.000000e-01 : f32
    %37 = vector.broadcast %cst_18 : f32 to vector<1x128xf32>
    %38 = arith.mulf %37, %6 : vector<1x128xf32>
    %cst_19 = arith.constant 4.500000e-01 : f32
    %39 = vector.broadcast %cst_19 : f32 to vector<1x128xf32>
    %40 = arith.mulf %39, %10 : vector<1x128xf32>
    %41 = arith.addf %38, %40 : vector<1x128xf32>
    %cst_20 = arith.constant 1.500000e-01 : f32
    %42 = vector.broadcast %cst_20 : f32 to vector<1x128xf32>
    %43 = arith.mulf %42, %41 : vector<1x128xf32>
    %cst_21 = arith.constant 1.000000e+00 : f32
    %44 = vector.broadcast %cst_21 : f32 to vector<1x128xf32>
    %45 = arith.addf %44, %43 : vector<1x128xf32>
    %46 = vector.broadcast %45 : vector<1x128xf32> to vector<4x128xf32>
    %47 = arith.divf %2, %46 : vector<4x128xf32>
    %c0_22 = arith.constant 0 : index
    %c0_23 = arith.constant 0 : index
    %48 = vector.load %arg4[%c0_22, %c0_23] : memref<4x3xf32, #tpu.memory_space<vmem>>, vector<4x1xf32>
    %49 = vector.broadcast %48 : vector<4x1xf32> to vector<4x128xf32>
    %50 = arith.mulf %25, %49 : vector<4x128xf32>
    %c0_24 = arith.constant 0 : index
    %c1 = arith.constant 1 : index
    %51 = vector.load %arg4[%c0_24, %c1] : memref<4x3xf32, #tpu.memory_space<vmem>>, vector<4x1xf32>
    %52 = vector.broadcast %51 : vector<4x1xf32> to vector<4x128xf32>
    %53 = arith.mulf %36, %52 : vector<4x128xf32>
    %54 = arith.addf %50, %53 : vector<4x128xf32>
    %c0_25 = arith.constant 0 : index
    %c2 = arith.constant 2 : index
    %55 = vector.load %arg4[%c0_25, %c2] : memref<4x3xf32, #tpu.memory_space<vmem>>, vector<4x1xf32>
    %56 = vector.broadcast %55 : vector<4x1xf32> to vector<4x128xf32>
    %57 = arith.mulf %47, %56 : vector<4x128xf32>
    %58 = arith.addf %54, %57 : vector<4x128xf32>
    %c0_26 = arith.constant 0 : index
    %c0_27 = arith.constant 0 : index
    %59 = vector.load %arg5[%c0_26, %c0_27] : memref<4x128xf32, #tpu.memory_space<vmem>>, vector<4x128xf32>
    tpu.vector_store %arg5[%c0_26, %c0_27], %58 {strides = array<i32>} : memref<4x128xf32, #tpu.memory_space<vmem>>, vector<4x128xf32>,
    return
  }
  func.func @transform_0(%arg0: i32) -> (i32, i32) {
    %c0_i32 = arith.constant 0 : i32
    %c0_i32_0 = arith.constant 0 : i32
    return %c0_i32, %arg0 : i32, i32
  }
  func.func @transform_1(%arg0: i32) -> (i32, i32) {
    %c0_i32 = arith.constant 0 : i32
    %c0_i32_0 = arith.constant 0 : i32
    return %c0_i32, %arg0 : i32, i32
  }
  func.func @transform_2(%arg0: i32) -> (i32, i32) {
    %c0_i32 = arith.constant 0 : i32
    %c0_i32_0 = arith.constant 0 : i32
    return %c0_i32, %arg0 : i32, i32
  }
  func.func @transform_3(%arg0: i32) -> (i32, i32) {
    %c0_i32 = arith.constant 0 : i32
    %c0_i32_0 = arith.constant 0 : i32
    %c0_i32_1 = arith.constant 0 : i32
    return %c0_i32, %c0_i32_0 : i32, i32
  }
  func.func @transform_4(%arg0: i32) -> (i32, i32) {
    %c0_i32 = arith.constant 0 : i32
    %c0_i32_0 = arith.constant 0 : i32
    return %c0_i32, %arg0 : i32, i32
  }
}

</mosaic_0001>

<llo_original>
// kernel: forward_pallas.4
$region0: #{forward_pallas.4}
  #allocation0 [shape = 'u32[]', space=smem, size = 0x4, offset = 0x4, fixed_abs, tag = 'smem constant byte address 0x4 - core index']
  #allocation1 [shape = 'u32[72,128]{1,0:T(1,128)}', space=vmem, size = 0x9000, scoped, tag = 'internal scratch']
  %s0 = inlined_call_operand.vmem [shape: bf16[250,2048], index: 0, kind: input, shape index: {}]
  %s1 = inlined_call_operand.vmem [shape: bf16[20,250], index: 1, kind: input, shape index: {}]
  %s2 = inlined_call_operand.vmem [shape: f32[20,1], index: 2, kind: input, shape index: {}]
  %s3 = inlined_call_operand.vmem [shape: f32[20,1], index: 3, kind: input, shape index: {}]
  %s4 = inlined_call_operand.vmem [shape: bf16[20,2048], index: 4, kind: output, shape index: {}]
  %s5 = sld [smem:[#allocation0]]
  $region91: #{forward_pallas.4} parent=0
    _
  %s7 = ssub.s32 1, %s5
  %s8 = scalar_select 0, %s7, %s5
  $region1: #{forward_pallas.4} parent=0
    #allocation2 [shape = 'u8[1048576]{0}', space=vmem, size = 0x100000, scoped, tag = 'input window, operand 0']
    #allocation3 [shape = 'u8[98304]{0}', space=vmem, size = 0x18000, scoped, tag = 'output window, operand 0']
    loop: start=0, step=1, limit=4
    $region2: #{forward_pallas.4} parent=1 // loop_pre_header
      _
    $region3: #{forward_pallas.4} parent=1 // loop_header
      %s10 = sphi 0, %s14
      %p11 = scmp.ge.s32.totalorder %s10, 4
      %s20 = sphi 0, %s22
      %s23 = sphi 0, %s20
      %s24 = sphi 0, %s23
      %s40 = sphi 0, %s24
      %s44 = sphi 0, %s44
      %s46 = sphi 0, %s44
      %s47 = sphi 0, %s46
      %s61 = sphi 0, %s47
      %s65 = sphi 0, %s65
      %s67 = sphi 0, %s65
      %s68 = sphi 0, %s67
      %s82 = sphi 0, %s68
      %s86 = sphi 0, %s86
      %s88 = sphi 0, %s86
      %s89 = sphi 0, %s88
      %s103 = sphi 0, %s89
      %s109 = sphi 0, %s111
      %s112 = sphi 0, %s109
      %s113 = sphi 0, %s112
      %s129 = sphi 0, %s113
    $region4: #{forward_pallas.4} parent=1 // loop_header_branch
      %13 = sbr.rel (%p11) target = $region8
    $region5: #{forward_pallas.4} parent=1 // loop_body
      %s15 = ssub.s32 %s10, 1
      %s16 = ssub.s32 %s10, 2
      %s17 = sadd.s32 %s10, 1
      %s18 = ssub.s32 %s10, %s17
      %p19 = scmp.eq.s32.totalorder %s18, 0
      %s21 = sadd.s32 %s20, 1
      %s22 = scalar_select %p19, %s20, %s21
      %p25 = pneg %p19
      %p26 = scmp.eq.s32.totalorder %s10, 1
      %p27 = por %p25, %p26
      %p28 = scmp.ne.s32.totalorder %s20, %s23
      %p29 = scmp.eq.s32.totalorder %s10, 0
      %p30 = por %p28, %p29
      %p31 = scmp.ne.s32.totalorder %s20, %s23
      %p32 = scmp.eq.s32.totalorder %s15, 1
      %p33 = por %p31, %p32
      %p34 = scmp.ne.s32.totalorder %s23, %s24
      %p35 = scmp.eq.s32.totalorder %s15, 0
      %p36 = por %p34, %p35
      %p37 = scmp.ne.s32.totalorder %s23, %s24
      %p38 = scmp.eq.s32.totalorder %s16, 1
      %p39 = por %p37, %p38
      %p41 = scmp.ne.s32.totalorder %s24, %s40
      %p42 = scmp.eq.s32.totalorder %s16, 0
      %p43 = por %p41, %p42
      %s45 = sadd.s32 %s44, 1
      %p48 = scmp.eq.s32.totalorder %s10, 1
      %p49 = scmp.ne.s32.totalorder %s44, %s46
      %p50 = scmp.eq.s32.totalorder %s10, 0
      %p51 = por %p49, %p50
      %p52 = scmp.ne.s32.totalorder %s44, %s46
      %p53 = scmp.eq.s32.totalorder %s15, 1
      %p54 = por %p52, %p53
      %p55 = scmp.ne.s32.totalorder %s46, %s47
      %p56 = scmp.eq.s32.totalorder %s15, 0
      %p57 = por %p55, %p56
      %p58 = scmp.ne.s32.totalorder %s46, %s47
      %p59 = scmp.eq.s32.totalorder %s16, 1
      %p60 = por %p58, %p59
      %p62 = scmp.ne.s32.totalorder %s47, %s61
      %p63 = scmp.eq.s32.totalorder %s16, 0
      %p64 = por %p62, %p63
      %s66 = sadd.s32 %s65, 1
      %p69 = scmp.eq.s32.totalorder %s10, 1
      %p70 = scmp.ne.s32.totalorder %s65, %s67
      %p71 = scmp.eq.s32.totalorder %s10, 0
      %p72 = por %p70, %p71
      %p73 = scmp.ne.s32.totalorder %s65, %s67
      %p74 = scmp.eq.s32.totalorder %s15, 1
      %p75 = por %p73, %p74
      %p76 = scmp.ne.s32.totalorder %s67, %s68
      %p77 = scmp.eq.s32.totalorder %s15, 0
      %p78 = por %p76, %p77
      %p79 = scmp.ne.s32.totalorder %s67, %s68
      %p80 = scmp.eq.s32.totalorder %s16, 1
      %p81 = por %p79, %p80
      %p83 = scmp.ne.s32.totalorder %s68, %s82
      %p84 = scmp.eq.s32.totalorder %s16, 0
      %p85 = por %p83, %p84
      %s87 = sadd.s32 %s86, 1
      %p90 = scmp.eq.s32.totalorder %s10, 1
      %p91 = scmp.ne.s32.totalorder %s86, %s88
      %p92 = scmp.eq.s32.totalorder %s10, 0
      %p93 = por %p91, %p92
      %p94 = scmp.ne.s32.totalorder %s86, %s88
      %p95 = scmp.eq.s32.totalorder %s15, 1
      %p96 = por %p94, %p95
      %p97 = scmp.ne.s32.totalorder %s88, %s89
      %p98 = scmp.eq.s32.totalorder %s15, 0
      %p99 = por %p97, %p98
      %p100 = scmp.ne.s32.totalorder %s88, %s89
      %p101 = scmp.eq.s32.totalorder %s16, 1
      %p102 = por %p100, %p101
      %p104 = scmp.ne.s32.totalorder %s89, %s103
      %p105 = scmp.eq.s32.totalorder %s16, 0
      %p106 = por %p104, %p105
      %s107 = ssub.s32 %s10, %s17
      %p108 = scmp.eq.s32.totalorder %s107, 0
      %s110 = sadd.s32 %s109, 1
      %s111 = scalar_select %p108, %s109, %s110
      %p114 = pneg %p108
      %p115 = scmp.eq.s32.totalorder %s10, 1
      %p116 = por %p114, %p115
      %p117 = scmp.ne.s32.totalorder %s109, %s112
      %p118 = scmp.eq.s32.totalorder %s10, 0
      %p119 = por %p117, %p118
      %p120 = scmp.ne.s32.totalorder %s109, %s112
      %p121 = scmp.eq.s32.totalorder %s15, 1
      %p122 = por %p120, %p121
      %p123 = scmp.ne.s32.totalorder %s112, %s113
      %p124 = scmp.eq.s32.totalorder %s15, 0
      %p125 = por %p123, %p124
      %p126 = scmp.ne.s32.totalorder %s112, %s113
      %p127 = scmp.eq.s32.totalorder %s16, 1
      %p128 = por %p126, %p127
      %p130 = scmp.ne.s32.totalorder %s113, %s129
      %p131 = scmp.eq.s32.totalorder %s16, 0
      %p132 = por %p130, %p131
      %p133 = scmp.le.s32.totalorder 1, %s10
      %p134 = scmp.lt.s32.totalorder %s10, 3
      %p135 = pnand %p133, %p134
      %p136 = pneg %p135
      // Predicated region
      $region9: #{forward_pallas.4} parent=5 // pred_check
        _
      $region10: #{forward_pallas.4} parent=5 // pred_check_branch
        %138 = sbr.rel (%p135) target = $region12
      $region11: #{forward_pallas.4} parent=5 // pred_region
        %s139 = ssub.s32 %s10, 1
        // Predicated region
        $region13: #{forward_pallas.4} parent=11 // pred_check
          %p140 = pneg %p57
        $region14: #{forward_pallas.4} parent=11 // pred_check_branch
          %142 = sbr.rel (%p140) target = $region16
        $region15: #{forward_pallas.4} parent=11 // pred_region
          _
        $region16: #{forward_pallas.4} parent=11 // pred_fallthru
          _
        // Predicated region
        $region17: #{forward_pallas.4} parent=11 // pred_check
          %p143 = pneg %p78
        $region18: #{forward_pallas.4} parent=11 // pred_check_branch
          %145 = sbr.rel (%p143) target = $region20
        $region19: #{forward_pallas.4} parent=11 // pred_region
          _
        $region20: #{forward_pallas.4} parent=11 // pred_fallthru
          _
        // Predicated region
        $region21: #{forward_pallas.4} parent=11 // pred_check
          %p146 = pneg %p99
        $region22: #{forward_pallas.4} parent=11 // pred_check_branch
          %148 = sbr.rel (%p146) target = $region24
        $region23: #{forward_pallas.4} parent=11 // pred_region
          _
        $region24: #{forward_pallas.4} parent=11 // pred_fallthru
          _
      $region12: #{forward_pallas.4} parent=5 // pred_fallthru
        _
      %p149 = scmp.lt.s32.totalorder %s10, 2
      // Predicated region
      $region25: #{forward_pallas.4} parent=5 // pred_check
        %p150 = pneg %p149
      $region26: #{forward_pallas.4} parent=5 // pred_check_branch
        %152 = sbr.rel (%p150) target = $region28
      $region27: #{forward_pallas.4} parent=5 // pred_region
        // Predicated region
        $region29: #{forward_pallas.4} parent=27 // pred_check
          %p153 = pneg %p30
        $region30: #{forward_pallas.4} parent=27 // pred_check_branch
          %155 = sbr.rel (%p153) target = $region32
        $region31: #{forward_pallas.4} parent=27 // pred_region
          %s156 = sand.u32 %s20, 1
          %s157 = sand.u32 %s20, 1
          %s158 = smul.addr %s157, 1024
          %s159 = scalar_lea.vmem [#allocation2], %s158
          %s160 = smul.u32 8, %s10
          %s161 = smul.addr %s160, 4
          %s162 = scalar_lea.vmem %s0, %s161
          // Predicated region
          $region33: #{forward_pallas.4} parent=31 // pred_check
            _
          $region34: #{forward_pallas.4} parent=31 // pred_check_branch
            %164 = sbr.rel (0) target = $region36
          $region35: #{forward_pallas.4} parent=31 // pred_region
            // Predicated region
            $region37: #{forward_pallas.4} parent=35 // pred_check
              _
            $region38: #{forward_pallas.4} parent=35 // pred_check_branch
              %166 = sbr.rel (0) target = $region40
            $region39: #{forward_pallas.4} parent=35 // pred_region
              loop: start=0, step=1, limit=1
              $region41: #{forward_pallas.4} parent=39 // loop_pre_header
                _
              $region42: #{forward_pallas.4} parent=39 // loop_header
                %s168 = sphi 0, %s172
                %p169 = scmp.ge.s32.totalorder %s168, 1
                %s173 = sphi %s162, %s162
                %s174 = sphi %s159, %s159
              $region43: #{forward_pallas.4} parent=39 // loop_header_branch
                %171 = sbr.rel (%p169) target = $region47
              $region44: #{forward_pallas.4} parent=39 // loop_body
                %v175 = vld [vmem:[%s173] sm:$0xff]
                %176 = vst [vmem:[%s174] sm:$0xff] %v175
                %v177 = vld [vmem:[%s173 + $0x8] sm:$0xff]
                %178 = vst [vmem:[%s174 + $0x8] sm:$0xff] %v177
                %v179 = vld [vmem:[%s173 + $0x10] sm:$0xff]
                %180 = vst [vmem:[%s174 + $0x10] sm:$0xff] %v179
                %v181 = vld [vmem:[%s173 + $0x18] sm:$0xff]
                %182 = vst [vmem:[%s174 + $0x18] sm:$0xff] %v181
                %v183 = vld [vmem:[%s173 + $0x40] sm:$0xff]
                %184 = vst [vmem:[%s174 + $0x20] sm:$0xff] %v183
                %v185 = vld [vmem:[%s173 + $0x48] sm:$0xff]
                %186 = vst [vmem:[%s174 + $0x28] sm:$0xff] %v185
                %v187 = vld [vmem:[%s173 + $0x50] sm:$0xff]
                %188 = vst [vmem:[%s174 + $0x30] sm:$0xff] %v187
                %v189 = vld [vmem:[%s173 + $0x58] sm:$0xff]
                %190 = vst [vmem:[%s174 + $0x38] sm:$0xff] %v189
                %v191 = vld [vmem:[%s173 + $0x80] sm:$0xff]
                %192 = vst [vmem:[%s174 + $0x40] sm:$0xff] %v191
                %v193 = vld [vmem:[%s173 + $0x88] sm:$0xff]
                %194 = vst [vmem:[%s174 + $0x48] sm:$0xff] %v193
                %v195 = vld [vmem:[%s173 + $0x90] sm:$0xff]
                %196 = vst [vmem:[%s174 + $0x50] sm:$0xff] %v195
                %v197 = vld [vmem:[%s173 + $0x98] sm:$0xff]
                %198 = vst [vmem:[%s174 + $0x58] sm:$0xff] %v197
                %v199 = vld [vmem:[%s173 + $0xc0] sm:$0xff]
                %200 = vst [vmem:[%s174 + $0x60] sm:$0xff] %v199
                %v201 = vld [vmem:[%s173 + $0xc8] sm:$0xff]
                %202 = vst [vmem:[%s174 + $0x68] sm:$0xff] %v201
                %v203 = vld [vmem:[%s173 + $0xd0] sm:$0xff]
                %204 = vst [vmem:[%s174 + $0x70] sm:$0xff] %v203
                %v205 = vld [vmem:[%s173 + $0xd8] sm:$0xff]
                %206 = vst [vmem:[%s174 + $0x78] sm:$0xff] %v205
                %v207 = vld [vmem:[%s173 + $0x100] sm:$0xff]
                %208 = vst [vmem:[%s174 + $0x80] sm:$0xff] %v207
                %v209 = vld [vmem:[%s173 + $0x108] sm:$0xff]
                %210 = vst [vmem:[%s174 + $0x88] sm:$0xff] %v209
                %v211 = vld [vmem:[%s173 + $0x110] sm:$0xff]
                %212 = vst [vmem:[%s174 + $0x90] sm:$0xff] %v211
                %v213 = vld [vmem:[%s173 + $0x118] sm:$0xff]
                %214 = vst [vmem:[%s174 + $0x98] sm:$0xff] %v213
                %v215 = vld [vmem:[%s173 + $0x140] sm:$0xff]
                %216 = vst [vmem:[%s174 + $0xa0] sm:$0xff] %v215
                %v217 = vld [vmem:[%s173 + $0x148] sm:$0xff]
                %218 = vst [vmem:[%s174 + $0xa8] sm:$0xff] %v217
                %v219 = vld [vmem:[%s173 + $0x150] sm:$0xff]
                %220 = vst [vmem:[%s174 + $0xb0] sm:$0xff] %v219
                %v221 = vld [vmem:[%s173 + $0x158] sm:$0xff]
                %222 = vst [vmem:[%s174 + $0xb8] sm:$0xff] %v221
                %v223 = vld [vmem:[%s173 + $0x180] sm:$0xff]
                %224 = vst [vmem:[%s174 + $0xc0] sm:$0xff] %v223
                %v225 = vld [vmem:[%s173 + $0x188] sm:$0xff]
                %226 = vst [vmem:[%s174 + $0xc8] sm:$0xff] %v225
                %v227 = vld [vmem:[%s173 + $0x190] sm:$0xff]
                %228 = vst [vmem:[%s174 + $0xd0] sm:$0xff] %v227
                %v229 = vld [vmem:[%s173 + $0x198] sm:$0xff]
                %230 = vst [vmem:[%s174 + $0xd8] sm:$0xff] %v229
                %v231 = vld [vmem:[%s173 + $0x1c0] sm:$0xff]
                %232 = vst [vmem:[%s174 + $0xe0] sm:$0xff] %v231
                %v233 = vld [vmem:[%s173 + $0x1c8] sm:$0xff]
                %234 = vst [vmem:[%s174 + $0xe8] sm:$0xff] %v233
                %v235 = vld [vmem:[%s173 + $0x1d0] sm:$0xff]
                %236 = vst [vmem:[%s174 + $0xf0] sm:$0xff] %v235
                %v237 = vld [vmem:[%s173 + $0x1d8] sm:$0xff]
                %238 = vst [vmem:[%s174 + $0xf8] sm:$0xff] %v237
                %v239 = vld [vmem:[%s173 + $0x200] sm:$0xff]
                %240 = vst [vmem:[%s174 + $0x100] sm:$0xff] %v239
                %v241 = vld [vmem:[%s173 + $0x208] sm:$0xff]
                %242 = vst [vmem:[%s174 + $0x108] sm:$0xff] %v241
                %v243 = vld [vmem:[%s173 + $0x210] sm:$0xff]
                %244 = vst [vmem:[%s174 + $0x110] sm:$0xff] %v243
                %v245 = vld [vmem:[%s173 + $0x218] sm:$0xff]
                %246 = vst [vmem:[%s174 + $0x118] sm:$0xff] %v245
                %v247 = vld [vmem:[%s173 + $0x240] sm:$0xff]
                %248 = vst [vmem:[%s174 + $0x120] sm:$0xff] %v247
                %v249 = vld [vmem:[%s173 + $0x248] sm:$0xff]
                %250 = vst [vmem:[%s174 + $0x128] sm:$0xff] %v249
                %v251 = vld [vmem:[%s173 + $0x250] sm:$0xff]
                %252 = vst [vmem:[%s174 + $0x130] sm:$0xff] %v251
                %v253 = vld [vmem:[%s173 + $0x258] sm:$0xff]
                %254 = vst [vmem:[%s174 + $0x138] sm:$0xff] %v253
                %v255 = vld [vmem:[%s173 + $0x280] sm:$0xff]
                %256 = vst [vmem:[%s174 + $0x140] sm:$0xff] %v255
                %v257 = vld [vmem:[%s173 + $0x288] sm:$0xff]
                %258 = vst [vmem:[%s174 + $0x148] sm:$0xff] %v257
                %v259 = vld [vmem:[%s173 + $0x290] sm:$0xff]
                %260 = vst [vmem:[%s174 + $0x150] sm:$0xff] %v259
                %v261 = vld [vmem:[%s173 + $0x298] sm:$0xff]
                %262 = vst [vmem:[%s174 + $0x158] sm:$0xff] %v261
                %v263 = vld [vmem:[%s173 + $0x2c0] sm:$0xff]
                %264 = vst [vmem:[%s174 + $0x160] sm:$0xff] %v263
                %v265 = vld [vmem:[%s173 + $0x2c8] sm:$0xff]
                %266 = vst [vmem:[%s174 + $0x168] sm:$0xff] %v265
                %v267 = vld [vmem:[%s173 + $0x2d0] sm:$0xff]
                %268 = vst [vmem:[%s174 + $0x170] sm:$0xff] %v267
                %v269 = vld [vmem:[%s173 + $0x2d8] sm:$0xff]
                %270 = vst [vmem:[%s174 + $0x178] sm:$0xff] %v269
                %v271 = vld [vmem:[%s173 + $0x300] sm:$0xff]
                %272 = vst [vmem:[%s174 + $0x180] sm:$0xff] %v271
                %v273 = vld [vmem:[%s173 + $0x308] sm:$0xff]
                %274 = vst [vmem:[%s174 + $0x188] sm:$0xff] %v273
                %v275 = vld [vmem:[%s173 + $0x310] sm:$0xff]
                %276 = vst [vmem:[%s174 + $0x190] sm:$0xff] %v275
                %v277 = vld [vmem:[%s173 + $0x318] sm:$0xff]
                %278 = vst [vmem:[%s174 + $0x198] sm:$0xff] %v277
                %v279 = vld [vmem:[%s173 + $0x340] sm:$0xff]
                %280 = vst [vmem:[%s174 + $0x1a0] sm:$0xff] %v279
                %v281 = vld [vmem:[%s173 + $0x348] sm:$0xff]
                %282 = vst [vmem:[%s174 + $0x1a8] sm:$0xff] %v281
                %v283 = vld [vmem:[%s173 + $0x350] sm:$0xff]
                %284 = vst [vmem:[%s174 + $0x1b0] sm:$0xff] %v283
                %v285 = vld [vmem:[%s173 + $0x358] sm:$0xff]
                %286 = vst [vmem:[%s174 + $0x1b8] sm:$0xff] %v285
                %v287 = vld [vmem:[%s173 + $0x380] sm:$0xff]
                %288 = vst [vmem:[%s174 + $0x1c0] sm:$0xff] %v287
                %v289 = vld [vmem:[%s173 + $0x388] sm:$0xff]
                %290 = vst [vmem:[%s174 + $0x1c8] sm:$0xff] %v289
                %v291 = vld [vmem:[%s173 + $0x390] sm:$0xff]
                %292 = vst [vmem:[%s174 + $0x1d0] sm:$0xff] %v291
                %v293 = vld [vmem:[%s173 + $0x398] sm:$0xff]
                %294 = vst [vmem:[%s174 + $0x1d8] sm:$0xff] %v293
                %v295 = vld [vmem:[%s173 + $0x3c0] sm:$0xff]
                %296 = vst [vmem:[%s174 + $0x1e0] sm:$0xff] %v295
                %v297 = vld [vmem:[%s173 + $0x3c8] sm:$0xff]
                %298 = vst [vmem:[%s174 + $0x1e8] sm:$0xff] %v297
                %v299 = vld [vmem:[%s173 + $0x3d0] sm:$0xff]
                %300 = vst [vmem:[%s174 + $0x1f0] sm:$0xff] %v299
                %v301 = vld [vmem:[%s173 + $0x3d8] sm:$0xff]
                %302 = vst [vmem:[%s174 + $0x1f8] sm:$0xff] %v301
                %v303 = vld [vmem:[%s173 + $0x400] sm:$0xff]
                %304 = vst [vmem:[%s174 + $0x200] sm:$0xff] %v303
                %v305 = vld [vmem:[%s173 + $0x408] sm:$0xff]
                %306 = vst [vmem:[%s174 + $0x208] sm:$0xff] %v305
                %v307 = vld [vmem:[%s173 + $0x410] sm:$0xff]
                %308 = vst [vmem:[%s174 + $0x210] sm:$0xff] %v307
                %v309 = vld [vmem:[%s173 + $0x418] sm:$0xff]
                %310 = vst [vmem:[%s174 + $0x218] sm:$0xff] %v309
                %v311 = vld [vmem:[%s173 + $0x440] sm:$0xff]
                %312 = vst [vmem:[%s174 + $0x220] sm:$0xff] %v311
                %v313 = vld [vmem:[%s173 + $0x448] sm:$0xff]
                %314 = vst [vmem:[%s174 + $0x228] sm:$0xff] %v313
                %v315 = vld [vmem:[%s173 + $0x450] sm:$0xff]
                %316 = vst [vmem:[%s174 + $0x230] sm:$0xff] %v315
                %v317 = vld [vmem:[%s173 + $0x458] sm:$0xff]
                %318 = vst [vmem:[%s174 + $0x238] sm:$0xff] %v317
                %v319 = vld [vmem:[%s173 + $0x480] sm:$0xff]
                %320 = vst [vmem:[%s174 + $0x240] sm:$0xff] %v319
                %v321 = vld [vmem:[%s173 + $0x488] sm:$0xff]
                %322 = vst [vmem:[%s174 + $0x248] sm:$0xff] %v321
                %v323 = vld [vmem:[%s173 + $0x490] sm:$0xff]
                %324 = vst [vmem:[%s174 + $0x250] sm:$0xff] %v323
                %v325 = vld [vmem:[%s173 + $0x498] sm:$0xff]
                %326 = vst [vmem:[%s174 + $0x258] sm:$0xff] %v325
                %v327 = vld [vmem:[%s173 + $0x4c0] sm:$0xff]
                %328 = vst [vmem:[%s174 + $0x260] sm:$0xff] %v327
                %v329 = vld [vmem:[%s173 + $0x4c8] sm:$0xff]
                %330 = vst [vmem:[%s174 + $0x268] sm:$0xff] %v329
                %v331 = vld [vmem:[%s173 + $0x4d0] sm:$0xff]
                %332 = vst [vmem:[%s174 + $0x270] sm:$0xff] %v331
                %v333 = vld [vmem:[%s173 + $0x4d8] sm:$0xff]
                %334 = vst [vmem:[%s174 + $0x278] sm:$0xff] %v333
                %v335 = vld [vmem:[%s173 + $0x500] sm:$0xff]
                %336 = vst [vmem:[%s174 + $0x280] sm:$0xff] %v335
                %v337 = vld [vmem:[%s173 + $0x508] sm:$0xff]
                %338 = vst [vmem:[%s174 + $0x288] sm:$0xff] %v337
                %v339 = vld [vmem:[%s173 + $0x510] sm:$0xff]
                %340 = vst [vmem:[%s174 + $0x290] sm:$0xff] %v339
                %v341 = vld [vmem:[%s173 + $0x518] sm:$0xff]
                %342 = vst [vmem:[%s174 + $0x298] sm:$0xff] %v341
                %v343 = vld [vmem:[%s173 + $0x540] sm:$0xff]
                %344 = vst [vmem:[%s174 + $0x2a0] sm:$0xff] %v343
                %v345 = vld [vmem:[%s173 + $0x548] sm:$0xff]
                %346 = vst [vmem:[%s174 + $0x2a8] sm:$0xff] %v345
                %v347 = vld [vmem:[%s173 + $0x550] sm:$0xff]
                %348 = vst [vmem:[%s174 + $0x2b0] sm:$0xff] %v347
                %v349 = vld [vmem:[%s173 + $0x558] sm:$0xff]
                %350 = vst [vmem:[%s174 + $0x2b8] sm:$0xff] %v349
                %v351 = vld [vmem:[%s173 + $0x580] sm:$0xff]
                %352 = vst [vmem:[%s174 + $0x2c0] sm:$0xff] %v351
                %v353 = vld [vmem:[%s173 + $0x588] sm:$0xff]
                %354 = vst [vmem:[%s174 + $0x2c8] sm:$0xff] %v353
                %v355 = vld [vmem:[%s173 + $0x590] sm:$0xff]
                %356 = vst [vmem:[%s174 + $0x2d0] sm:$0xff] %v355
                %v357 = vld [vmem:[%s173 + $0x598] sm:$0xff]
                %358 = vst [vmem:[%s174 + $0x2d8] sm:$0xff] %v357
                %v359 = vld [vmem:[%s173 + $0x5c0] sm:$0xff]
                %360 = vst [vmem:[%s174 + $0x2e0] sm:$0xff] %v359
                %v361 = vld [vmem:[%s173 + $0x5c8] sm:$0xff]
                %362 = vst [vmem:[%s174 + $0x2e8] sm:$0xff] %v361
                %v363 = vld [vmem:[%s173 + $0x5d0] sm:$0xff]
                %364 = vst [vmem:[%s174 + $0x2f0] sm:$0xff] %v363
                %v365 = vld [vmem:[%s173 + $0x5d8] sm:$0xff]
                %366 = vst [vmem:[%s174 + $0x2f8] sm:$0xff] %v365
                %v367 = vld [vmem:[%s173 + $0x600] sm:$0xff]
                %368 = vst [vmem:[%s174 + $0x300] sm:$0xff] %v367
                %v369 = vld [vmem:[%s173 + $0x608] sm:$0xff]
                %370 = vst [vmem:[%s174 + $0x308] sm:$0xff] %v369
                %v371 = vld [vmem:[%s173 + $0x610] sm:$0xff]
                %372 = vst [vmem:[%s174 + $0x310] sm:$0xff] %v371
                %v373 = vld [vmem:[%s173 + $0x618] sm:$0xff]
                %374 = vst [vmem:[%s174 + $0x318] sm:$0xff] %v373
                %v375 = vld [vmem:[%s173 + $0x640] sm:$0xff]
                %376 = vst [vmem:[%s174 + $0x320] sm:$0xff] %v375
                %v377 = vld [vmem:[%s173 + $0x648] sm:$0xff]
                %378 = vst [vmem:[%s174 + $0x328] sm:$0xff] %v377
                %v379 = vld [vmem:[%s173 + $0x650] sm:$0xff]
                %380 = vst [vmem:[%s174 + $0x330] sm:$0xff] %v379
                %v381 = vld [vmem:[%s173 + $0x658] sm:$0xff]
                %382 = vst [vmem:[%s174 + $0x338] sm:$0xff] %v381
                %v383 = vld [vmem:[%s173 + $0x680] sm:$0xff]
                %384 = vst [vmem:[%s174 + $0x340] sm:$0xff] %v383
                %v385 = vld [vmem:[%s173 + $0x688] sm:$0xff]
                %386 = vst [vmem:[%s174 + $0x348] sm:$0xff] %v385
                %v387 = vld [vmem:[%s173 + $0x690] sm:$0xff]
                %388 = vst [vmem:[%s174 + $0x350] sm:$0xff] %v387
                %v389 = vld [vmem:[%s173 + $0x698] sm:$0xff]
                %390 = vst [vmem:[%s174 + $0x358] sm:$0xff] %v389
                %v391 = vld [vmem:[%s173 + $0x6c0] sm:$0xff]
                %392 = vst [vmem:[%s174 + $0x360] sm:$0xff] %v391
                %v393 = vld [vmem:[%s173 + $0x6c8] sm:$0xff]
                %394 = vst [vmem:[%s174 + $0x368] sm:$0xff] %v393
                %v395 = vld [vmem:[%s173 + $0x6d0] sm:$0xff]
                %396 = vst [vmem:[%s174 + $0x370] sm:$0xff] %v395
                %v397 = vld [vmem:[%s173 + $0x6d8] sm:$0xff]
                %398 = vst [vmem:[%s174 + $0x378] sm:$0xff] %v397
                %v399 = vld [vmem:[%s173 + $0x700] sm:$0xff]
                %400 = vst [vmem:[%s174 + $0x380] sm:$0xff] %v399
                %v401 = vld [vmem:[%s173 + $0x708] sm:$0xff]
                %402 = vst [vmem:[%s174 + $0x388] sm:$0xff] %v401
                %v403 = vld [vmem:[%s173 + $0x710] sm:$0xff]
                %404 = vst [vmem:[%s174 + $0x390] sm:$0xff] %v403
                %v405 = vld [vmem:[%s173 + $0x718] sm:$0xff]
                %406 = vst [vmem:[%s174 + $0x398] sm:$0xff] %v405
                %v407 = vld [vmem:[%s173 + $0x740] sm:$0xff]
                %408 = vst [vmem:[%s174 + $0x3a0] sm:$0xff] %v407
                %v409 = vld [vmem:[%s173 + $0x748] sm:$0xff]
                %410 = vst [vmem:[%s174 + $0x3a8] sm:$0xff] %v409
                %v411 = vld [vmem:[%s173 + $0x750] sm:$0xff]
                %412 = vst [vmem:[%s174 + $0x3b0] sm:$0xff] %v411
                %v413 = vld [vmem:[%s173 + $0x758] sm:$0xff]
                %414 = vst [vmem:[%s174 + $0x3b8] sm:$0xff] %v413
                %v415 = vld [vmem:[%s173 + $0x780] sm:$0xff]
                %416 = vst [vmem:[%s174 + $0x3c0] sm:$0xff] %v415
                %v417 = vld [vmem:[%s173 + $0x788] sm:$0xff]
                %418 = vst [vmem:[%s174 + $0x3c8] sm:$0xff] %v417
                %v419 = vld [vmem:[%s173 + $0x790] sm:$0xff]
                %420 = vst [vmem:[%s174 + $0x3d0] sm:$0xff] %v419
                %v421 = vld [vmem:[%s173 + $0x798] sm:$0xff]
                %422 = vst [vmem:[%s174 + $0x3d8] sm:$0xff] %v421
                %v423 = vld [vmem:[%s173 + $0x7c0] sm:$0xff]
                %424 = vst [vmem:[%s174 + $0x3e0] sm:$0xff] %v423
                %v425 = vld [vmem:[%s173 + $0x7c8] sm:$0xff]
                %426 = vst [vmem:[%s174 + $0x3e8] sm:$0xff] %v425
                %v427 = vld [vmem:[%s173 + $0x7d0] sm:$0xff]
                %428 = vst [vmem:[%s174 + $0x3f0] sm:$0xff] %v427
                %v429 = vld [vmem:[%s173 + $0x7d8] sm:$0xff]
                %430 = vst [vmem:[%s174 + $0x3f8] sm:$0xff] %v429
              $region45: #{forward_pallas.4} parent=39 // loop_footer
                %s172 = sadd.s32 1, %s168
              $region46: #{forward_pallas.4} parent=39 // loop_footer_branch
                %167 = sbr.rel target = $region42
              $region47: #{forward_pallas.4} parent=39 // loop_exit
                _
            $region40: #{forward_pallas.4} parent=35 // pred_fallthru
              _
            // Predicated region
            $region48: #{forward_pallas.4} parent=35 // pred_check
              _
            $region49: #{forward_pallas.4} parent=35 // pred_check_branch
              %432 = sbr.rel target = $region51
            $region50: #{forward_pallas.4} parent=35 // pred_region
              _
            $region51: #{forward_pallas.4} parent=35 // pred_fallthru
              _
          $region36: #{forward_pallas.4} parent=31 // pred_fallthru
            _
          %433 = vnop
        $region32: #{forward_pallas.4} parent=27 // pred_fallthru
          _
      $region28: #{forward_pallas.4} parent=5 // pred_fallthru
        _
      %p434 = scmp.le.s32.totalorder 1, %s10
      %p435 = scmp.lt.s32.totalorder %s10, 3
      %p436 = pnand %p434, %p435
      %p437 = pneg %p436
      // Predicated region
      $region52: #{forward_pallas.4} parent=5 // pred_check
        _
      $region53: #{forward_pallas.4} parent=5 // pred_check_branch
        %439 = sbr.rel (%p436) target = $region55
      $region54: #{forward_pallas.4} parent=5 // pred_region
        %s440 = ssub.s32 %s10, 1
        %s441 = sand.u32 %s23, 1
        %s442 = sand.u32 %s23, 1
        %s443 = smul.addr %s442, 1024
        %s444 = scalar_lea.vmem [#allocation2], %s443
        // Predicated region
        $region56: #{forward_pallas.4} parent=54 // pred_check
          %p445 = pneg %p36
        $region57: #{forward_pallas.4} parent=54 // pred_check_branch
          %447 = sbr.rel (%p445) target = $region59
        $region58: #{forward_pallas.4} parent=54 // pred_region
          _
        $region59: #{forward_pallas.4} parent=54 // pred_fallthru
          _
        %s448 = sand.u32 %s23, 1
        %s449 = sand.u32 %s23, 1
        %s450 = smul.addr %s449, 1024
        %s451 = scalar_lea.vmem [#allocation2], %s450
        %p452 = pneg %p36
        %p453 = pneg %p33
        %p454 = pneg %p57
        %p455 = pneg %p54
        %p456 = pneg %p78
        %p457 = pneg %p75
        %p458 = pneg %p99
        %p459 = pneg %p96
        %p460 = pneg %p125
        %p461 = pneg %p122
        %s462 = sand.u32 %s112, 1
        %s463 = sand.u32 %s112, 1
        %s464 = smul.addr %s463, 96
        %s465 = scalar_lea.vmem [#allocation3], %s464
        %s466 = smul.u32 8, %s15
        %s467 = smul.u32 8, %s15
        %v468 = vld [vmem:[%s1] sm:$0xff]
        %v469 = vld [vmem:[%s1 + $0x8] sm:$0xff]
        %v470 = vld [vmem:[%s1 + $0x10] sm:$0x33]
        %v471 = vld [vmem:[%s444] sm:$0xff]
        %v472 = vld [vmem:[%s444 + $0x8] sm:$0xff]
        %v473 = vld [vmem:[%s444 + $0x10] sm:$0xff]
        %v474 = vld [vmem:[%s444 + $0x18] sm:$0xff]
        %v475 = vld [vmem:[%s444 + $0x20] sm:$0xff]
        %v476 = vld [vmem:[%s444 + $0x28] sm:$0xff]
        %v477 = vld [vmem:[%s444 + $0x30] sm:$0xff]
        %v478 = vld [vmem:[%s444 + $0x38] sm:$0xff]
        %v479 = vld [vmem:[%s444 + $0x40] sm:$0xff]
        %v480 = vld [vmem:[%s444 + $0x48] sm:$0xff]
        %v481 = vld [vmem:[%s444 + $0x50] sm:$0xff]
        %v482 = vld [vmem:[%s444 + $0x58] sm:$0xff]
        %v483 = vld [vmem:[%s444 + $0x60] sm:$0xff]
        %v484 = vld [vmem:[%s444 + $0x68] sm:$0xff]
        %v485 = vld [vmem:[%s444 + $0x70] sm:$0xff]
        %v486 = vld [vmem:[%s444 + $0x78] sm:$0xff]
        %v487 = vld [vmem:[%s444 + $0x80] sm:$0xff]
        %v488 = vld [vmem:[%s444 + $0x88] sm:$0xff]
        %v489 = vld [vmem:[%s444 + $0x90] sm:$0xff]
        %v490 = vld [vmem:[%s444 + $0x98] sm:$0xff]
        %v491 = vld [vmem:[%s444 + $0xa0] sm:$0xff]
        %v492 = vld [vmem:[%s444 + $0xa8] sm:$0xff]
        %v493 = vld [vmem:[%s444 + $0xb0] sm:$0xff]
        %v494 = vld [vmem:[%s444 + $0xb8] sm:$0xff]
        %v495 = vld [vmem:[%s444 + $0xc0] sm:$0xff]
        %v496 = vld [vmem:[%s444 + $0xc8] sm:$0xff]
        %v497 = vld [vmem:[%s444 + $0xd0] sm:$0xff]
        %v498 = vld [vmem:[%s444 + $0xd8] sm:$0xff]
        %v499 = vld [vmem:[%s444 + $0xe0] sm:$0xff]
        %v500 = vld [vmem:[%s444 + $0xe8] sm:$0xff]
        %v501 = vld [vmem:[%s444 + $0xf0] sm:$0xff]
        %v502 = vld [vmem:[%s444 + $0xf8] sm:$0xff]
        %v503 = vld [vmem:[%s444 + $0x100] sm:$0xff]
        %v504 = vld [vmem:[%s444 + $0x108] sm:$0xff]
        %v505 = vld [vmem:[%s444 + $0x110] sm:$0xff]
        %v506 = vld [vmem:[%s444 + $0x118] sm:$0xff]
        %v507 = vld [vmem:[%s444 + $0x120] sm:$0xff]
        %v508 = vld [vmem:[%s444 + $0x128] sm:$0xff]
        %v509 = vld [vmem:[%s444 + $0x130] sm:$0xff]
        %v510 = vld [vmem:[%s444 + $0x138] sm:$0xff]
        %v511 = vld [vmem:[%s444 + $0x140] sm:$0xff]
        %v512 = vld [vmem:[%s444 + $0x148] sm:$0xff]
        %v513 = vld [vmem:[%s444 + $0x150] sm:$0xff]
        %v514 = vld [vmem:[%s444 + $0x158] sm:$0xff]
        %v515 = vld [vmem:[%s444 + $0x160] sm:$0xff]
        %v516 = vld [vmem:[%s444 + $0x168] sm:$0xff]
        %v517 = vld [vmem:[%s444 + $0x170] sm:$0xff]
        %v518 = vld [vmem:[%s444 + $0x178] sm:$0xff]
        %v519 = vld [vmem:[%s444 + $0x180] sm:$0xff]
        %v520 = vld [vmem:[%s444 + $0x188] sm:$0xff]
        %v521 = vld [vmem:[%s444 + $0x190] sm:$0xff]
        %v522 = vld [vmem:[%s444 + $0x198] sm:$0xff]
        %v523 = vld [vmem:[%s444 + $0x1a0] sm:$0xff]
        %v524 = vld [vmem:[%s444 + $0x1a8] sm:$0xff]
        %v525 = vld [vmem:[%s444 + $0x1b0] sm:$0xff]
        %v526 = vld [vmem:[%s444 + $0x1b8] sm:$0xff]
        %v527 = vld [vmem:[%s444 + $0x1c0] sm:$0xff]
        %v528 = vld [vmem:[%s444 + $0x1c8] sm:$0xff]
        %v529 = vld [vmem:[%s444 + $0x1d0] sm:$0xff]
        %v530 = vld [vmem:[%s444 + $0x1d8] sm:$0xff]
        %v531 = vld [vmem:[%s444 + $0x1e0] sm:$0xff]
        %v532 = vld [vmem:[%s444 + $0x1e8] sm:$0xff]
        %v533 = vld [vmem:[%s444 + $0x1f0] sm:$0xff]
        %v534 = vld [vmem:[%s444 + $0x1f8] sm:$0xff]
        %v535 = vld [vmem:[%s444 + $0x200] sm:$0xff]
        %v536 = vld [vmem:[%s444 + $0x208] sm:$0xff]
        %v537 = vld [vmem:[%s444 + $0x210] sm:$0xff]
        %v538 = vld [vmem:[%s444 + $0x218] sm:$0xff]
        %v539 = vld [vmem:[%s444 + $0x220] sm:$0xff]
        %v540 = vld [vmem:[%s444 + $0x228] sm:$0xff]
        %v541 = vld [vmem:[%s444 + $0x230] sm:$0xff]
        %v542 = vld [vmem:[%s444 + $0x238] sm:$0xff]
        %v543 = vld [vmem:[%s444 + $0x240] sm:$0xff]
        %v544 = vld [vmem:[%s444 + $0x248] sm:$0xff]
        %v545 = vld [vmem:[%s444 + $0x250] sm:$0xff]
        %v546 = vld [vmem:[%s444 + $0x258] sm:$0xff]
        %v547 = vld [vmem:[%s444 + $0x260] sm:$0xff]
        %v548 = vld [vmem:[%s444 + $0x268] sm:$0xff]
        %v549 = vld [vmem:[%s444 + $0x270] sm:$0xff]
        %v550 = vld [vmem:[%s444 + $0x278] sm:$0xff]
        %v551 = vld [vmem:[%s444 + $0x280] sm:$0xff]
        %v552 = vld [vmem:[%s444 + $0x288] sm:$0xff]
        %v553 = vld [vmem:[%s444 + $0x290] sm:$0xff]
        %v554 = vld [vmem:[%s444 + $0x298] sm:$0xff]
        %v555 = vld [vmem:[%s444 + $0x2a0] sm:$0xff]
        %v556 = vld [vmem:[%s444 + $0x2a8] sm:$0xff]
        %v557 = vld [vmem:[%s444 + $0x2b0] sm:$0xff]
        %v558 = vld [vmem:[%s444 + $0x2b8] sm:$0xff]
        %v559 = vld [vmem:[%s444 + $0x2c0] sm:$0xff]
        %v560 = vld [vmem:[%s444 + $0x2c8] sm:$0xff]
        %v561 = vld [vmem:[%s444 + $0x2d0] sm:$0xff]
        %v562 = vld [vmem:[%s444 + $0x2d8] sm:$0xff]
        %v563 = vld [vmem:[%s444 + $0x2e0] sm:$0xff]
        %v564 = vld [vmem:[%s444 + $0x2e8] sm:$0xff]
        %v565 = vld [vmem:[%s444 + $0x2f0] sm:$0xff]
        %v566 = vld [vmem:[%s444 + $0x2f8] sm:$0xff]
        %v567 = vld [vmem:[%s444 + $0x300] sm:$0xff]
        %v568 = vld [vmem:[%s444 + $0x308] sm:$0xff]
        %v569 = vld [vmem:[%s444 + $0x310] sm:$0xff]
        %v570 = vld [vmem:[%s444 + $0x318] sm:$0xff]
        %v571 = vld [vmem:[%s444 + $0x320] sm:$0xff]
        %v572 = vld [vmem:[%s444 + $0x328] sm:$0xff]
        %v573 = vld [vmem:[%s444 + $0x330] sm:$0xff]
        %v574 = vld [vmem:[%s444 + $0x338] sm:$0xff]
        %v575 = vld [vmem:[%s444 + $0x340] sm:$0xff]
        %v576 = vld [vmem:[%s444 + $0x348] sm:$0xff]
        %v577 = vld [vmem:[%s444 + $0x350] sm:$0xff]
        %v578 = vld [vmem:[%s444 + $0x358] sm:$0xff]
        %v579 = vld [vmem:[%s444 + $0x360] sm:$0xff]
        %v580 = vld [vmem:[%s444 + $0x368] sm:$0xff]
        %v581 = vld [vmem:[%s444 + $0x370] sm:$0xff]
        %v582 = vld [vmem:[%s444 + $0x378] sm:$0xff]
        %v583 = vld [vmem:[%s444 + $0x380] sm:$0xff]
        %v584 = vld [vmem:[%s444 + $0x388] sm:$0xff]
        %v585 = vld [vmem:[%s444 + $0x390] sm:$0xff]
        %v586 = vld [vmem:[%s444 + $0x398] sm:$0xff]
        %v587 = vld [vmem:[%s444 + $0x3a0] sm:$0xff]
        %v588 = vld [vmem:[%s444 + $0x3a8] sm:$0xff]
        %v589 = vld [vmem:[%s444 + $0x3b0] sm:$0xff]
        %v590 = vld [vmem:[%s444 + $0x3b8] sm:$0xff]
        %v591 = vld [vmem:[%s444 + $0x3c0] sm:$0xff]
        %v592 = vld [vmem:[%s444 + $0x3c8] sm:$0xff]
        %v593 = vld [vmem:[%s444 + $0x3d0] sm:$0xff]
        %v594 = vld [vmem:[%s444 + $0x3d8] sm:$0xff]
        %v595 = vld [vmem:[%s444 + $0x3e0] sm:$0x11]
        %v596 = vld [vmem:[%s444 + $0x3e8] sm:$0x11]
        %v597 = vld [vmem:[%s444 + $0x3f0] sm:$0x11]
        %v598 = vld [vmem:[%s444 + $0x3f8] sm:$0x11]
        %v602 = vunpack.c.l.b16 %v468
        %v603 = vunpack.c.h.b16 %v468
        %v604 = vunpack.c.l.b16 %v469
        %v605 = vunpack.c.h.b16 %v469
        %v606 = vunpack.c.l.b16 %v470
        %v607 = vunpack.c.h.b16 %v470
        %v608 = vpack.c.b16 %v604, %v602
        %v609 = vpack.c.b16 %v605, %v603
        %v610 = vpack.c.b16 %v606, %v606
        %v611 = vpack.c.b16 %v607, %v607
        %v742 = vunpack.c.l.b16 %v471
        %v743 = vunpack.c.h.b16 %v471
        %v744 = vunpack.c.l.b16 %v472
        %v745 = vunpack.c.h.b16 %v472
        %v746 = vunpack.c.l.b16 %v473
        %v747 = vunpack.c.h.b16 %v473
        %v748 = vunpack.c.l.b16 %v474
        %v749 = vunpack.c.h.b16 %v474
        %v750 = vunpack.c.l.b16 %v475
        %v751 = vunpack.c.h.b16 %v475
        %v752 = vunpack.c.l.b16 %v476
        %v753 = vunpack.c.h.b16 %v476
        %v754 = vunpack.c.l.b16 %v477
        %v755 = vunpack.c.h.b16 %v477
        %v756 = vunpack.c.l.b16 %v478
        %v757 = vunpack.c.h.b16 %v478
        %v758 = vunpack.c.l.b16 %v479
        %v759 = vunpack.c.h.b16 %v479
        %v760 = vunpack.c.l.b16 %v480
        %v761 = vunpack.c.h.b16 %v480
        %v762 = vunpack.c.l.b16 %v481
        %v763 = vunpack.c.h.b16 %v481
        %v764 = vunpack.c.l.b16 %v482
        %v765 = vunpack.c.h.b16 %v482
        %v766 = vunpack.c.l.b16 %v483
        %v767 = vunpack.c.h.b16 %v483
        %v768 = vunpack.c.l.b16 %v484
        %v769 = vunpack.c.h.b16 %v484
        %v770 = vunpack.c.l.b16 %v485
        %v771 = vunpack.c.h.b16 %v485
        %v772 = vunpack.c.l.b16 %v486
        %v773 = vunpack.c.h.b16 %v486
        %v774 = vunpack.c.l.b16 %v487
        %v775 = vunpack.c.h.b16 %v487
        %v776 = vunpack.c.l.b16 %v488
        %v777 = vunpack.c.h.b16 %v488
        %v778 = vunpack.c.l.b16 %v489
        %v779 = vunpack.c.h.b16 %v489
        %v780 = vunpack.c.l.b16 %v490
        %v781 = vunpack.c.h.b16 %v490
        %v782 = vunpack.c.l.b16 %v491
        %v783 = vunpack.c.h.b16 %v491
        %v784 = vunpack.c.l.b16 %v492
        %v785 = vunpack.c.h.b16 %v492
        %v786 = vunpack.c.l.b16 %v493
        %v787 = vunpack.c.h.b16 %v493
        %v788 = vunpack.c.l.b16 %v494
        %v789 = vunpack.c.h.b16 %v494
        %v790 = vunpack.c.l.b16 %v495
        %v791 = vunpack.c.h.b16 %v495
        %v792 = vunpack.c.l.b16 %v496
        %v793 = vunpack.c.h.b16 %v496
        %v794 = vunpack.c.l.b16 %v497
        %v795 = vunpack.c.h.b16 %v497
        %v796 = vunpack.c.l.b16 %v498
        %v797 = vunpack.c.h.b16 %v498
        %v798 = vunpack.c.l.b16 %v499
        %v799 = vunpack.c.h.b16 %v499
        %v800 = vunpack.c.l.b16 %v500
        %v801 = vunpack.c.h.b16 %v500
        %v802 = vunpack.c.l.b16 %v501
        %v803 = vunpack.c.h.b16 %v501
        %v804 = vunpack.c.l.b16 %v502
        %v805 = vunpack.c.h.b16 %v502
        %v806 = vunpack.c.l.b16 %v503
        %v807 = vunpack.c.h.b16 %v503
        %v808 = vunpack.c.l.b16 %v504
        %v809 = vunpack.c.h.b16 %v504
        %v810 = vunpack.c.l.b16 %v505
        %v811 = vunpack.c.h.b16 %v505
        %v812 = vunpack.c.l.b16 %v506
        %v813 = vunpack.c.h.b16 %v506
        %v814 = vunpack.c.l.b16 %v507
        %v815 = vunpack.c.h.b16 %v507
        %v816 = vunpack.c.l.b16 %v508
        %v817 = vunpack.c.h.b16 %v508
        %v818 = vunpack.c.l.b16 %v509
        %v819 = vunpack.c.h.b16 %v509
        %v820 = vunpack.c.l.b16 %v510
        %v821 = vunpack.c.h.b16 %v510
        %v822 = vunpack.c.l.b16 %v511
        %v823 = vunpack.c.h.b16 %v511
        %v824 = vunpack.c.l.b16 %v512
        %v825 = vunpack.c.h.b16 %v512
        %v826 = vunpack.c.l.b16 %v513
        %v827 = vunpack.c.h.b16 %v513
        %v828 = vunpack.c.l.b16 %v514
        %v829 = vunpack.c.h.b16 %v514
        %v830 = vunpack.c.l.b16 %v515
        %v831 = vunpack.c.h.b16 %v515
        %v832 = vunpack.c.l.b16 %v516
        %v833 = vunpack.c.h.b16 %v516
        %v834 = vunpack.c.l.b16 %v517
        %v835 = vunpack.c.h.b16 %v517
        %v836 = vunpack.c.l.b16 %v518
        %v837 = vunpack.c.h.b16 %v518
        %v838 = vunpack.c.l.b16 %v519
        %v839 = vunpack.c.h.b16 %v519
        %v840 = vunpack.c.l.b16 %v520
        %v841 = vunpack.c.h.b16 %v520
        %v842 = vunpack.c.l.b16 %v521
        %v843 = vunpack.c.h.b16 %v521
        %v844 = vunpack.c.l.b16 %v522
        %v845 = vunpack.c.h.b16 %v522
        %v846 = vunpack.c.l.b16 %v523
        %v847 = vunpack.c.h.b16 %v523
        %v848 = vunpack.c.l.b16 %v524
        %v849 = vunpack.c.h.b16 %v524
        %v850 = vunpack.c.l.b16 %v525
        %v851 = vunpack.c.h.b16 %v525
        %v852 = vunpack.c.l.b16 %v526
        %v853 = vunpack.c.h.b16 %v526
        %v854 = vunpack.c.l.b16 %v527
        %v855 = vunpack.c.h.b16 %v527
        %v856 = vunpack.c.l.b16 %v528
        %v857 = vunpack.c.h.b16 %v528
        %v858 = vunpack.c.l.b16 %v529
        %v859 = vunpack.c.h.b16 %v529
        %v860 = vunpack.c.l.b16 %v530
        %v861 = vunpack.c.h.b16 %v530
        %v862 = vunpack.c.l.b16 %v531
        %v863 = vunpack.c.h.b16 %v531
        %v864 = vunpack.c.l.b16 %v532
        %v865 = vunpack.c.h.b16 %v532
        %v866 = vunpack.c.l.b16 %v533
        %v867 = vunpack.c.h.b16 %v533
        %v868 = vunpack.c.l.b16 %v534
        %v869 = vunpack.c.h.b16 %v534
        %v870 = vunpack.c.l.b16 %v535
        %v871 = vunpack.c.h.b16 %v535
        %v872 = vunpack.c.l.b16 %v536
        %v873 = vunpack.c.h.b16 %v536
        %v874 = vunpack.c.l.b16 %v537
        %v875 = vunpack.c.h.b16 %v537
        %v876 = vunpack.c.l.b16 %v538
        %v877 = vunpack.c.h.b16 %v538
        %v878 = vunpack.c.l.b16 %v539
        %v879 = vunpack.c.h.b16 %v539
        %v880 = vunpack.c.l.b16 %v540
        %v881 = vunpack.c.h.b16 %v540
        %v882 = vunpack.c.l.b16 %v541
        %v883 = vunpack.c.h.b16 %v541
        %v884 = vunpack.c.l.b16 %v542
        %v885 = vunpack.c.h.b16 %v542
        %v886 = vunpack.c.l.b16 %v543
        %v887 = vunpack.c.h.b16 %v543
        %v888 = vunpack.c.l.b16 %v544
        %v889 = vunpack.c.h.b16 %v544
        %v890 = vunpack.c.l.b16 %v545
        %v891 = vunpack.c.h.b16 %v545
        %v892 = vunpack.c.l.b16 %v546
        %v893 = vunpack.c.h.b16 %v546
        %v894 = vunpack.c.l.b16 %v547
        %v895 = vunpack.c.h.b16 %v547
        %v896 = vunpack.c.l.b16 %v548
        %v897 = vunpack.c.h.b16 %v548
        %v898 = vunpack.c.l.b16 %v549
        %v899 = vunpack.c.h.b16 %v549
        %v900 = vunpack.c.l.b16 %v550
        %v901 = vunpack.c.h.b16 %v550
        %v902 = vunpack.c.l.b16 %v551
        %v903 = vunpack.c.h.b16 %v551
        %v904 = vunpack.c.l.b16 %v552
        %v905 = vunpack.c.h.b16 %v552
        %v906 = vunpack.c.l.b16 %v553
        %v907 = vunpack.c.h.b16 %v553
        %v908 = vunpack.c.l.b16 %v554
        %v909 = vunpack.c.h.b16 %v554
        %v910 = vunpack.c.l.b16 %v555
        %v911 = vunpack.c.h.b16 %v555
        %v912 = vunpack.c.l.b16 %v556
        %v913 = vunpack.c.h.b16 %v556
        %v914 = vunpack.c.l.b16 %v557
        %v915 = vunpack.c.h.b16 %v557
        %v916 = vunpack.c.l.b16 %v558
        %v917 = vunpack.c.h.b16 %v558
        %v918 = vunpack.c.l.b16 %v559
        %v919 = vunpack.c.h.b16 %v559
        %v920 = vunpack.c.l.b16 %v560
        %v921 = vunpack.c.h.b16 %v560
        %v922 = vunpack.c.l.b16 %v561
        %v923 = vunpack.c.h.b16 %v561
        %v924 = vunpack.c.l.b16 %v562
        %v925 = vunpack.c.h.b16 %v562
        %v926 = vunpack.c.l.b16 %v563
        %v927 = vunpack.c.h.b16 %v563
        %v928 = vunpack.c.l.b16 %v564
        %v929 = vunpack.c.h.b16 %v564
        %v930 = vunpack.c.l.b16 %v565
        %v931 = vunpack.c.h.b16 %v565
        %v932 = vunpack.c.l.b16 %v566
        %v933 = vunpack.c.h.b16 %v566
        %v934 = vunpack.c.l.b16 %v567
        %v935 = vunpack.c.h.b16 %v567
        %v936 = vunpack.c.l.b16 %v568
        %v937 = vunpack.c.h.b16 %v568
        %v938 = vunpack.c.l.b16 %v569
        %v939 = vunpack.c.h.b16 %v569
        %v940 = vunpack.c.l.b16 %v570
        %v941 = vunpack.c.h.b16 %v570
        %v942 = vunpack.c.l.b16 %v571
        %v943 = vunpack.c.h.b16 %v571
        %v944 = vunpack.c.l.b16 %v572
        %v945 = vunpack.c.h.b16 %v572
        %v946 = vunpack.c.l.b16 %v573
        %v947 = vunpack.c.h.b16 %v573
        %v948 = vunpack.c.l.b16 %v574
        %v949 = vunpack.c.h.b16 %v574
        %v950 = vunpack.c.l.b16 %v575
        %v951 = vunpack.c.h.b16 %v575
        %v952 = vunpack.c.l.b16 %v576
        %v953 = vunpack.c.h.b16 %v576
        %v954 = vunpack.c.l.b16 %v577
        %v955 = vunpack.c.h.b16 %v577
        %v956 = vunpack.c.l.b16 %v578
        %v957 = vunpack.c.h.b16 %v578
        %v958 = vunpack.c.l.b16 %v579
        %v959 = vunpack.c.h.b16 %v579
        %v960 = vunpack.c.l.b16 %v580
        %v961 = vunpack.c.h.b16 %v580
        %v962 = vunpack.c.l.b16 %v581
        %v963 = vunpack.c.h.b16 %v581
        %v964 = vunpack.c.l.b16 %v582
        %v965 = vunpack.c.h.b16 %v582
        %v966 = vunpack.c.l.b16 %v583
        %v967 = vunpack.c.h.b16 %v583
        %v968 = vunpack.c.l.b16 %v584
        %v969 = vunpack.c.h.b16 %v584
        %v970 = vunpack.c.l.b16 %v585
        %v971 = vunpack.c.h.b16 %v585
        %v972 = vunpack.c.l.b16 %v586
        %v973 = vunpack.c.h.b16 %v586
        %v974 = vunpack.c.l.b16 %v587
        %v975 = vunpack.c.h.b16 %v587
        %v976 = vunpack.c.l.b16 %v588
        %v977 = vunpack.c.h.b16 %v588
        %v978 = vunpack.c.l.b16 %v589
        %v979 = vunpack.c.h.b16 %v589
        %v980 = vunpack.c.l.b16 %v590
        %v981 = vunpack.c.h.b16 %v590
        %v982 = vunpack.c.l.b16 %v591
        %v983 = vunpack.c.h.b16 %v591
        %v984 = vunpack.c.l.b16 %v592
        %v985 = vunpack.c.h.b16 %v592
        %v986 = vunpack.c.l.b16 %v593
        %v987 = vunpack.c.h.b16 %v593
        %v988 = vunpack.c.l.b16 %v594
        %v989 = vunpack.c.h.b16 %v594
        %v990 = vunpack.c.l.b16 %v595
        %v991 = vunpack.c.h.b16 %v595
        %v992 = vunpack.c.l.b16 %v596
        %v993 = vunpack.c.h.b16 %v596
        %v994 = vunpack.c.l.b16 %v597
        %v995 = vunpack.c.h.b16 %v597
        %v996 = vunpack.c.l.b16 %v598
        %v997 = vunpack.c.h.b16 %v598
        %v998 = vpack.c.b16 %v750, %v742
        %v999 = vpack.c.b16 %v751, %v743
        %v1000 = vpack.c.b16 %v752, %v744
        %v1001 = vpack.c.b16 %v753, %v745
        %v1002 = vpack.c.b16 %v754, %v746
        %v1003 = vpack.c.b16 %v755, %v747
        %v1004 = vpack.c.b16 %v756, %v748
        %v1005 = vpack.c.b16 %v757, %v749
        %v1006 = vpack.c.b16 %v766, %v758
        %v1007 = vpack.c.b16 %v767, %v759
        %v1008 = vpack.c.b16 %v768, %v760
        %v1009 = vpack.c.b16 %v769, %v761
        %v1010 = vpack.c.b16 %v770, %v762
        %v1011 = vpack.c.b16 %v771, %v763
        %v1012 = vpack.c.b16 %v772, %v764
        %v1013 = vpack.c.b16 %v773, %v765
        %v1014 = vpack.c.b16 %v782, %v774
        %v1015 = vpack.c.b16 %v783, %v775
        %v1016 = vpack.c.b16 %v784, %v776
        %v1017 = vpack.c.b16 %v785, %v777
        %v1018 = vpack.c.b16 %v786, %v778
        %v1019 = vpack.c.b16 %v787, %v779
        %v1020 = vpack.c.b16 %v788, %v780
        %v1021 = vpack.c.b16 %v789, %v781
        %v1022 = vpack.c.b16 %v798, %v790
        %v1023 = vpack.c.b16 %v799, %v791
        %v1024 = vpack.c.b16 %v800, %v792
        %v1025 = vpack.c.b16 %v801, %v793
        %v1026 = vpack.c.b16 %v802, %v794
        %v1027 = vpack.c.b16 %v803, %v795
        %v1028 = vpack.c.b16 %v804, %v796
        %v1029 = vpack.c.b16 %v805, %v797
        %v1030 = vpack.c.b16 %v814, %v806
        %v1031 = vpack.c.b16 %v815, %v807
        %v1032 = vpack.c.b16 %v816, %v808
        %v1033 = vpack.c.b16 %v817, %v809
        %v1034 = vpack.c.b16 %v818, %v810
        %v1035 = vpack.c.b16 %v819, %v811
        %v1036 = vpack.c.b16 %v820, %v812
        %v1037 = vpack.c.b16 %v821, %v813
        %v1038 = vpack.c.b16 %v830, %v822
        %v1039 = vpack.c.b16 %v831, %v823
        %v1040 = vpack.c.b16 %v832, %v824
        %v1041 = vpack.c.b16 %v833, %v825
        %v1042 = vpack.c.b16 %v834, %v826
        %v1043 = vpack.c.b16 %v835, %v827
        %v1044 = vpack.c.b16 %v836, %v828
        %v1045 = vpack.c.b16 %v837, %v829
        %v1046 = vpack.c.b16 %v846, %v838
        %v1047 = vpack.c.b16 %v847, %v839
        %v1048 = vpack.c.b16 %v848, %v840
        %v1049 = vpack.c.b16 %v849, %v841
        %v1050 = vpack.c.b16 %v850, %v842
        %v1051 = vpack.c.b16 %v851, %v843
        %v1052 = vpack.c.b16 %v852, %v844
        %v1053 = vpack.c.b16 %v853, %v845
        %v1054 = vpack.c.b16 %v862, %v854
        %v1055 = vpack.c.b16 %v863, %v855
        %v1056 = vpack.c.b16 %v864, %v856
        %v1057 = vpack.c.b16 %v865, %v857
        %v1058 = vpack.c.b16 %v866, %v858
        %v1059 = vpack.c.b16 %v867, %v859
        %v1060 = vpack.c.b16 %v868, %v860
        %v1061 = vpack.c.b16 %v869, %v861
        %v1062 = vpack.c.b16 %v878, %v870
        %v1063 = vpack.c.b16 %v879, %v871
        %v1064 = vpack.c.b16 %v880, %v872
        %v1065 = vpack.c.b16 %v881, %v873
        %v1066 = vpack.c.b16 %v882, %v874
        %v1067 = vpack.c.b16 %v883, %v875
        %v1068 = vpack.c.b16 %v884, %v876
        %v1069 = vpack.c.b16 %v885, %v877
        %v1070 = vpack.c.b16 %v894, %v886
        %v1071 = vpack.c.b16 %v895, %v887
        %v1072 = vpack.c.b16 %v896, %v888
        %v1073 = vpack.c.b16 %v897, %v889
        %v1074 = vpack.c.b16 %v898, %v890
        %v1075 = vpack.c.b16 %v899, %v891
        %v1076 = vpack.c.b16 %v900, %v892
        %v1077 = vpack.c.b16 %v901, %v893
        %v1078 = vpack.c.b16 %v910, %v902
        %v1079 = vpack.c.b16 %v911, %v903
        %v1080 = vpack.c.b16 %v912, %v904
        %v1081 = vpack.c.b16 %v913, %v905
        %v1082 = vpack.c.b16 %v914, %v906
        %v1083 = vpack.c.b16 %v915, %v907
        %v1084 = vpack.c.b16 %v916, %v908
        %v1085 = vpack.c.b16 %v917, %v909
        %v1086 = vpack.c.b16 %v926, %v918
        %v1087 = vpack.c.b16 %v927, %v919
        %v1088 = vpack.c.b16 %v928, %v920
        %v1089 = vpack.c.b16 %v929, %v921
        %v1090 = vpack.c.b16 %v930, %v922
        %v1091 = vpack.c.b16 %v931, %v923
        %v1092 = vpack.c.b16 %v932, %v924
        %v1093 = vpack.c.b16 %v933, %v925
        %v1094 = vpack.c.b16 %v942, %v934
        %v1095 = vpack.c.b16 %v943, %v935
        %v1096 = vpack.c.b16 %v944, %v936
        %v1097 = vpack.c.b16 %v945, %v937
        %v1098 = vpack.c.b16 %v946, %v938
        %v1099 = vpack.c.b16 %v947, %v939
        %v1100 = vpack.c.b16 %v948, %v940
        %v1101 = vpack.c.b16 %v949, %v941
        %v1102 = vpack.c.b16 %v958, %v950
        %v1103 = vpack.c.b16 %v959, %v951
        %v1104 = vpack.c.b16 %v960, %v952
        %v1105 = vpack.c.b16 %v961, %v953
        %v1106 = vpack.c.b16 %v962, %v954
        %v1107 = vpack.c.b16 %v963, %v955
        %v1108 = vpack.c.b16 %v964, %v956
        %v1109 = vpack.c.b16 %v965, %v957
        %v1110 = vpack.c.b16 %v974, %v966
        %v1111 = vpack.c.b16 %v975, %v967
        %v1112 = vpack.c.b16 %v976, %v968
        %v1113 = vpack.c.b16 %v977, %v969
        %v1114 = vpack.c.b16 %v978, %v970
        %v1115 = vpack.c.b16 %v979, %v971
        %v1116 = vpack.c.b16 %v980, %v972
        %v1117 = vpack.c.b16 %v981, %v973
        %v1118 = vpack.c.b16 %v990, %v982
        %v1119 = vpack.c.b16 %v991, %v983
        %v1120 = vpack.c.b16 %v992, %v984
        %v1121 = vpack.c.b16 %v993, %v985
        %v1122 = vpack.c.b16 %v994, %v986
        %v1123 = vpack.c.b16 %v995, %v987
        %v1124 = vpack.c.b16 %v996, %v988
        %v1125 = vpack.c.b16 %v997, %v989
        %vm1246 = vcmask 998400
        %v1248 = vsel %vm1246, %v609, 0
        %v1251 = vsel %vm1246, %v611, 0
        %vm1253 = vcmask 1044480
        %v1255 = vsel %vm1253, %v1118, 0
        %v1258 = vsel %vm1253, %v1119, 0
        %v1261 = vsel %vm1253, %v1120, 0
        %v1264 = vsel %vm1253, %v1121, 0
        %v1267 = vsel %vm1253, %v1122, 0
        %v1270 = vsel %vm1253, %v1123, 0
        %v1273 = vsel %vm1253, %v1124, 0
        %v1276 = vsel %vm1253, %v1125, 0
        %1278 = vmatpush.bf16.msra.mxu0 %v1054
        %1279 = vmatpush.bf16.msra.mxu0 %v1046
        %1280 = vmatpush.bf16.msra.mxu0 %v1038
        %1281 = vmatpush.bf16.msra.mxu0 %v1030
        %1282 = vmatpush.bf16.msra.mxu0 %v1022
        %1283 = vmatpush.bf16.msra.mxu0 %v1014
        %1284 = vmatpush.bf16.msra.mxu0 %v1006
        %1285 = vmatpush.bf16.msra.mxu0 %v998
        %1286 = vmatmul.bf16.gmra.mxu0 %v608
        %v1287 = vpop.f32.mrf.mxu0
        %v1288 = vadd.f32 0.0, %v1287
        %v1289 = vpop.f32.mrf.mxu0
        %v1290 = vadd.f32 0.0, %v1289
        %1291 = vmatmul.bf16.gmra.mxu0 %v610
        %v1292 = vpop.f32.mrf.mxu0
        %v1293 = vadd.f32 0.0, %v1292
        %v1294 = vpop.f32.mrf.mxu0
        %1295 = vdwg.mxu0
        %1296 = vmatpush.bf16.msra.mxu0 %v1255
        %1297 = vmatpush.bf16.msra.mxu0 %v1110
        %1298 = vmatpush.bf16.msra.mxu0 %v1102
        %1299 = vmatpush.bf16.msra.mxu0 %v1094
        %1300 = vmatpush.bf16.msra.mxu0 %v1086
        %1301 = vmatpush.bf16.msra.mxu0 %v1078
        %1302 = vmatpush.bf16.msra.mxu0 %v1070
        %1303 = vmatpush.bf16.msra.mxu0 %v1062
        %1304 = vmatmul.bf16.gmra.mxu0 %v1248
        %v1305 = vpop.f32.mrf.mxu0
        %v1306 = vadd.f32 %v1288, %v1305
        %v1307 = vpop.f32.mrf.mxu0
        %v1308 = vadd.f32 %v1290, %v1307
        %1309 = vmatmul.bf16.gmra.mxu0 %v1251
        %v1310 = vpop.f32.mrf.mxu0
        %v1311 = vadd.f32 %v1293, %v1310
        %v1312 = vpop.f32.mrf.mxu0
        %1313 = vdwg.mxu0
        %1314 = vmatpush.bf16.msra.mxu0 %v1055
        %1315 = vmatpush.bf16.msra.mxu0 %v1047
        %1316 = vmatpush.bf16.msra.mxu0 %v1039
        %1317 = vmatpush.bf16.msra.mxu0 %v1031
        %1318 = vmatpush.bf16.msra.mxu0 %v1023
        %1319 = vmatpush.bf16.msra.mxu0 %v1015
        %1320 = vmatpush.bf16.msra.mxu0 %v1007
        %1321 = vmatpush.bf16.msra.mxu0 %v999
        %1322 = vmatmul.bf16.gmra.mxu0 %v608
        %v1323 = vpop.f32.mrf.mxu0
        %v1324 = vadd.f32 0.0, %v1323
        %v1325 = vpop.f32.mrf.mxu0
        %v1326 = vadd.f32 0.0, %v1325
        %1327 = vmatmul.bf16.gmra.mxu0 %v610
        %v1328 = vpop.f32.mrf.mxu0
        %v1329 = vadd.f32 0.0, %v1328
        %v1330 = vpop.f32.mrf.mxu0
        %1331 = vdwg.mxu0
        %1332 = vmatpush.bf16.msra.mxu0 %v1258
        %1333 = vmatpush.bf16.msra.mxu0 %v1111
        %1334 = vmatpush.bf16.msra.mxu0 %v1103
        %1335 = vmatpush.bf16.msra.mxu0 %v1095
        %1336 = vmatpush.bf16.msra.mxu0 %v1087
        %1337 = vmatpush.bf16.msra.mxu0 %v1079
        %1338 = vmatpush.bf16.msra.mxu0 %v1071
        %1339 = vmatpush.bf16.msra.mxu0 %v1063
        %1340 = vmatmul.bf16.gmra.mxu0 %v1248
        %v1341 = vpop.f32.mrf.mxu0
        %v1342 = vadd.f32 %v1324, %v1341
        %v1343 = vpop.f32.mrf.mxu0
        %v1344 = vadd.f32 %v1326, %v1343
        %1345 = vmatmul.bf16.gmra.mxu0 %v1251
        %v1346 = vpop.f32.mrf.mxu0
        %v1347 = vadd.f32 %v1329, %v1346
        %v1348 = vpop.f32.mrf.mxu0
        %1349 = vdwg.mxu0
        %1350 = vmatpush.bf16.msra.mxu0 %v1056
        %1351 = vmatpush.bf16.msra.mxu0 %v1048
        %1352 = vmatpush.bf16.msra.mxu0 %v1040
        %1353 = vmatpush.bf16.msra.mxu0 %v1032
        %1354 = vmatpush.bf16.msra.mxu0 %v1024
        %1355 = vmatpush.bf16.msra.mxu0 %v1016
        %1356 = vmatpush.bf16.msra.mxu0 %v1008
        %1357 = vmatpush.bf16.msra.mxu0 %v1000
        %1358 = vmatmul.bf16.gmra.mxu0 %v608
        %v1359 = vpop.f32.mrf.mxu0
        %v1360 = vadd.f32 0.0, %v1359
        %v1361 = vpop.f32.mrf.mxu0
        %v1362 = vadd.f32 0.0, %v1361
        %1363 = vmatmul.bf16.gmra.mxu0 %v610
        %v1364 = vpop.f32.mrf.mxu0
        %v1365 = vadd.f32 0.0, %v1364
        %v1366 = vpop.f32.mrf.mxu0
        %1367 = vdwg.mxu0
        %1368 = vmatpush.bf16.msra.mxu0 %v1261
        %1369 = vmatpush.bf16.msra.mxu0 %v1112
        %1370 = vmatpush.bf16.msra.mxu0 %v1104
        %1371 = vmatpush.bf16.msra.mxu0 %v1096
        %1372 = vmatpush.bf16.msra.mxu0 %v1088
        %1373 = vmatpush.bf16.msra.mxu0 %v1080
        %1374 = vmatpush.bf16.msra.mxu0 %v1072
        %1375 = vmatpush.bf16.msra.mxu0 %v1064
        %1376 = vmatmul.bf16.gmra.mxu0 %v1248
        %v1377 = vpop.f32.mrf.mxu0
        %v1378 = vadd.f32 %v1360, %v1377
        %v1379 = vpop.f32.mrf.mxu0
        %v1380 = vadd.f32 %v1362, %v1379
        %1381 = vmatmul.bf16.gmra.mxu0 %v1251
        %v1382 = vpop.f32.mrf.mxu0
        %v1383 = vadd.f32 %v1365, %v1382
        %v1384 = vpop.f32.mrf.mxu0
        %1385 = vdwg.mxu0
        %1386 = vmatpush.bf16.msra.mxu0 %v1057
        %1387 = vmatpush.bf16.msra.mxu0 %v1049
        %1388 = vmatpush.bf16.msra.mxu0 %v1041
        %1389 = vmatpush.bf16.msra.mxu0 %v1033
        %1390 = vmatpush.bf16.msra.mxu0 %v1025
        %1391 = vmatpush.bf16.msra.mxu0 %v1017
        %1392 = vmatpush.bf16.msra.mxu0 %v1009
        %1393 = vmatpush.bf16.msra.mxu0 %v1001
        %1394 = vmatmul.bf16.gmra.mxu0 %v608
        %v1395 = vpop.f32.mrf.mxu0
        %v1396 = vadd.f32 0.0, %v1395
        %v1397 = vpop.f32.mrf.mxu0
        %v1398 = vadd.f32 0.0, %v1397
        %1399 = vmatmul.bf16.gmra.mxu0 %v610
        %v1400 = vpop.f32.mrf.mxu0
        %v1401 = vadd.f32 0.0, %v1400
        %v1402 = vpop.f32.mrf.mxu0
        %1403 = vdwg.mxu0
        %1404 = vmatpush.bf16.msra.mxu0 %v1264
        %1405 = vmatpush.bf16.msra.mxu0 %v1113
        %1406 = vmatpush.bf16.msra.mxu0 %v1105
        %1407 = vmatpush.bf16.msra.mxu0 %v1097
        %1408 = vmatpush.bf16.msra.mxu0 %v1089
        %1409 = vmatpush.bf16.msra.mxu0 %v1081
        %1410 = vmatpush.bf16.msra.mxu0 %v1073
        %1411 = vmatpush.bf16.msra.mxu0 %v1065
        %1412 = vmatmul.bf16.gmra.mxu0 %v1248
        %v1413 = vpop.f32.mrf.mxu0
        %v1414 = vadd.f32 %v1396, %v1413
        %v1415 = vpop.f32.mrf.mxu0
        %v1416 = vadd.f32 %v1398, %v1415
        %1417 = vmatmul.bf16.gmra.mxu0 %v1251
        %v1418 = vpop.f32.mrf.mxu0
        %v1419 = vadd.f32 %v1401, %v1418
        %v1420 = vpop.f32.mrf.mxu0
        %1421 = vdwg.mxu0
        %1422 = vmatpush.bf16.msra.mxu0 %v1058
        %1423 = vmatpush.bf16.msra.mxu0 %v1050
        %1424 = vmatpush.bf16.msra.mxu0 %v1042
        %1425 = vmatpush.bf16.msra.mxu0 %v1034
        %1426 = vmatpush.bf16.msra.mxu0 %v1026
        %1427 = vmatpush.bf16.msra.mxu0 %v1018
        %1428 = vmatpush.bf16.msra.mxu0 %v1010
        %1429 = vmatpush.bf16.msra.mxu0 %v1002
        %1430 = vmatmul.bf16.gmra.mxu0 %v608
        %v1431 = vpop.f32.mrf.mxu0
        %v1432 = vadd.f32 0.0, %v1431
        %v1433 = vpop.f32.mrf.mxu0
        %v1434 = vadd.f32 0.0, %v1433
        %1435 = vmatmul.bf16.gmra.mxu0 %v610
        %v1436 = vpop.f32.mrf.mxu0
        %v1437 = vadd.f32 0.0, %v1436
        %v1438 = vpop.f32.mrf.mxu0
        %1439 = vdwg.mxu0
        %1440 = vmatpush.bf16.msra.mxu0 %v1267
        %1441 = vmatpush.bf16.msra.mxu0 %v1114
        %1442 = vmatpush.bf16.msra.mxu0 %v1106
        %1443 = vmatpush.bf16.msra.mxu0 %v1098
        %1444 = vmatpush.bf16.msra.mxu0 %v1090
        %1445 = vmatpush.bf16.msra.mxu0 %v1082
        %1446 = vmatpush.bf16.msra.mxu0 %v1074
        %1447 = vmatpush.bf16.msra.mxu0 %v1066
        %1448 = vmatmul.bf16.gmra.mxu0 %v1248
        %v1449 = vpop.f32.mrf.mxu0
        %v1450 = vadd.f32 %v1432, %v1449
        %v1451 = vpop.f32.mrf.mxu0
        %v1452 = vadd.f32 %v1434, %v1451
        %1453 = vmatmul.bf16.gmra.mxu0 %v1251
        %v1454 = vpop.f32.mrf.mxu0
        %v1455 = vadd.f32 %v1437, %v1454
        %v1456 = vpop.f32.mrf.mxu0
        %1457 = vdwg.mxu0
        %1458 = vmatpush.bf16.msra.mxu0 %v1059
        %1459 = vmatpush.bf16.msra.mxu0 %v1051
        %1460 = vmatpush.bf16.msra.mxu0 %v1043
        %1461 = vmatpush.bf16.msra.mxu0 %v1035
        %1462 = vmatpush.bf16.msra.mxu0 %v1027
        %1463 = vmatpush.bf16.msra.mxu0 %v1019
        %1464 = vmatpush.bf16.msra.mxu0 %v1011
        %1465 = vmatpush.bf16.msra.mxu0 %v1003
        %1466 = vmatmul.bf16.gmra.mxu0 %v608
        %v1467 = vpop.f32.mrf.mxu0
        %v1468 = vadd.f32 0.0, %v1467
        %v1469 = vpop.f32.mrf.mxu0
        %v1470 = vadd.f32 0.0, %v1469
        %1471 = vmatmul.bf16.gmra.mxu0 %v610
        %v1472 = vpop.f32.mrf.mxu0
        %v1473 = vadd.f32 0.0, %v1472
        %v1474 = vpop.f32.mrf.mxu0
        %1475 = vdwg.mxu0
        %1476 = vmatpush.bf16.msra.mxu0 %v1270
        %1477 = vmatpush.bf16.msra.mxu0 %v1115
        %1478 = vmatpush.bf16.msra.mxu0 %v1107
        %1479 = vmatpush.bf16.msra.mxu0 %v1099
        %1480 = vmatpush.bf16.msra.mxu0 %v1091
        %1481 = vmatpush.bf16.msra.mxu0 %v1083
        %1482 = vmatpush.bf16.msra.mxu0 %v1075
        %1483 = vmatpush.bf16.msra.mxu0 %v1067
        %1484 = vmatmul.bf16.gmra.mxu0 %v1248
        %v1485 = vpop.f32.mrf.mxu0
        %v1486 = vadd.f32 %v1468, %v1485
        %v1487 = vpop.f32.mrf.mxu0
        %v1488 = vadd.f32 %v1470, %v1487
        %1489 = vmatmul.bf16.gmra.mxu0 %v1251
        %v1490 = vpop.f32.mrf.mxu0
        %v1491 = vadd.f32 %v1473, %v1490
        %v1492 = vpop.f32.mrf.mxu0
        %1493 = vdwg.mxu0
        %1494 = vmatpush.bf16.msra.mxu0 %v1060
        %1495 = vmatpush.bf16.msra.mxu0 %v1052
        %1496 = vmatpush.bf16.msra.mxu0 %v1044
        %1497 = vmatpush.bf16.msra.mxu0 %v1036
        %1498 = vmatpush.bf16.msra.mxu0 %v1028
        %1499 = vmatpush.bf16.msra.mxu0 %v1020
        %1500 = vmatpush.bf16.msra.mxu0 %v1012
        %1501 = vmatpush.bf16.msra.mxu0 %v1004
        %1502 = vmatmul.bf16.gmra.mxu0 %v608
        %v1503 = vpop.f32.mrf.mxu0
        %v1504 = vadd.f32 0.0, %v1503
        %v1505 = vpop.f32.mrf.mxu0
        %v1506 = vadd.f32 0.0, %v1505
        %1507 = vmatmul.bf16.gmra.mxu0 %v610
        %v1508 = vpop.f32.mrf.mxu0
        %v1509 = vadd.f32 0.0, %v1508
        %v1510 = vpop.f32.mrf.mxu0
        %1511 = vdwg.mxu0
        %1512 = vmatpush.bf16.msra.mxu0 %v1273
        %1513 = vmatpush.bf16.msra.mxu0 %v1116
        %1514 = vmatpush.bf16.msra.mxu0 %v1108
        %1515 = vmatpush.bf16.msra.mxu0 %v1100
        %1516 = vmatpush.bf16.msra.mxu0 %v1092
        %1517 = vmatpush.bf16.msra.mxu0 %v1084
        %1518 = vmatpush.bf16.msra.mxu0 %v1076
        %1519 = vmatpush.bf16.msra.mxu0 %v1068
        %1520 = vmatmul.bf16.gmra.mxu0 %v1248
        %v1521 = vpop.f32.mrf.mxu0
        %v1522 = vadd.f32 %v1504, %v1521
        %v1523 = vpop.f32.mrf.mxu0
        %v1524 = vadd.f32 %v1506, %v1523
        %1525 = vmatmul.bf16.gmra.mxu0 %v1251
        %v1526 = vpop.f32.mrf.mxu0
        %v1527 = vadd.f32 %v1509, %v1526
        %v1528 = vpop.f32.mrf.mxu0
        %1529 = vdwg.mxu0
        %1530 = vmatpush.bf16.msra.mxu0 %v1061
        %1531 = vmatpush.bf16.msra.mxu0 %v1053
        %1532 = vmatpush.bf16.msra.mxu0 %v1045
        %1533 = vmatpush.bf16.msra.mxu0 %v1037
        %1534 = vmatpush.bf16.msra.mxu0 %v1029
        %1535 = vmatpush.bf16.msra.mxu0 %v1021
        %1536 = vmatpush.bf16.msra.mxu0 %v1013
        %1537 = vmatpush.bf16.msra.mxu0 %v1005
        %1538 = vmatmul.bf16.gmra.mxu0 %v608
        %v1539 = vpop.f32.mrf.mxu0
        %v1540 = vadd.f32 0.0, %v1539
        %v1541 = vpop.f32.mrf.mxu0
        %v1542 = vadd.f32 0.0, %v1541
        %1543 = vmatmul.bf16.gmra.mxu0 %v610
        %v1544 = vpop.f32.mrf.mxu0
        %v1545 = vadd.f32 0.0, %v1544
        %v1546 = vpop.f32.mrf.mxu0
        %1547 = vdwg.mxu0
        %1548 = vmatpush.bf16.msra.mxu0 %v1276
        %1549 = vmatpush.bf16.msra.mxu0 %v1117
        %1550 = vmatpush.bf16.msra.mxu0 %v1109
        %1551 = vmatpush.bf16.msra.mxu0 %v1101
        %1552 = vmatpush.bf16.msra.mxu0 %v1093
        %1553 = vmatpush.bf16.msra.mxu0 %v1085
        %1554 = vmatpush.bf16.msra.mxu0 %v1077
        %1555 = vmatpush.bf16.msra.mxu0 %v1069
        %1556 = vmatmul.bf16.gmra.mxu0 %v1248
        %v1557 = vpop.f32.mrf.mxu0
        %v1558 = vadd.f32 %v1540, %v1557
        %v1559 = vpop.f32.mrf.mxu0
        %v1560 = vadd.f32 %v1542, %v1559
        %1561 = vmatmul.bf16.gmra.mxu0 %v1251
        %v1562 = vpop.f32.mrf.mxu0
        %v1563 = vadd.f32 %v1545, %v1562
        %v1564 = vpop.f32.mrf.mxu0
        %1565 = vdwg.mxu0
        %v1566 = vld [vmem:[%s2] sm:$0xff]
        %v1567 = vld [vmem:[%s2 + $0x8] sm:$0xff]
        %v1568 = vld [vmem:[%s2 + $0x10] sm:$0xf]
        %1570 = vset.pattern.permute.xlu0 0
        %1571 = vperm.xlu0 %1570, %v1566
        %v1572 = vpop.permute.xlu0 %1571
        %1575 = vset.pattern.permute.xlu0 0
        %1576 = vperm.xlu0 %1575, %v1567
        %v1577 = vpop.permute.xlu0 %1576
        %1580 = vset.pattern.permute.xlu0 0
        %1581 = vperm.xlu0 %1580, %v1568
        %v1582 = vpop.permute.xlu0 %1581
        %v1584 = vmul.f32 %v1306, %v1572
        %v1585 = vmul.f32 %v1342, %v1572
        %v1586 = vmul.f32 %v1378, %v1572
        %v1587 = vmul.f32 %v1414, %v1572
        %v1588 = vmul.f32 %v1450, %v1572
        %v1589 = vmul.f32 %v1486, %v1572
        %v1590 = vmul.f32 %v1522, %v1572
        %v1591 = vmul.f32 %v1558, %v1572
        %v1592 = vmul.f32 %v1308, %v1577
        %v1593 = vmul.f32 %v1344, %v1577
        %v1594 = vmul.f32 %v1380, %v1577
        %v1595 = vmul.f32 %v1416, %v1577
        %v1596 = vmul.f32 %v1452, %v1577
        %v1597 = vmul.f32 %v1488, %v1577
        %v1598 = vmul.f32 %v1524, %v1577
        %v1599 = vmul.f32 %v1560, %v1577
        %v1600 = vmul.f32 %v1311, %v1582
        %v1601 = vmul.f32 %v1347, %v1582
        %v1602 = vmul.f32 %v1383, %v1582
        %v1603 = vmul.f32 %v1419, %v1582
        %v1604 = vmul.f32 %v1455, %v1582
        %v1605 = vmul.f32 %v1491, %v1582
        %v1606 = vmul.f32 %v1527, %v1582
        %v1607 = vmul.f32 %v1563, %v1582
        %v1608 = vld [vmem:[%s3] sm:$0xff]
        %v1609 = vld [vmem:[%s3 + $0x8] sm:$0xff]
        %v1610 = vld [vmem:[%s3 + $0x10] sm:$0xf]
        %1612 = vset.pattern.permute.xlu0 0
        %1613 = vperm.xlu0 %1612, %v1608
        %v1614 = vpop.permute.xlu0 %1613
        %1617 = vset.pattern.permute.xlu0 0
        %1618 = vperm.xlu0 %1617, %v1609
        %v1619 = vpop.permute.xlu0 %1618
        %1622 = vset.pattern.permute.xlu0 0
        %1623 = vperm.xlu0 %1622, %v1610
        %v1624 = vpop.permute.xlu0 %1623
        %v1626 = vadd.f32 %v1584, %v1614
        %v1627 = vadd.f32 %v1585, %v1614
        %v1628 = vadd.f32 %v1586, %v1614
        %v1629 = vadd.f32 %v1587, %v1614
        %v1630 = vadd.f32 %v1588, %v1614
        %v1631 = vadd.f32 %v1589, %v1614
        %v1632 = vadd.f32 %v1590, %v1614
        %v1633 = vadd.f32 %v1591, %v1614
        %v1634 = vadd.f32 %v1592, %v1619
        %v1635 = vadd.f32 %v1593, %v1619
        %v1636 = vadd.f32 %v1594, %v1619
        %v1637 = vadd.f32 %v1595, %v1619
        %v1638 = vadd.f32 %v1596, %v1619
        %v1639 = vadd.f32 %v1597, %v1619
        %v1640 = vadd.f32 %v1598, %v1619
        %v1641 = vadd.f32 %v1599, %v1619
        %v1642 = vadd.f32 %v1600, %v1624
        %v1643 = vadd.f32 %v1601, %v1624
        %v1644 = vadd.f32 %v1602, %v1624
        %v1645 = vadd.f32 %v1603, %v1624
        %v1646 = vadd.f32 %v1604, %v1624
        %v1647 = vadd.f32 %v1605, %v1624
        %v1648 = vadd.f32 %v1606, %v1624
        %v1649 = vadd.f32 %v1607, %v1624
        %v1650 = vmax.f32 %v1626, 0.0
        %v1651 = vmax.f32 %v1627, 0.0
        %v1652 = vmax.f32 %v1628, 0.0
        %v1653 = vmax.f32 %v1629, 0.0
        %v1654 = vmax.f32 %v1630, 0.0
        %v1655 = vmax.f32 %v1631, 0.0
        %v1656 = vmax.f32 %v1632, 0.0
        %v1657 = vmax.f32 %v1633, 0.0
        %v1658 = vmax.f32 %v1634, 0.0
        %v1659 = vmax.f32 %v1635, 0.0
        %v1660 = vmax.f32 %v1636, 0.0
        %v1661 = vmax.f32 %v1637, 0.0
        %v1662 = vmax.f32 %v1638, 0.0
        %v1663 = vmax.f32 %v1639, 0.0
        %v1664 = vmax.f32 %v1640, 0.0
        %v1665 = vmax.f32 %v1641, 0.0
        %v1666 = vmax.f32 %v1642, 0.0
        %v1667 = vmax.f32 %v1643, 0.0
        %v1668 = vmax.f32 %v1644, 0.0
        %v1669 = vmax.f32 %v1645, 0.0
        %v1670 = vmax.f32 %v1646, 0.0
        %v1671 = vmax.f32 %v1647, 0.0
        %v1672 = vmax.f32 %v1648, 0.0
        %v1673 = vmax.f32 %v1649, 0.0
        %v1674 = vpack.c.bf16 %v1651, %v1650
        %v1675 = vpack.c.bf16 %v1653, %v1652
        %v1676 = vpack.c.bf16 %v1655, %v1654
        %v1677 = vpack.c.bf16 %v1657, %v1656
        %v1678 = vpack.c.bf16 %v1659, %v1658
        %v1679 = vpack.c.bf16 %v1661, %v1660
        %v1680 = vpack.c.bf16 %v1663, %v1662
        %v1681 = vpack.c.bf16 %v1665, %v1664
        %v1682 = vpack.c.bf16 %v1667, %v1666
        %v1683 = vpack.c.bf16 %v1669, %v1668
        %v1684 = vpack.c.bf16 %v1671, %v1670
        %v1685 = vpack.c.bf16 %v1673, %v1672
        %1686 = vst [vmem:[%s465] sm:$0xff] %v1674
        %1687 = vst [vmem:[%s465 + $0x8] sm:$0xff] %v1675
        %1688 = vst [vmem:[%s465 + $0x10] sm:$0xff] %v1676
        %1689 = vst [vmem:[%s465 + $0x18] sm:$0xff] %v1677
        %1690 = vst [vmem:[%s465 + $0x20] sm:$0xff] %v1678
        %1691 = vst [vmem:[%s465 + $0x28] sm:$0xff] %v1679
        %1692 = vst [vmem:[%s465 + $0x30] sm:$0xff] %v1680
        %1693 = vst [vmem:[%s465 + $0x38] sm:$0xff] %v1681
        %1694 = vst [vmem:[%s465 + $0x40] sm:$0x33] %v1682
        %1695 = vst [vmem:[%s465 + $0x48] sm:$0x33] %v1683
        %1696 = vst [vmem:[%s465 + $0x50] sm:$0x33] %v1684
        %1697 = vst [vmem:[%s465 + $0x58] sm:$0x33] %v1685
        %s1698 = sand.u32 %s112, 1
        %s1699 = sand.u32 %s112, 1
        %s1700 = smul.addr %s1699, 96
        %s1701 = scalar_lea.vmem [#allocation3], %s1700
        // Predicated region
        $region60: #{forward_pallas.4} parent=54 // pred_check
          %p1702 = pneg %p122
        $region61: #{forward_pallas.4} parent=54 // pred_check_branch
          %1704 = sbr.rel (%p1702) target = $region63
        $region62: #{forward_pallas.4} parent=54 // pred_region
          %s1705 = smul.u32 8, %s15
          %s1706 = smul.addr %s1705, 4
          %s1707 = scalar_lea.vmem %s4, %s1706
          // Predicated region
          $region64: #{forward_pallas.4} parent=62 // pred_check
            _
          $region65: #{forward_pallas.4} parent=62 // pred_check_branch
            %1709 = sbr.rel (0) target = $region67
          $region66: #{forward_pallas.4} parent=62 // pred_region
            // Predicated region
            $region68: #{forward_pallas.4} parent=66 // pred_check
              _
            $region69: #{forward_pallas.4} parent=66 // pred_check_branch
              %1711 = sbr.rel (0) target = $region71
            $region70: #{forward_pallas.4} parent=66 // pred_region
              loop: start=0, step=1, limit=1
              $region72: #{forward_pallas.4} parent=70 // loop_pre_header
                _
              $region73: #{forward_pallas.4} parent=70 // loop_header
                %s1713 = sphi 0, %s1717
                %p1714 = scmp.ge.s32.totalorder %s1713, 1
                %s1718 = sphi %s1701, %s1701
                %s1719 = sphi %s1707, %s1707
              $region74: #{forward_pallas.4} parent=70 // loop_header_branch
                %1716 = sbr.rel (%p1714) target = $region78
              $region75: #{forward_pallas.4} parent=70 // loop_body
                %v1720 = vld [vmem:[%s1718] sm:$0xff]
                %1721 = vst [vmem:[%s1719] sm:$0xff] %v1720
                %v1722 = vld [vmem:[%s1718 + $0x8] sm:$0xff]
                %1723 = vst [vmem:[%s1719 + $0x8] sm:$0xff] %v1722
                %v1724 = vld [vmem:[%s1718 + $0x10] sm:$0xff]
                %1725 = vst [vmem:[%s1719 + $0x10] sm:$0xff] %v1724
                %v1726 = vld [vmem:[%s1718 + $0x18] sm:$0xff]
                %1727 = vst [vmem:[%s1719 + $0x18] sm:$0xff] %v1726
                %v1728 = vld [vmem:[%s1718 + $0x20] sm:$0xff]
                %1729 = vst [vmem:[%s1719 + $0x40] sm:$0xff] %v1728
                %v1730 = vld [vmem:[%s1718 + $0x28] sm:$0xff]
                %1731 = vst [vmem:[%s1719 + $0x48] sm:$0xff] %v1730
                %v1732 = vld [vmem:[%s1718 + $0x30] sm:$0xff]
                %1733 = vst [vmem:[%s1719 + $0x50] sm:$0xff] %v1732
                %v1734 = vld [vmem:[%s1718 + $0x38] sm:$0xff]
                %1735 = vst [vmem:[%s1719 + $0x58] sm:$0xff] %v1734
                %v1736 = vld [vmem:[%s1718 + $0x40] sm:$0xff]
                %1737 = vst [vmem:[%s1719 + $0x80] sm:$0xff] %v1736
                %v1738 = vld [vmem:[%s1718 + $0x48] sm:$0xff]
                %1739 = vst [vmem:[%s1719 + $0x88] sm:$0xff] %v1738
                %v1740 = vld [vmem:[%s1718 + $0x50] sm:$0xff]
                %1741 = vst [vmem:[%s1719 + $0x90] sm:$0xff] %v1740
                %v1742 = vld [vmem:[%s1718 + $0x58] sm:$0xff]
                %1743 = vst [vmem:[%s1719 + $0x98] sm:$0xff] %v1742
              $region76: #{forward_pallas.4} parent=70 // loop_footer
                %s1717 = sadd.s32 1, %s1713
              $region77: #{forward_pallas.4} parent=70 // loop_footer_branch
                %1712 = sbr.rel target = $region73
              $region78: #{forward_pallas.4} parent=70 // loop_exit
                _
            $region71: #{forward_pallas.4} parent=66 // pred_fallthru
              _
            // Predicated region
            $region79: #{forward_pallas.4} parent=66 // pred_check
              _
            $region80: #{forward_pallas.4} parent=66 // pred_check_branch
              %1745 = sbr.rel target = $region82
            $region81: #{forward_pallas.4} parent=66 // pred_region
              _
            $region82: #{forward_pallas.4} parent=66 // pred_fallthru
              _
          $region67: #{forward_pallas.4} parent=62 // pred_fallthru
            _
          %1746 = vnop
        $region63: #{forward_pallas.4} parent=54 // pred_fallthru
          _
      $region55: #{forward_pallas.4} parent=5 // pred_fallthru
        _
      %p1747 = scmp.le.s32.totalorder 2, %s10
      // Predicated region
      $region83: #{forward_pallas.4} parent=5 // pred_check
        %p1748 = pneg %p1747
      $region84: #{forward_pallas.4} parent=5 // pred_check_branch
        %1750 = sbr.rel (%p1748) target = $region86
      $region85: #{forward_pallas.4} parent=5 // pred_region
        %s1751 = ssub.s32 %s10, 2
        // Predicated region
        $region87: #{forward_pallas.4} parent=85 // pred_check
          %p1752 = pneg %p128
        $region88: #{forward_pallas.4} parent=85 // pred_check_branch
          %1754 = sbr.rel (%p1752) target = $region90
        $region89: #{forward_pallas.4} parent=85 // pred_region
          %s1755 = sand.u32 %s113, 1
          %s1756 = sand.u32 %s113, 1
          %s1757 = smul.addr %s1756, 96
          %s1758 = scalar_lea.vmem [#allocation3], %s1757
        $region90: #{forward_pallas.4} parent=85 // pred_fallthru
          _
      $region86: #{forward_pallas.4} parent=5 // pred_fallthru
        _
    $region6: #{forward_pallas.4} parent=1 // loop_footer
      %s14 = sadd.s32 1, %s10
    $region7: #{forward_pallas.4} parent=1 // loop_footer_branch
      %9 = sbr.rel target = $region3
    $region8: #{forward_pallas.4} parent=1 // loop_exit
      _

// kernel: forward_pallas.5
$region0: #{forward_pallas.5}
  #allocation0 [shape = 'u32[]', space=smem, size = 0x4, offset = 0x4, fixed_abs, tag = 'smem constant byte address 0x4 - core index']
  #allocation1 [shape = 'u32[72,128]{1,0:T(1,128)}', space=vmem, size = 0x9000, scoped, tag = 'internal scratch']
  #allocation2 [shape = 'f32[12,128]{1,0:T(8,128)}', space=vmem, size = 0x2000, scoped, tag = 'scratch operand']
  %s0 = inlined_call_operand.vmem [shape: bf16[8,540,256], index: 0, kind: input, shape index: {}]
  %s1 = inlined_call_operand.vmem [shape: bf16[12,540], index: 1, kind: input, shape index: {}]
  %s2 = inlined_call_operand.vmem [shape: f32[12,1], index: 2, kind: input, shape index: {}]
  %s3 = inlined_call_operand.vmem [shape: f32[12,1], index: 3, kind: input, shape index: {}]
  %s4 = inlined_call_operand.vmem [shape: f32[12,256], index: 4, kind: output, shape index: {}]
  %s5 = sld [smem:[#allocation0]]
  $region136: #{forward_pallas.5} parent=0
    _
  %s7 = ssub.s32 1, %s5
  %s8 = scalar_select 0, %s7, %s5
  $region1: #{forward_pallas.5} parent=0
    #allocation3 [shape = 'u8[278528]{0}', space=vmem, size = 0x44000, scoped, tag = 'input window, operand 0']
    #allocation4 [shape = 'u8[16384]{0}', space=vmem, size = 0x4000, scoped, tag = 'output window, operand 0']
    loop: start=0, step=1, limit=18
    $region2: #{forward_pallas.5} parent=1 // loop_pre_header
      _
    $region3: #{forward_pallas.5} parent=1 // loop_header
      %s10 = sphi 0, %s14
      %p11 = scmp.ge.s32.totalorder %s10, 18
      %s17 = sphi 0, %s29
      %s18 = sphi 0, %s25
      %s19 = sphi 0, %s17
      %s20 = sphi 0, %s18
      %s21 = sphi 0, %s19
      %s22 = sphi 0, %s20
      %s34 = sphi 0, %s36
      %s37 = sphi 0, %s34
      %s38 = sphi 0, %s37
      %s54 = sphi 0, %s38
      %s58 = sphi 0, %s58
      %s60 = sphi 0, %s58
      %s61 = sphi 0, %s60
      %s75 = sphi 0, %s61
      %s79 = sphi 0, %s79
      %s81 = sphi 0, %s79
      %s82 = sphi 0, %s81
      %s96 = sphi 0, %s82
      %s100 = sphi 0, %s100
      %s102 = sphi 0, %s100
      %s103 = sphi 0, %s102
      %s117 = sphi 0, %s103
      %s123 = sphi 0, %s125
      %s126 = sphi 0, %s123
      %s127 = sphi 0, %s126
      %s143 = sphi 0, %s127
    $region4: #{forward_pallas.5} parent=1 // loop_header_branch
      %13 = sbr.rel (%p11) target = $region8
    $region5: #{forward_pallas.5} parent=1 // loop_body
      %s15 = ssub.s32 %s10, 1
      %s16 = ssub.s32 %s10, 2
      %s23 = sadd.s32 1, %s18
      %p24 = scmp.ge.s32.totalorder %s23, 8
      %s25 = scalar_select %p24, 0, %s23
      %s26 = sadd.s32 1, %s17
      %s27 = scalar_select %p24, %s26, %s17
      %p28 = scmp.ge.s32.totalorder %s27, 2
      %s29 = scalar_select %p28, 0, %s27
      %s30 = ssub.s32 %s18, %s25
      %s31 = ssub.s32 %s17, %s29
      %s32 = sor.u32 %s30, %s31
      %p33 = scmp.eq.s32.totalorder %s32, 0
      %s35 = sadd.s32 %s34, 1
      %s36 = scalar_select %p33, %s34, %s35
      %p39 = pneg %p33
      %p40 = scmp.eq.s32.totalorder %s10, 15
      %p41 = por %p39, %p40
      %p42 = scmp.ne.s32.totalorder %s34, %s37
      %p43 = scmp.eq.s32.totalorder %s10, 0
      %p44 = por %p42, %p43
      %p45 = scmp.ne.s32.totalorder %s34, %s37
      %p46 = scmp.eq.s32.totalorder %s15, 15
      %p47 = por %p45, %p46
      %p48 = scmp.ne.s32.totalorder %s37, %s38
      %p49 = scmp.eq.s32.totalorder %s15, 0
      %p50 = por %p48, %p49
      %p51 = scmp.ne.s32.totalorder %s37, %s38
      %p52 = scmp.eq.s32.totalorder %s16, 15
      %p53 = por %p51, %p52
      %p55 = scmp.ne.s32.totalorder %s38, %s54
      %p56 = scmp.eq.s32.totalorder %s16, 0
      %p57 = por %p55, %p56
      %s59 = sadd.s32 %s58, 1
      %p62 = scmp.eq.s32.totalorder %s10, 15
      %p63 = scmp.ne.s32.totalorder %s58, %s60
      %p64 = scmp.eq.s32.totalorder %s10, 0
      %p65 = por %p63, %p64
      %p66 = scmp.ne.s32.totalorder %s58, %s60
      %p67 = scmp.eq.s32.totalorder %s15, 15
      %p68 = por %p66, %p67
      %p69 = scmp.ne.s32.totalorder %s60, %s61
      %p70 = scmp.eq.s32.totalorder %s15, 0
      %p71 = por %p69, %p70
      %p72 = scmp.ne.s32.totalorder %s60, %s61
      %p73 = scmp.eq.s32.totalorder %s16, 15
      %p74 = por %p72, %p73
      %p76 = scmp.ne.s32.totalorder %s61, %s75
      %p77 = scmp.eq.s32.totalorder %s16, 0
      %p78 = por %p76, %p77
      %s80 = sadd.s32 %s79, 1
      %p83 = scmp.eq.s32.totalorder %s10, 15
      %p84 = scmp.ne.s32.totalorder %s79, %s81
      %p85 = scmp.eq.s32.totalorder %s10, 0
      %p86 = por %p84, %p85
      %p87 = scmp.ne.s32.totalorder %s79, %s81
      %p88 = scmp.eq.s32.totalorder %s15, 15
      %p89 = por %p87, %p88
      %p90 = scmp.ne.s32.totalorder %s81, %s82
      %p91 = scmp.eq.s32.totalorder %s15, 0
      %p92 = por %p90, %p91
      %p93 = scmp.ne.s32.totalorder %s81, %s82
      %p94 = scmp.eq.s32.totalorder %s16, 15
      %p95 = por %p93, %p94
      %p97 = scmp.ne.s32.totalorder %s82, %s96
      %p98 = scmp.eq.s32.totalorder %s16, 0
      %p99 = por %p97, %p98
      %s101 = sadd.s32 %s100, 1
      %p104 = scmp.eq.s32.totalorder %s10, 15
      %p105 = scmp.ne.s32.totalorder %s100, %s102
      %p106 = scmp.eq.s32.totalorder %s10, 0
      %p107 = por %p105, %p106
      %p108 = scmp.ne.s32.totalorder %s100, %s102
      %p109 = scmp.eq.s32.totalorder %s15, 15
      %p110 = por %p108, %p109
      %p111 = scmp.ne.s32.totalorder %s102, %s103
      %p112 = scmp.eq.s32.totalorder %s15, 0
      %p113 = por %p111, %p112
      %p114 = scmp.ne.s32.totalorder %s102, %s103
      %p115 = scmp.eq.s32.totalorder %s16, 15
      %p116 = por %p114, %p115
      %p118 = scmp.ne.s32.totalorder %s103, %s117
      %p119 = scmp.eq.s32.totalorder %s16, 0
      %p120 = por %p118, %p119
      %s121 = ssub.s32 %s17, %s29
      %p122 = scmp.eq.s32.totalorder %s121, 0
      %s124 = sadd.s32 %s123, 1
      %s125 = scalar_select %p122, %s123, %s124
      %p128 = pneg %p122
      %p129 = scmp.eq.s32.totalorder %s10, 15
      %p130 = por %p128, %p129
      %p131 = scmp.ne.s32.totalorder %s123, %s126
      %p132 = scmp.eq.s32.totalorder %s10, 0
      %p133 = por %p131, %p132
      %p134 = scmp.ne.s32.totalorder %s123, %s126
      %p135 = scmp.eq.s32.totalorder %s15, 15
      %p136 = por %p134, %p135
      %p137 = scmp.ne.s32.totalorder %s126, %s127
      %p138 = scmp.eq.s32.totalorder %s15, 0
      %p139 = por %p137, %p138
      %p140 = scmp.ne.s32.totalorder %s126, %s127
      %p141 = scmp.eq.s32.totalorder %s16, 15
      %p142 = por %p140, %p141
      %p144 = scmp.ne.s32.totalorder %s127, %s143
      %p145 = scmp.eq.s32.totalorder %s16, 0
      %p146 = por %p144, %p145
      %p147 = scmp.le.s32.totalorder 1, %s10
      %p148 = scmp.lt.s32.totalorder %s10, 17
      %p149 = pnand %p147, %p148
      %p150 = pneg %p149
      // Predicated region
      $region9: #{forward_pallas.5} parent=5 // pred_check
        _
      $region10: #{forward_pallas.5} parent=5 // pred_check_branch
        %152 = sbr.rel (%p149) target = $region12
      $region11: #{forward_pallas.5} parent=5 // pred_region
        %s153 = ssub.s32 %s10, 1
        // Predicated region
        $region13: #{forward_pallas.5} parent=11 // pred_check
          %p154 = pneg %p71
        $region14: #{forward_pallas.5} parent=11 // pred_check_branch
          %156 = sbr.rel (%p154) target = $region16
        $region15: #{forward_pallas.5} parent=11 // pred_region
          _
        $region16: #{forward_pallas.5} parent=11 // pred_fallthru
          _
        // Predicated region
        $region17: #{forward_pallas.5} parent=11 // pred_check
          %p157 = pneg %p92
        $region18: #{forward_pallas.5} parent=11 // pred_check_branch
          %159 = sbr.rel (%p157) target = $region20
        $region19: #{forward_pallas.5} parent=11 // pred_region
          _
        $region20: #{forward_pallas.5} parent=11 // pred_fallthru
          _
        // Predicated region
        $region21: #{forward_pallas.5} parent=11 // pred_check
          %p160 = pneg %p113
        $region22: #{forward_pallas.5} parent=11 // pred_check_branch
          %162 = sbr.rel (%p160) target = $region24
        $region23: #{forward_pallas.5} parent=11 // pred_region
          _
        $region24: #{forward_pallas.5} parent=11 // pred_fallthru
          _
      $region12: #{forward_pallas.5} parent=5 // pred_fallthru
        _
      %p163 = scmp.lt.s32.totalorder %s10, 16
      // Predicated region
      $region25: #{forward_pallas.5} parent=5 // pred_check
        %p164 = pneg %p163
      $region26: #{forward_pallas.5} parent=5 // pred_check_branch
        %166 = sbr.rel (%p164) target = $region28
      $region27: #{forward_pallas.5} parent=5 // pred_region
        // Predicated region
        $region29: #{forward_pallas.5} parent=27 // pred_check
          %p167 = pneg %p44
        $region30: #{forward_pallas.5} parent=27 // pred_check_branch
          %169 = sbr.rel (%p167) target = $region32
        $region31: #{forward_pallas.5} parent=27 // pred_region
          %s170 = sand.u32 %s34, 1
          %s171 = sand.u32 %s34, 1
          %s172 = smul.addr %s171, 272
          %s173 = scalar_lea.vmem [#allocation3], %s172
          %s174 = smul.addr %s18, 136
          %s175 = sadd.s32 %s17, %s174
          %s176 = smul.addr %s175, 4
          %s177 = scalar_lea.vmem %s0, %s176
          // Predicated region
          $region33: #{forward_pallas.5} parent=31 // pred_check
            _
          $region34: #{forward_pallas.5} parent=31 // pred_check_branch
            %179 = sbr.rel (0) target = $region36
          $region35: #{forward_pallas.5} parent=31 // pred_region
            // Predicated region
            $region37: #{forward_pallas.5} parent=35 // pred_check
              _
            $region38: #{forward_pallas.5} parent=35 // pred_check_branch
              %181 = sbr.rel target = $region40
            $region39: #{forward_pallas.5} parent=35 // pred_region
              // Predicated region
              $region52: #{forward_pallas.5} parent=39 // pred_check
                _
              $region53: #{forward_pallas.5} parent=39 // pred_check_branch
                %331 = sbr.rel (0) target = $region55
              $region54: #{forward_pallas.5} parent=39 // pred_region
                loop: start=0, step=1, limit=1
                $region56: #{forward_pallas.5} parent=54 // loop_pre_header
                  _
                $region57: #{forward_pallas.5} parent=54 // loop_header
                  %s333 = sphi 0, %s337
                  %p334 = scmp.ge.s32.totalorder %s333, 1
                  %s338 = sphi %s177, %s177
                  %s339 = sphi %s173, %s173
                $region58: #{forward_pallas.5} parent=54 // loop_header_branch
                  %336 = sbr.rel (%p334) target = $region62
                $region59: #{forward_pallas.5} parent=54 // loop_body
                  _
                $region60: #{forward_pallas.5} parent=54 // loop_footer
                  %s337 = sadd.s32 1, %s333
                $region61: #{forward_pallas.5} parent=54 // loop_footer_branch
                  %332 = sbr.rel target = $region57
                $region62: #{forward_pallas.5} parent=54 // loop_exit
                  _
                %s341 = ssub.s32 16, 1
                loop: start=0, step=1, limit=1
                $region63: #{forward_pallas.5} parent=54 // loop_pre_header
                  _
                $region64: #{forward_pallas.5} parent=54 // loop_header
                  %s343 = sphi 0, %s347
                  %p344 = scmp.ge.s32.totalorder %s343, 1
                  %s348 = sphi %s177, %s177
                  %s349 = sphi %s173, %s173
                $region65: #{forward_pallas.5} parent=54 // loop_header_branch
                  %346 = sbr.rel (%p344) target = $region69
                $region66: #{forward_pallas.5} parent=54 // loop_body
                  %v350 = vld [vmem:[%s348] sm:%s341]
                  %351 = vst [vmem:[%s349] sm:%s341] %v350
                  %v352 = vld [vmem:[%s348 + $0x8] sm:%s341]
                  %353 = vst [vmem:[%s349 + $0x4] sm:%s341] %v352
                  %v354 = vld [vmem:[%s348 + $0x10] sm:%s341]
                  %355 = vst [vmem:[%s349 + $0x8] sm:%s341] %v354
                  %v356 = vld [vmem:[%s348 + $0x18] sm:%s341]
                  %357 = vst [vmem:[%s349 + $0xc] sm:%s341] %v356
                  %v358 = vld [vmem:[%s348 + $0x20] sm:%s341]
                  %359 = vst [vmem:[%s349 + $0x10] sm:%s341] %v358
                  %v360 = vld [vmem:[%s348 + $0x28] sm:%s341]
                  %361 = vst [vmem:[%s349 + $0x14] sm:%s341] %v360
                  %v362 = vld [vmem:[%s348 + $0x30] sm:%s341]
                  %363 = vst [vmem:[%s349 + $0x18] sm:%s341] %v362
                  %v364 = vld [vmem:[%s348 + $0x38] sm:%s341]
                  %365 = vst [vmem:[%s349 + $0x1c] sm:%s341] %v364
                  %v366 = vld [vmem:[%s348 + $0x40] sm:%s341]
                  %367 = vst [vmem:[%s349 + $0x20] sm:%s341] %v366
                  %v368 = vld [vmem:[%s348 + $0x48] sm:%s341]
                  %369 = vst [vmem:[%s349 + $0x24] sm:%s341] %v368
                  %v370 = vld [vmem:[%s348 + $0x50] sm:%s341]
                  %371 = vst [vmem:[%s349 + $0x28] sm:%s341] %v370
                  %v372 = vld [vmem:[%s348 + $0x58] sm:%s341]
                  %373 = vst [vmem:[%s349 + $0x2c] sm:%s341] %v372
                  %v374 = vld [vmem:[%s348 + $0x60] sm:%s341]
                  %375 = vst [vmem:[%s349 + $0x30] sm:%s341] %v374
                  %v376 = vld [vmem:[%s348 + $0x68] sm:%s341]
                  %377 = vst [vmem:[%s349 + $0x34] sm:%s341] %v376
                  %v378 = vld [vmem:[%s348 + $0x70] sm:%s341]
                  %379 = vst [vmem:[%s349 + $0x38] sm:%s341] %v378
                  %v380 = vld [vmem:[%s348 + $0x78] sm:%s341]
                  %381 = vst [vmem:[%s349 + $0x3c] sm:%s341] %v380
                  %v382 = vld [vmem:[%s348 + $0x80] sm:%s341]
                  %383 = vst [vmem:[%s349 + $0x40] sm:%s341] %v382
                  %v384 = vld [vmem:[%s348 + $0x88] sm:%s341]
                  %385 = vst [vmem:[%s349 + $0x44] sm:%s341] %v384
                  %v386 = vld [vmem:[%s348 + $0x90] sm:%s341]
                  %387 = vst [vmem:[%s349 + $0x48] sm:%s341] %v386
                  %v388 = vld [vmem:[%s348 + $0x98] sm:%s341]
                  %389 = vst [vmem:[%s349 + $0x4c] sm:%s341] %v388
                  %v390 = vld [vmem:[%s348 + $0xa0] sm:%s341]
                  %391 = vst [vmem:[%s349 + $0x50] sm:%s341] %v390
                  %v392 = vld [vmem:[%s348 + $0xa8] sm:%s341]
                  %393 = vst [vmem:[%s349 + $0x54] sm:%s341] %v392
                  %v394 = vld [vmem:[%s348 + $0xb0] sm:%s341]
                  %395 = vst [vmem:[%s349 + $0x58] sm:%s341] %v394
                  %v396 = vld [vmem:[%s348 + $0xb8] sm:%s341]
                  %397 = vst [vmem:[%s349 + $0x5c] sm:%s341] %v396
                  %v398 = vld [vmem:[%s348 + $0xc0] sm:%s341]
                  %399 = vst [vmem:[%s349 + $0x60] sm:%s341] %v398
                  %v400 = vld [vmem:[%s348 + $0xc8] sm:%s341]
                  %401 = vst [vmem:[%s349 + $0x64] sm:%s341] %v400
                  %v402 = vld [vmem:[%s348 + $0xd0] sm:%s341]
                  %403 = vst [vmem:[%s349 + $0x68] sm:%s341] %v402
                  %v404 = vld [vmem:[%s348 + $0xd8] sm:%s341]
                  %405 = vst [vmem:[%s349 + $0x6c] sm:%s341] %v404
                  %v406 = vld [vmem:[%s348 + $0xe0] sm:%s341]
                  %407 = vst [vmem:[%s349 + $0x70] sm:%s341] %v406
                  %v408 = vld [vmem:[%s348 + $0xe8] sm:%s341]
                  %409 = vst [vmem:[%s349 + $0x74] sm:%s341] %v408
                  %v410 = vld [vmem:[%s348 + $0xf0] sm:%s341]
                  %411 = vst [vmem:[%s349 + $0x78] sm:%s341] %v410
                  %v412 = vld [vmem:[%s348 + $0xf8] sm:%s341]
                  %413 = vst [vmem:[%s349 + $0x7c] sm:%s341] %v412
                  %v414 = vld [vmem:[%s348 + $0x100] sm:%s341]
                  %415 = vst [vmem:[%s349 + $0x80] sm:%s341] %v414
                  %v416 = vld [vmem:[%s348 + $0x108] sm:%s341]
                  %417 = vst [vmem:[%s349 + $0x84] sm:%s341] %v416
                  %v418 = vld [vmem:[%s348 + $0x110] sm:%s341]
                  %419 = vst [vmem:[%s349 + $0x88] sm:%s341] %v418
                  %v420 = vld [vmem:[%s348 + $0x118] sm:%s341]
                  %421 = vst [vmem:[%s349 + $0x8c] sm:%s341] %v420
                  %v422 = vld [vmem:[%s348 + $0x120] sm:%s341]
                  %423 = vst [vmem:[%s349 + $0x90] sm:%s341] %v422
                  %v424 = vld [vmem:[%s348 + $0x128] sm:%s341]
                  %425 = vst [vmem:[%s349 + $0x94] sm:%s341] %v424
                  %v426 = vld [vmem:[%s348 + $0x130] sm:%s341]
                  %427 = vst [vmem:[%s349 + $0x98] sm:%s341] %v426
                  %v428 = vld [vmem:[%s348 + $0x138] sm:%s341]
                  %429 = vst [vmem:[%s349 + $0x9c] sm:%s341] %v428
                  %v430 = vld [vmem:[%s348 + $0x140] sm:%s341]
                  %431 = vst [vmem:[%s349 + $0xa0] sm:%s341] %v430
                  %v432 = vld [vmem:[%s348 + $0x148] sm:%s341]
                  %433 = vst [vmem:[%s349 + $0xa4] sm:%s341] %v432
                  %v434 = vld [vmem:[%s348 + $0x150] sm:%s341]
                  %435 = vst [vmem:[%s349 + $0xa8] sm:%s341] %v434
                  %v436 = vld [vmem:[%s348 + $0x158] sm:%s341]
                  %437 = vst [vmem:[%s349 + $0xac] sm:%s341] %v436
                  %v438 = vld [vmem:[%s348 + $0x160] sm:%s341]
                  %439 = vst [vmem:[%s349 + $0xb0] sm:%s341] %v438
                  %v440 = vld [vmem:[%s348 + $0x168] sm:%s341]
                  %441 = vst [vmem:[%s349 + $0xb4] sm:%s341] %v440
                  %v442 = vld [vmem:[%s348 + $0x170] sm:%s341]
                  %443 = vst [vmem:[%s349 + $0xb8] sm:%s341] %v442
                  %v444 = vld [vmem:[%s348 + $0x178] sm:%s341]
                  %445 = vst [vmem:[%s349 + $0xbc] sm:%s341] %v444
                  %v446 = vld [vmem:[%s348 + $0x180] sm:%s341]
                  %447 = vst [vmem:[%s349 + $0xc0] sm:%s341] %v446
                  %v448 = vld [vmem:[%s348 + $0x188] sm:%s341]
                  %449 = vst [vmem:[%s349 + $0xc4] sm:%s341] %v448
                  %v450 = vld [vmem:[%s348 + $0x190] sm:%s341]
                  %451 = vst [vmem:[%s349 + $0xc8] sm:%s341] %v450
                  %v452 = vld [vmem:[%s348 + $0x198] sm:%s341]
                  %453 = vst [vmem:[%s349 + $0xcc] sm:%s341] %v452
                  %v454 = vld [vmem:[%s348 + $0x1a0] sm:%s341]
                  %455 = vst [vmem:[%s349 + $0xd0] sm:%s341] %v454
                  %v456 = vld [vmem:[%s348 + $0x1a8] sm:%s341]
                  %457 = vst [vmem:[%s349 + $0xd4] sm:%s341] %v456
                  %v458 = vld [vmem:[%s348 + $0x1b0] sm:%s341]
                  %459 = vst [vmem:[%s349 + $0xd8] sm:%s341] %v458
                  %v460 = vld [vmem:[%s348 + $0x1b8] sm:%s341]
                  %461 = vst [vmem:[%s349 + $0xdc] sm:%s341] %v460
                  %v462 = vld [vmem:[%s348 + $0x1c0] sm:%s341]
                  %463 = vst [vmem:[%s349 + $0xe0] sm:%s341] %v462
                  %v464 = vld [vmem:[%s348 + $0x1c8] sm:%s341]
                  %465 = vst [vmem:[%s349 + $0xe4] sm:%s341] %v464
                  %v466 = vld [vmem:[%s348 + $0x1d0] sm:%s341]
                  %467 = vst [vmem:[%s349 + $0xe8] sm:%s341] %v466
                  %v468 = vld [vmem:[%s348 + $0x1d8] sm:%s341]
                  %469 = vst [vmem:[%s349 + $0xec] sm:%s341] %v468
                  %v470 = vld [vmem:[%s348 + $0x1e0] sm:%s341]
                  %471 = vst [vmem:[%s349 + $0xf0] sm:%s341] %v470
                  %v472 = vld [vmem:[%s348 + $0x1e8] sm:%s341]
                  %473 = vst [vmem:[%s349 + $0xf4] sm:%s341] %v472
                  %v474 = vld [vmem:[%s348 + $0x1f0] sm:%s341]
                  %475 = vst [vmem:[%s349 + $0xf8] sm:%s341] %v474
                  %v476 = vld [vmem:[%s348 + $0x1f8] sm:%s341]
                  %477 = vst [vmem:[%s349 + $0xfc] sm:%s341] %v476
                  %v478 = vld [vmem:[%s348 + $0x200] sm:%s341]
                  %479 = vst [vmem:[%s349 + $0x100] sm:%s341] %v478
                  %v480 = vld [vmem:[%s348 + $0x208] sm:%s341]
                  %481 = vst [vmem:[%s349 + $0x104] sm:%s341] %v480
                  %v482 = vld [vmem:[%s348 + $0x210] sm:%s341]
                  %483 = vst [vmem:[%s349 + $0x108] sm:%s341] %v482
                  %v484 = vld [vmem:[%s348 + $0x218] sm:%s341]
                  %485 = vst [vmem:[%s349 + $0x10c] sm:%s341] %v484
                $region67: #{forward_pallas.5} parent=54 // loop_footer
                  %s347 = sadd.s32 1, %s343
                $region68: #{forward_pallas.5} parent=54 // loop_footer_branch
                  %342 = sbr.rel target = $region64
                $region69: #{forward_pallas.5} parent=54 // loop_exit
                  _
              $region55: #{forward_pallas.5} parent=39 // pred_fallthru
                _
            $region40: #{forward_pallas.5} parent=35 // pred_fallthru
              _
            // Predicated region
            $region41: #{forward_pallas.5} parent=35 // pred_check
              _
            $region42: #{forward_pallas.5} parent=35 // pred_check_branch
              %183 = sbr.rel (0) target = $region44
            $region43: #{forward_pallas.5} parent=35 // pred_region
              %s185 = ssub.s32 16, 1
              loop: start=0, step=1, limit=1
              $region45: #{forward_pallas.5} parent=43 // loop_pre_header
                _
              $region46: #{forward_pallas.5} parent=43 // loop_header
                %s187 = sphi 0, %s191
                %p188 = scmp.ge.s32.totalorder %s187, 1
                %s192 = sphi %s177, %s177
                %s193 = sphi %s173, %s173
              $region47: #{forward_pallas.5} parent=43 // loop_header_branch
                %190 = sbr.rel (%p188) target = $region51
              $region48: #{forward_pallas.5} parent=43 // loop_body
                %v194 = vld [vmem:[%s192] sm:%s185]
                %195 = vst [vmem:[%s193] sm:%s185] %v194
                %v196 = vld [vmem:[%s192 + $0x8] sm:%s185]
                %197 = vst [vmem:[%s193 + $0x4] sm:%s185] %v196
                %v198 = vld [vmem:[%s192 + $0x10] sm:%s185]
                %199 = vst [vmem:[%s193 + $0x8] sm:%s185] %v198
                %v200 = vld [vmem:[%s192 + $0x18] sm:%s185]
                %201 = vst [vmem:[%s193 + $0xc] sm:%s185] %v200
                %v202 = vld [vmem:[%s192 + $0x20] sm:%s185]
                %203 = vst [vmem:[%s193 + $0x10] sm:%s185] %v202
                %v204 = vld [vmem:[%s192 + $0x28] sm:%s185]
                %205 = vst [vmem:[%s193 + $0x14] sm:%s185] %v204
                %v206 = vld [vmem:[%s192 + $0x30] sm:%s185]
                %207 = vst [vmem:[%s193 + $0x18] sm:%s185] %v206
                %v208 = vld [vmem:[%s192 + $0x38] sm:%s185]
                %209 = vst [vmem:[%s193 + $0x1c] sm:%s185] %v208
                %v210 = vld [vmem:[%s192 + $0x40] sm:%s185]
                %211 = vst [vmem:[%s193 + $0x20] sm:%s185] %v210
                %v212 = vld [vmem:[%s192 + $0x48] sm:%s185]
                %213 = vst [vmem:[%s193 + $0x24] sm:%s185] %v212
                %v214 = vld [vmem:[%s192 + $0x50] sm:%s185]
                %215 = vst [vmem:[%s193 + $0x28] sm:%s185] %v214
                %v216 = vld [vmem:[%s192 + $0x58] sm:%s185]
                %217 = vst [vmem:[%s193 + $0x2c] sm:%s185] %v216
                %v218 = vld [vmem:[%s192 + $0x60] sm:%s185]
                %219 = vst [vmem:[%s193 + $0x30] sm:%s185] %v218
                %v220 = vld [vmem:[%s192 + $0x68] sm:%s185]
                %221 = vst [vmem:[%s193 + $0x34] sm:%s185] %v220
                %v222 = vld [vmem:[%s192 + $0x70] sm:%s185]
                %223 = vst [vmem:[%s193 + $0x38] sm:%s185] %v222
                %v224 = vld [vmem:[%s192 + $0x78] sm:%s185]
                %225 = vst [vmem:[%s193 + $0x3c] sm:%s185] %v224
                %v226 = vld [vmem:[%s192 + $0x80] sm:%s185]
                %227 = vst [vmem:[%s193 + $0x40] sm:%s185] %v226
                %v228 = vld [vmem:[%s192 + $0x88] sm:%s185]
                %229 = vst [vmem:[%s193 + $0x44] sm:%s185] %v228
                %v230 = vld [vmem:[%s192 + $0x90] sm:%s185]
                %231 = vst [vmem:[%s193 + $0x48] sm:%s185] %v230
                %v232 = vld [vmem:[%s192 + $0x98] sm:%s185]
                %233 = vst [vmem:[%s193 + $0x4c] sm:%s185] %v232
                %v234 = vld [vmem:[%s192 + $0xa0] sm:%s185]
                %235 = vst [vmem:[%s193 + $0x50] sm:%s185] %v234
                %v236 = vld [vmem:[%s192 + $0xa8] sm:%s185]
                %237 = vst [vmem:[%s193 + $0x54] sm:%s185] %v236
                %v238 = vld [vmem:[%s192 + $0xb0] sm:%s185]
                %239 = vst [vmem:[%s193 + $0x58] sm:%s185] %v238
                %v240 = vld [vmem:[%s192 + $0xb8] sm:%s185]
                %241 = vst [vmem:[%s193 + $0x5c] sm:%s185] %v240
                %v242 = vld [vmem:[%s192 + $0xc0] sm:%s185]
                %243 = vst [vmem:[%s193 + $0x60] sm:%s185] %v242
                %v244 = vld [vmem:[%s192 + $0xc8] sm:%s185]
                %245 = vst [vmem:[%s193 + $0x64] sm:%s185] %v244
                %v246 = vld [vmem:[%s192 + $0xd0] sm:%s185]
                %247 = vst [vmem:[%s193 + $0x68] sm:%s185] %v246
                %v248 = vld [vmem:[%s192 + $0xd8] sm:%s185]
                %249 = vst [vmem:[%s193 + $0x6c] sm:%s185] %v248
                %v250 = vld [vmem:[%s192 + $0xe0] sm:%s185]
                %251 = vst [vmem:[%s193 + $0x70] sm:%s185] %v250
                %v252 = vld [vmem:[%s192 + $0xe8] sm:%s185]
                %253 = vst [vmem:[%s193 + $0x74] sm:%s185] %v252
                %v254 = vld [vmem:[%s192 + $0xf0] sm:%s185]
                %255 = vst [vmem:[%s193 + $0x78] sm:%s185] %v254
                %v256 = vld [vmem:[%s192 + $0xf8] sm:%s185]
                %257 = vst [vmem:[%s193 + $0x7c] sm:%s185] %v256
                %v258 = vld [vmem:[%s192 + $0x100] sm:%s185]
                %259 = vst [vmem:[%s193 + $0x80] sm:%s185] %v258
                %v260 = vld [vmem:[%s192 + $0x108] sm:%s185]
                %261 = vst [vmem:[%s193 + $0x84] sm:%s185] %v260
                %v262 = vld [vmem:[%s192 + $0x110] sm:%s185]
                %263 = vst [vmem:[%s193 + $0x88] sm:%s185] %v262
                %v264 = vld [vmem:[%s192 + $0x118] sm:%s185]
                %265 = vst [vmem:[%s193 + $0x8c] sm:%s185] %v264
                %v266 = vld [vmem:[%s192 + $0x120] sm:%s185]
                %267 = vst [vmem:[%s193 + $0x90] sm:%s185] %v266
                %v268 = vld [vmem:[%s192 + $0x128] sm:%s185]
                %269 = vst [vmem:[%s193 + $0x94] sm:%s185] %v268
                %v270 = vld [vmem:[%s192 + $0x130] sm:%s185]
                %271 = vst [vmem:[%s193 + $0x98] sm:%s185] %v270
                %v272 = vld [vmem:[%s192 + $0x138] sm:%s185]
                %273 = vst [vmem:[%s193 + $0x9c] sm:%s185] %v272
                %v274 = vld [vmem:[%s192 + $0x140] sm:%s185]
                %275 = vst [vmem:[%s193 + $0xa0] sm:%s185] %v274
                %v276 = vld [vmem:[%s192 + $0x148] sm:%s185]
                %277 = vst [vmem:[%s193 + $0xa4] sm:%s185] %v276
                %v278 = vld [vmem:[%s192 + $0x150] sm:%s185]
                %279 = vst [vmem:[%s193 + $0xa8] sm:%s185] %v278
                %v280 = vld [vmem:[%s192 + $0x158] sm:%s185]
                %281 = vst [vmem:[%s193 + $0xac] sm:%s185] %v280
                %v282 = vld [vmem:[%s192 + $0x160] sm:%s185]
                %283 = vst [vmem:[%s193 + $0xb0] sm:%s185] %v282
                %v284 = vld [vmem:[%s192 + $0x168] sm:%s185]
                %285 = vst [vmem:[%s193 + $0xb4] sm:%s185] %v284
                %v286 = vld [vmem:[%s192 + $0x170] sm:%s185]
                %287 = vst [vmem:[%s193 + $0xb8] sm:%s185] %v286
                %v288 = vld [vmem:[%s192 + $0x178] sm:%s185]
                %289 = vst [vmem:[%s193 + $0xbc] sm:%s185] %v288
                %v290 = vld [vmem:[%s192 + $0x180] sm:%s185]
                %291 = vst [vmem:[%s193 + $0xc0] sm:%s185] %v290
                %v292 = vld [vmem:[%s192 + $0x188] sm:%s185]
                %293 = vst [vmem:[%s193 + $0xc4] sm:%s185] %v292
                %v294 = vld [vmem:[%s192 + $0x190] sm:%s185]
                %295 = vst [vmem:[%s193 + $0xc8] sm:%s185] %v294
                %v296 = vld [vmem:[%s192 + $0x198] sm:%s185]
                %297 = vst [vmem:[%s193 + $0xcc] sm:%s185] %v296
                %v298 = vld [vmem:[%s192 + $0x1a0] sm:%s185]
                %299 = vst [vmem:[%s193 + $0xd0] sm:%s185] %v298
                %v300 = vld [vmem:[%s192 + $0x1a8] sm:%s185]
                %301 = vst [vmem:[%s193 + $0xd4] sm:%s185] %v300
                %v302 = vld [vmem:[%s192 + $0x1b0] sm:%s185]
                %303 = vst [vmem:[%s193 + $0xd8] sm:%s185] %v302
                %v304 = vld [vmem:[%s192 + $0x1b8] sm:%s185]
                %305 = vst [vmem:[%s193 + $0xdc] sm:%s185] %v304
                %v306 = vld [vmem:[%s192 + $0x1c0] sm:%s185]
                %307 = vst [vmem:[%s193 + $0xe0] sm:%s185] %v306
                %v308 = vld [vmem:[%s192 + $0x1c8] sm:%s185]
                %309 = vst [vmem:[%s193 + $0xe4] sm:%s185] %v308
                %v310 = vld [vmem:[%s192 + $0x1d0] sm:%s185]
                %311 = vst [vmem:[%s193 + $0xe8] sm:%s185] %v310
                %v312 = vld [vmem:[%s192 + $0x1d8] sm:%s185]
                %313 = vst [vmem:[%s193 + $0xec] sm:%s185] %v312
                %v314 = vld [vmem:[%s192 + $0x1e0] sm:%s185]
                %315 = vst [vmem:[%s193 + $0xf0] sm:%s185] %v314
                %v316 = vld [vmem:[%s192 + $0x1e8] sm:%s185]
                %317 = vst [vmem:[%s193 + $0xf4] sm:%s185] %v316
                %v318 = vld [vmem:[%s192 + $0x1f0] sm:%s185]
                %319 = vst [vmem:[%s193 + $0xf8] sm:%s185] %v318
                %v320 = vld [vmem:[%s192 + $0x1f8] sm:%s185]
                %321 = vst [vmem:[%s193 + $0xfc] sm:%s185] %v320
                %v322 = vld [vmem:[%s192 + $0x200] sm:%s185]
                %323 = vst [vmem:[%s193 + $0x100] sm:%s185] %v322
                %v324 = vld [vmem:[%s192 + $0x208] sm:%s185]
                %325 = vst [vmem:[%s193 + $0x104] sm:%s185] %v324
                %v326 = vld [vmem:[%s192 + $0x210] sm:%s185]
                %327 = vst [vmem:[%s193 + $0x108] sm:%s185] %v326
                %v328 = vld [vmem:[%s192 + $0x218] sm:%s185]
                %329 = vst [vmem:[%s193 + $0x10c] sm:%s185] %v328
              $region49: #{forward_pallas.5} parent=43 // loop_footer
                %s191 = sadd.s32 1, %s187
              $region50: #{forward_pallas.5} parent=43 // loop_footer_branch
                %186 = sbr.rel target = $region46
              $region51: #{forward_pallas.5} parent=43 // loop_exit
                _
            $region44: #{forward_pallas.5} parent=35 // pred_fallthru
              _
          $region36: #{forward_pallas.5} parent=31 // pred_fallthru
            _
          %486 = vnop
        $region32: #{forward_pallas.5} parent=27 // pred_fallthru
          _
      $region28: #{forward_pallas.5} parent=5 // pred_fallthru
        _
      %p487 = scmp.le.s32.totalorder 1, %s10
      %p488 = scmp.lt.s32.totalorder %s10, 17
      %p489 = pnand %p487, %p488
      %p490 = pneg %p489
      // Predicated region
      $region70: #{forward_pallas.5} parent=5 // pred_check
        _
      $region71: #{forward_pallas.5} parent=5 // pred_check_branch
        %492 = sbr.rel (%p489) target = $region73
      $region72: #{forward_pallas.5} parent=5 // pred_region
        %s493 = ssub.s32 %s10, 1
        %s494 = sand.u32 %s37, 1
        %s495 = sand.u32 %s37, 1
        %s496 = smul.addr %s495, 272
        %s497 = scalar_lea.vmem [#allocation3], %s496
        // Predicated region
        $region74: #{forward_pallas.5} parent=72 // pred_check
          %p498 = pneg %p50
        $region75: #{forward_pallas.5} parent=72 // pred_check_branch
          %500 = sbr.rel (%p498) target = $region77
        $region76: #{forward_pallas.5} parent=72 // pred_region
          _
        $region77: #{forward_pallas.5} parent=72 // pred_fallthru
          _
        %s501 = sand.u32 %s37, 1
        %s502 = sand.u32 %s37, 1
        %s503 = smul.addr %s502, 272
        %s504 = scalar_lea.vmem [#allocation3], %s503
        %p505 = pneg %p50
        %p506 = pneg %p47
        %p507 = pneg %p71
        %p508 = pneg %p68
        %p509 = pneg %p92
        %p510 = pneg %p89
        %p511 = pneg %p113
        %p512 = pneg %p110
        %p513 = pneg %p139
        %p514 = pneg %p136
        %s515 = sand.u32 %s126, 1
        %s516 = sand.u32 %s126, 1
        %s517 = smul.addr %s516, 16
        %s518 = scalar_lea.vmem [#allocation4], %s517
        %v520 = vld [vmem:[%s1] sm:$0xff]
        %v521 = vld [vmem:[%s1 + $0x8] sm:$0xff]
        %v522 = vld [vmem:[%s1 + $0x10] sm:$0xf]
        %v523 = vld [vmem:[%s1 + $0x14] sm:$0x33]
        %v524 = vld [vmem:[%s1 + $0x1c] sm:$0x33]
        %v525 = vld [vmem:[%s1 + $0x24] sm:$0x3]
        %v526 = vld [vmem:[%s497] sm:$0xf]
        %v527 = vld [vmem:[%s497 + $0x4] sm:$0xf]
        %v528 = vld [vmem:[%s497 + $0x8] sm:$0xf]
        %v529 = vld [vmem:[%s497 + $0xc] sm:$0xf]
        %v530 = vld [vmem:[%s497 + $0x10] sm:$0xf]
        %v531 = vld [vmem:[%s497 + $0x14] sm:$0xf]
        %v532 = vld [vmem:[%s497 + $0x18] sm:$0xf]
        %v533 = vld [vmem:[%s497 + $0x1c] sm:$0xf]
        %v534 = vld [vmem:[%s497 + $0x20] sm:$0xf]
        %v535 = vld [vmem:[%s497 + $0x24] sm:$0xf]
        %v536 = vld [vmem:[%s497 + $0x28] sm:$0xf]
        %v537 = vld [vmem:[%s497 + $0x2c] sm:$0xf]
        %v538 = vld [vmem:[%s497 + $0x30] sm:$0xf]
        %v539 = vld [vmem:[%s497 + $0x34] sm:$0xf]
        %v540 = vld [vmem:[%s497 + $0x38] sm:$0xf]
        %v541 = vld [vmem:[%s497 + $0x3c] sm:$0xf]
        %v542 = vld [vmem:[%s497 + $0x40] sm:$0xf]
        %v543 = vld [vmem:[%s497 + $0x44] sm:$0xf]
        %v544 = vld [vmem:[%s497 + $0x48] sm:$0xf]
        %v545 = vld [vmem:[%s497 + $0x4c] sm:$0xf]
        %v546 = vld [vmem:[%s497 + $0x50] sm:$0xf]
        %v547 = vld [vmem:[%s497 + $0x54] sm:$0xf]
        %v548 = vld [vmem:[%s497 + $0x58] sm:$0xf]
        %v549 = vld [vmem:[%s497 + $0x5c] sm:$0xf]
        %v550 = vld [vmem:[%s497 + $0x60] sm:$0xf]
        %v551 = vld [vmem:[%s497 + $0x64] sm:$0xf]
        %v552 = vld [vmem:[%s497 + $0x68] sm:$0xf]
        %v553 = vld [vmem:[%s497 + $0x6c] sm:$0xf]
        %v554 = vld [vmem:[%s497 + $0x70] sm:$0xf]
        %v555 = vld [vmem:[%s497 + $0x74] sm:$0xf]
        %v556 = vld [vmem:[%s497 + $0x78] sm:$0xf]
        %v557 = vld [vmem:[%s497 + $0x7c] sm:$0xf]
        %v558 = vld [vmem:[%s497 + $0x80] sm:$0xf]
        %v559 = vld [vmem:[%s497 + $0x84] sm:$0xf]
        %v560 = vld [vmem:[%s497 + $0x88] sm:$0xf]
        %v561 = vld [vmem:[%s497 + $0x8c] sm:$0xf]
        %v562 = vld [vmem:[%s497 + $0x90] sm:$0xf]
        %v563 = vld [vmem:[%s497 + $0x94] sm:$0xf]
        %v564 = vld [vmem:[%s497 + $0x98] sm:$0xf]
        %v565 = vld [vmem:[%s497 + $0x9c] sm:$0xf]
        %v566 = vld [vmem:[%s497 + $0xa0] sm:$0xf]
        %v567 = vld [vmem:[%s497 + $0xa4] sm:$0xf]
        %v568 = vld [vmem:[%s497 + $0xa8] sm:$0xf]
        %v569 = vld [vmem:[%s497 + $0xac] sm:$0xf]
        %v570 = vld [vmem:[%s497 + $0xb0] sm:$0xf]
        %v571 = vld [vmem:[%s497 + $0xb4] sm:$0xf]
        %v572 = vld [vmem:[%s497 + $0xb8] sm:$0xf]
        %v573 = vld [vmem:[%s497 + $0xbc] sm:$0xf]
        %v574 = vld [vmem:[%s497 + $0xc0] sm:$0xf]
        %v575 = vld [vmem:[%s497 + $0xc4] sm:$0xf]
        %v576 = vld [vmem:[%s497 + $0xc8] sm:$0xf]
        %v577 = vld [vmem:[%s497 + $0xcc] sm:$0xf]
        %v578 = vld [vmem:[%s497 + $0xd0] sm:$0xf]
        %v579 = vld [vmem:[%s497 + $0xd4] sm:$0xf]
        %v580 = vld [vmem:[%s497 + $0xd8] sm:$0xf]
        %v581 = vld [vmem:[%s497 + $0xdc] sm:$0xf]
        %v582 = vld [vmem:[%s497 + $0xe0] sm:$0xf]
        %v583 = vld [vmem:[%s497 + $0xe4] sm:$0xf]
        %v584 = vld [vmem:[%s497 + $0xe8] sm:$0xf]
        %v585 = vld [vmem:[%s497 + $0xec] sm:$0xf]
        %v586 = vld [vmem:[%s497 + $0xf0] sm:$0xf]
        %v587 = vld [vmem:[%s497 + $0xf4] sm:$0xf]
        %v588 = vld [vmem:[%s497 + $0xf8] sm:$0xf]
        %v589 = vld [vmem:[%s497 + $0xfc] sm:$0xf]
        %v590 = vld [vmem:[%s497 + $0x100] sm:$0xf]
        %v591 = vld [vmem:[%s497 + $0x104] sm:$0xf]
        %v592 = vld [vmem:[%s497 + $0x108] sm:$0xf]
        %v593 = vld [vmem:[%s497 + $0x10c] sm:$0x3]
        %v600 = vunpack.c.l.b16 %v520
        %v601 = vunpack.c.h.b16 %v520
        %v602 = vunpack.c.l.b16 %v521
        %v603 = vunpack.c.h.b16 %v521
        %v604 = vunpack.c.l.b16 %v522
        %v605 = vunpack.c.l.b16 %v523
        %v606 = vunpack.c.h.b16 %v523
        %v607 = vunpack.c.l.b16 %v524
        %v608 = vunpack.c.h.b16 %v524
        %v609 = vunpack.c.l.b16 %v525
        %v610 = vpack.c.b16 %v605, %v600
        %v611 = vpack.c.b16 %v606, %v601
        %v612 = vpack.c.b16 %v607, %v602
        %v613 = vpack.c.b16 %v608, %v603
        %v614 = vpack.c.b16 %v609, %v604
        %v687 = vunpack.c.l.b16 %v526
        %v688 = vunpack.c.l.b16 %v527
        %v689 = vunpack.c.l.b16 %v528
        %v690 = vunpack.c.l.b16 %v529
        %v691 = vunpack.c.l.b16 %v530
        %v692 = vunpack.c.l.b16 %v531
        %v693 = vunpack.c.l.b16 %v532
        %v694 = vunpack.c.l.b16 %v533
        %v695 = vunpack.c.l.b16 %v534
        %v696 = vunpack.c.l.b16 %v535
        %v697 = vunpack.c.l.b16 %v536
        %v698 = vunpack.c.l.b16 %v537
        %v699 = vunpack.c.l.b16 %v538
        %v700 = vunpack.c.l.b16 %v539
        %v701 = vunpack.c.l.b16 %v540
        %v702 = vunpack.c.l.b16 %v541
        %v703 = vunpack.c.l.b16 %v542
        %v704 = vunpack.c.l.b16 %v543
        %v705 = vunpack.c.l.b16 %v544
        %v706 = vunpack.c.l.b16 %v545
        %v707 = vunpack.c.l.b16 %v546
        %v708 = vunpack.c.l.b16 %v547
        %v709 = vunpack.c.l.b16 %v548
        %v710 = vunpack.c.l.b16 %v549
        %v711 = vunpack.c.l.b16 %v550
        %v712 = vunpack.c.l.b16 %v551
        %v713 = vunpack.c.l.b16 %v552
        %v714 = vunpack.c.l.b16 %v553
        %v715 = vunpack.c.l.b16 %v554
        %v716 = vunpack.c.l.b16 %v555
        %v717 = vunpack.c.l.b16 %v556
        %v718 = vunpack.c.l.b16 %v557
        %v719 = vunpack.c.l.b16 %v558
        %v720 = vunpack.c.l.b16 %v559
        %v721 = vunpack.c.l.b16 %v560
        %v722 = vunpack.c.l.b16 %v561
        %v723 = vunpack.c.l.b16 %v562
        %v724 = vunpack.c.l.b16 %v563
        %v725 = vunpack.c.l.b16 %v564
        %v726 = vunpack.c.l.b16 %v565
        %v727 = vunpack.c.l.b16 %v566
        %v728 = vunpack.c.l.b16 %v567
        %v729 = vunpack.c.l.b16 %v568
        %v730 = vunpack.c.l.b16 %v569
        %v731 = vunpack.c.l.b16 %v570
        %v732 = vunpack.c.l.b16 %v571
        %v733 = vunpack.c.l.b16 %v572
        %v734 = vunpack.c.l.b16 %v573
        %v735 = vunpack.c.l.b16 %v574
        %v736 = vunpack.c.l.b16 %v575
        %v737 = vunpack.c.l.b16 %v576
        %v738 = vunpack.c.l.b16 %v577
        %v739 = vunpack.c.l.b16 %v578
        %v740 = vunpack.c.l.b16 %v579
        %v741 = vunpack.c.l.b16 %v580
        %v742 = vunpack.c.l.b16 %v581
        %v743 = vunpack.c.l.b16 %v582
        %v744 = vunpack.c.l.b16 %v583
        %v745 = vunpack.c.l.b16 %v584
        %v746 = vunpack.c.l.b16 %v585
        %v747 = vunpack.c.l.b16 %v586
        %v748 = vunpack.c.l.b16 %v587
        %v749 = vunpack.c.l.b16 %v588
        %v750 = vunpack.c.l.b16 %v589
        %v751 = vunpack.c.l.b16 %v590
        %v752 = vunpack.c.l.b16 %v591
        %v753 = vunpack.c.l.b16 %v592
        %v754 = vunpack.c.l.b16 %v593
        %v755 = vpack.c.b16 %v688, %v687
        %v756 = vpack.c.b16 %v690, %v689
        %v757 = vpack.c.b16 %v692, %v691
        %v758 = vpack.c.b16 %v694, %v693
        %v759 = vpack.c.b16 %v696, %v695
        %v760 = vpack.c.b16 %v698, %v697
        %v761 = vpack.c.b16 %v700, %v699
        %v762 = vpack.c.b16 %v702, %v701
        %v763 = vpack.c.b16 %v704, %v703
        %v764 = vpack.c.b16 %v706, %v705
        %v765 = vpack.c.b16 %v708, %v707
        %v766 = vpack.c.b16 %v710, %v709
        %v767 = vpack.c.b16 %v712, %v711
        %v768 = vpack.c.b16 %v714, %v713
        %v769 = vpack.c.b16 %v716, %v715
        %v770 = vpack.c.b16 %v718, %v717
        %v771 = vpack.c.b16 %v720, %v719
        %v772 = vpack.c.b16 %v722, %v721
        %v773 = vpack.c.b16 %v724, %v723
        %v774 = vpack.c.b16 %v726, %v725
        %v775 = vpack.c.b16 %v728, %v727
        %v776 = vpack.c.b16 %v730, %v729
        %v777 = vpack.c.b16 %v732, %v731
        %v778 = vpack.c.b16 %v734, %v733
        %v779 = vpack.c.b16 %v736, %v735
        %v780 = vpack.c.b16 %v738, %v737
        %v781 = vpack.c.b16 %v740, %v739
        %v782 = vpack.c.b16 %v742, %v741
        %v783 = vpack.c.b16 %v744, %v743
        %v784 = vpack.c.b16 %v746, %v745
        %v785 = vpack.c.b16 %v748, %v747
        %v786 = vpack.c.b16 %v750, %v749
        %v787 = vpack.c.b16 %v752, %v751
        %v788 = vpack.c.b16 %v754, %v753
        %vm822 = vcmask 228352
        %v824 = vsel %vm822, %v614, 0
        %vm826 = vcmask 1045504
        %v828 = vsel %vm826, %v788, 0
        %830 = vmatpush.bf16.msra.mxu0 %v762
        %831 = vmatpush.bf16.msra.mxu0 %v761
        %832 = vmatpush.bf16.msra.mxu0 %v760
        %833 = vmatpush.bf16.msra.mxu0 %v759
        %834 = vmatpush.bf16.msra.mxu0 %v758
        %835 = vmatpush.bf16.msra.mxu0 %v757
        %836 = vmatpush.bf16.msra.mxu0 %v756
        %837 = vmatpush.bf16.msra.mxu0 %v755
        %838 = vmatmul.bf16.gmra.mxu0 %v610
        %v839 = vpop.f32.mrf.mxu0
        %v840 = vadd.f32 0.0, %v839
        %v841 = vpop.f32.mrf.mxu0
        %v842 = vadd.f32 0.0, %v841
        %843 = vdwg.mxu0
        %844 = vmatpush.bf16.msra.mxu0 %v770
        %845 = vmatpush.bf16.msra.mxu0 %v769
        %846 = vmatpush.bf16.msra.mxu0 %v768
        %847 = vmatpush.bf16.msra.mxu0 %v767
        %848 = vmatpush.bf16.msra.mxu0 %v766
        %849 = vmatpush.bf16.msra.mxu0 %v765
        %850 = vmatpush.bf16.msra.mxu0 %v764
        %851 = vmatpush.bf16.msra.mxu0 %v763
        %852 = vmatmul.bf16.gmra.mxu0 %v611
        %v853 = vpop.f32.mrf.mxu0
        %v854 = vadd.f32 %v840, %v853
        %v855 = vpop.f32.mrf.mxu0
        %v856 = vadd.f32 %v842, %v855
        %857 = vdwg.mxu0
        %858 = vmatpush.bf16.msra.mxu0 %v778
        %859 = vmatpush.bf16.msra.mxu0 %v777
        %860 = vmatpush.bf16.msra.mxu0 %v776
        %861 = vmatpush.bf16.msra.mxu0 %v775
        %862 = vmatpush.bf16.msra.mxu0 %v774
        %863 = vmatpush.bf16.msra.mxu0 %v773
        %864 = vmatpush.bf16.msra.mxu0 %v772
        %865 = vmatpush.bf16.msra.mxu0 %v771
        %866 = vmatmul.bf16.gmra.mxu0 %v612
        %v867 = vpop.f32.mrf.mxu0
        %v868 = vadd.f32 %v854, %v867
        %v869 = vpop.f32.mrf.mxu0
        %v870 = vadd.f32 %v856, %v869
        %871 = vdwg.mxu0
        %872 = vmatpush.bf16.msra.mxu0 %v786
        %873 = vmatpush.bf16.msra.mxu0 %v785
        %874 = vmatpush.bf16.msra.mxu0 %v784
        %875 = vmatpush.bf16.msra.mxu0 %v783
        %876 = vmatpush.bf16.msra.mxu0 %v782
        %877 = vmatpush.bf16.msra.mxu0 %v781
        %878 = vmatpush.bf16.msra.mxu0 %v780
        %879 = vmatpush.bf16.msra.mxu0 %v779
        %880 = vmatmul.bf16.gmra.mxu0 %v613
        %v881 = vpop.f32.mrf.mxu0
        %v882 = vadd.f32 %v868, %v881
        %v883 = vpop.f32.mrf.mxu0
        %v884 = vadd.f32 %v870, %v883
        %885 = vdwg.mxu0
        %886 = vmatpush.bf16.msra.mxu0 0
        %887 = vmatpush.bf16.msra.mxu0 0
        %888 = vmatpush.bf16.msra.mxu0 0
        %889 = vmatpush.bf16.msra.mxu0 0
        %890 = vmatpush.bf16.msra.mxu0 0
        %891 = vmatpush.bf16.msra.mxu0 0
        %892 = vmatpush.bf16.msra.mxu0 %v828
        %893 = vmatpush.bf16.msra.mxu0 %v787
        %894 = vmatmul.bf16.gmra.mxu0 %v824
        %v895 = vpop.f32.mrf.mxu0
        %v896 = vadd.f32 %v882, %v895
        %v897 = vpop.f32.mrf.mxu0
        %v898 = vadd.f32 %v884, %v897
        %899 = vdwg.mxu0
        %v900 = vld [vmem:[%s2] sm:$0xff]
        %v901 = vld [vmem:[%s2 + $0x8] sm:$0xf]
        %903 = vset.pattern.permute.xlu0 0
        %904 = vperm.xlu0 %903, %v900
        %v905 = vpop.permute.xlu0 %904
        %908 = vset.pattern.permute.xlu0 0
        %909 = vperm.xlu0 %908, %v901
        %v910 = vpop.permute.xlu0 %909
        %v912 = vmul.f32 %v896, %v905
        %v913 = vmul.f32 %v898, %v910
        %v914 = vld [vmem:[%s3] sm:$0xff]
        %v915 = vld [vmem:[%s3 + $0x8] sm:$0xf]
        %917 = vset.pattern.permute.xlu0 0
        %918 = vperm.xlu0 %917, %v914
        %v919 = vpop.permute.xlu0 %918
        %922 = vset.pattern.permute.xlu0 0
        %923 = vperm.xlu0 %922, %v915
        %v924 = vpop.permute.xlu0 %923
        %v926 = vadd.f32 %v912, %v919
        %v927 = vadd.f32 %v913, %v924
        %v928 = vmax.f32 %v926, 0.0
        %v929 = vmax.f32 %v927, 0.0
        %p930 = scmp.eq.s32.totalorder %s20, 0
        // Predicated region
        $region78: #{forward_pallas.5} parent=72 // pred_check
          %p931 = pneg %p930
        $region79: #{forward_pallas.5} parent=72 // pred_check_branch
          %933 = sbr.rel (%p931) target = $region81
        $region80: #{forward_pallas.5} parent=72 // pred_region
          %934 = vst [vmem:[#allocation2] sm:$0xff] %v928
          %935 = vst [vmem:[#allocation2 + $0x8] sm:$0xf] %v929
        $region81: #{forward_pallas.5} parent=72 // pred_fallthru
          _
        %p936 = scmp.gt.s32.totalorder %s20, 0
        // Predicated region
        $region82: #{forward_pallas.5} parent=72 // pred_check
          %p937 = pneg %p936
        $region83: #{forward_pallas.5} parent=72 // pred_check_branch
          %939 = sbr.rel (%p937) target = $region85
        $region84: #{forward_pallas.5} parent=72 // pred_region
          %v940 = vld [vmem:[#allocation2] sm:$0xff]
          %v941 = vld [vmem:[#allocation2 + $0x8] sm:$0xf]
          %v942 = vmax.f32 %v940, %v928
          %v943 = vmax.f32 %v941, %v929
          %944 = vst [vmem:[#allocation2] sm:$0xff] %v942
          %945 = vst [vmem:[#allocation2 + $0x8] sm:$0xf] %v943
        $region85: #{forward_pallas.5} parent=72 // pred_fallthru
          _
        %p946 = scmp.eq.s32.totalorder %s20, 7
        // Predicated region
        $region86: #{forward_pallas.5} parent=72 // pred_check
          %p947 = pneg %p946
        $region87: #{forward_pallas.5} parent=72 // pred_check_branch
          %949 = sbr.rel (%p947) target = $region89
        $region88: #{forward_pallas.5} parent=72 // pred_region
          %v950 = vld [vmem:[#allocation2] sm:$0xff]
          %v951 = vld [vmem:[#allocation2 + $0x8] sm:$0xf]
          %952 = vst [vmem:[%s518] sm:$0xff] %v950
          %953 = vst [vmem:[%s518 + $0x8] sm:$0xf] %v951
        $region89: #{forward_pallas.5} parent=72 // pred_fallthru
          _
        %s954 = sand.u32 %s126, 1
        %s955 = sand.u32 %s126, 1
        %s956 = smul.addr %s955, 16
        %s957 = scalar_lea.vmem [#allocation4], %s956
        // Predicated region
        $region90: #{forward_pallas.5} parent=72 // pred_check
          %p958 = pneg %p136
        $region91: #{forward_pallas.5} parent=72 // pred_check_branch
          %960 = sbr.rel (%p958) target = $region93
        $region92: #{forward_pallas.5} parent=72 // pred_region
          %s961 = smul.addr %s19, 8
          %s962 = scalar_lea.vmem %s4, %s961
          // Predicated region
          $region94: #{forward_pallas.5} parent=92 // pred_check
            _
          $region95: #{forward_pallas.5} parent=92 // pred_check_branch
            %964 = sbr.rel (0) target = $region97
          $region96: #{forward_pallas.5} parent=92 // pred_region
            // Predicated region
            $region98: #{forward_pallas.5} parent=96 // pred_check
              _
            $region99: #{forward_pallas.5} parent=96 // pred_check_branch
              %966 = sbr.rel (0) target = $region101
            $region100: #{forward_pallas.5} parent=96 // pred_region
              // Predicated region
              $region113: #{forward_pallas.5} parent=100 // pred_check
                _
              $region114: #{forward_pallas.5} parent=100 // pred_check_branch
                %984 = sbr.rel (0) target = $region116
              $region115: #{forward_pallas.5} parent=100 // pred_region
                loop: start=0, step=1, limit=1
                $region117: #{forward_pallas.5} parent=115 // loop_pre_header
                  _
                $region118: #{forward_pallas.5} parent=115 // loop_header
                  %s986 = sphi 0, %s990
                  %p987 = scmp.ge.s32.totalorder %s986, 1
                  %s991 = sphi %s957, %s957
                  %s992 = sphi %s962, %s962
                $region119: #{forward_pallas.5} parent=115 // loop_header_branch
                  %989 = sbr.rel (%p987) target = $region123
                $region120: #{forward_pallas.5} parent=115 // loop_body
                  %v993 = vld [vmem:[%s991] sm:$0xff]
                  %994 = vst [vmem:[%s992] sm:$0xff] %v993
                  %v995 = vld [vmem:[%s991 + $0x8] sm:$0xff]
                  %996 = vst [vmem:[%s992 + $0x10] sm:$0xff] %v995
                $region121: #{forward_pallas.5} parent=115 // loop_footer
                  %s990 = sadd.s32 1, %s986
                $region122: #{forward_pallas.5} parent=115 // loop_footer_branch
                  %985 = sbr.rel target = $region118
                $region123: #{forward_pallas.5} parent=115 // loop_exit
                  _
              $region116: #{forward_pallas.5} parent=100 // pred_fallthru
                _
              // Predicated region
              $region124: #{forward_pallas.5} parent=100 // pred_check
                _
              $region125: #{forward_pallas.5} parent=100 // pred_check_branch
                %998 = sbr.rel target = $region127
              $region126: #{forward_pallas.5} parent=100 // pred_region
                _
              $region127: #{forward_pallas.5} parent=100 // pred_fallthru
                _
            $region101: #{forward_pallas.5} parent=96 // pred_fallthru
              _
            // Predicated region
            $region102: #{forward_pallas.5} parent=96 // pred_check
              _
            $region103: #{forward_pallas.5} parent=96 // pred_check_branch
              %968 = sbr.rel target = $region105
            $region104: #{forward_pallas.5} parent=96 // pred_region
              %s970 = ssub.s32 256, 1
              loop: start=0, step=1, limit=1
              $region106: #{forward_pallas.5} parent=104 // loop_pre_header
                _
              $region107: #{forward_pallas.5} parent=104 // loop_header
                %s972 = sphi 0, %s976
                %p973 = scmp.ge.s32.totalorder %s972, 1
                %s977 = sphi %s957, %s957
                %s978 = sphi %s962, %s962
              $region108: #{forward_pallas.5} parent=104 // loop_header_branch
                %975 = sbr.rel (%p973) target = $region112
              $region109: #{forward_pallas.5} parent=104 // loop_body
                %v979 = vld [vmem:[%s977] sm:%s970]
                %980 = vst [vmem:[%s978] sm:%s970] %v979
                %v981 = vld [vmem:[%s977 + $0x8] sm:%s970]
                %982 = vst [vmem:[%s978 + $0x10] sm:%s970] %v981
              $region110: #{forward_pallas.5} parent=104 // loop_footer
                %s976 = sadd.s32 1, %s972
              $region111: #{forward_pallas.5} parent=104 // loop_footer_branch
                %971 = sbr.rel target = $region107
              $region112: #{forward_pallas.5} parent=104 // loop_exit
                _
            $region105: #{forward_pallas.5} parent=96 // pred_fallthru
              _
          $region97: #{forward_pallas.5} parent=92 // pred_fallthru
            _
          %999 = vnop
        $region93: #{forward_pallas.5} parent=72 // pred_fallthru
          _
      $region73: #{forward_pallas.5} parent=5 // pred_fallthru
        _
      %p1000 = scmp.le.s32.totalorder 2, %s10
      // Predicated region
      $region128: #{forward_pallas.5} parent=5 // pred_check
        %p1001 = pneg %p1000
      $region129: #{forward_pallas.5} parent=5 // pred_check_branch
        %1003 = sbr.rel (%p1001) target = $region131
      $region130: #{forward_pallas.5} parent=5 // pred_region
        %s1004 = ssub.s32 %s10, 2
        // Predicated region
        $region132: #{forward_pallas.5} parent=130 // pred_check
          %p1005 = pneg %p142
        $region133: #{forward_pallas.5} parent=130 // pred_check_branch
          %1007 = sbr.rel (%p1005) target = $region135
        $region134: #{forward_pallas.5} parent=130 // pred_region
          %s1008 = sand.u32 %s127, 1
          %s1009 = sand.u32 %s127, 1
          %s1010 = smul.addr %s1009, 16
          %s1011 = scalar_lea.vmem [#allocation4], %s1010
        $region135: #{forward_pallas.5} parent=130 // pred_fallthru
          _
      $region131: #{forward_pallas.5} parent=5 // pred_fallthru
        _
    $region6: #{forward_pallas.5} parent=1 // loop_footer
      %s14 = sadd.s32 1, %s10
    $region7: #{forward_pallas.5} parent=1 // loop_footer_branch
      %9 = sbr.rel target = $region3
    $region8: #{forward_pallas.5} parent=1 // loop_exit
      _

// kernel: forward_pallas.6
$region0: #{forward_pallas.6}
  #allocation0 [shape = 'u32[]', space=smem, size = 0x4, offset = 0x4, fixed_abs, tag = 'smem constant byte address 0x4 - core index']
  #allocation1 [shape = 'u32[72,128]{1,0:T(1,128)}', space=vmem, size = 0x9000, scoped, tag = 'internal scratch']
  #allocation2 [shape = 'f32[4,4]{1,0:T(4,128)}', space=vmem, size = 0x800, scoped, tag = 'scratch operand']
  %s0 = inlined_call_operand.vmem [shape: f32[4,4,64], index: 0, kind: input, shape index: {}]
  %s1 = inlined_call_operand.vmem [shape: f32[4,4,64], index: 1, kind: input, shape index: {}]
  %s2 = inlined_call_operand.vmem [shape: f32[4,4,64], index: 2, kind: input, shape index: {}]
  %s3 = inlined_call_operand.vmem [shape: f32[3,4], index: 3, kind: input, shape index: {}]
  %s4 = inlined_call_operand.vmem [shape: f32[3,1], index: 4, kind: input, shape index: {}]
  %s5 = inlined_call_operand.vmem [shape: f32[3,4], index: 5, kind: output, shape index: {}]
  %s6 = sld [smem:[#allocation0]]
  $region38: #{forward_pallas.6} parent=0
    _
  %s8 = ssub.s32 1, %s6
  %s9 = scalar_select 0, %s8, %s6
  // Predicated region
  $region2: #{forward_pallas.6} parent=0 // pred_check
    _
  $region3: #{forward_pallas.6} parent=0 // pred_check_branch
    %11 = sbr.rel (0) target = $region5
  $region4: #{forward_pallas.6} parent=0 // pred_region
    _
  $region5: #{forward_pallas.6} parent=0 // pred_fallthru
    _
  // Predicated region
  $region6: #{forward_pallas.6} parent=0 // pred_check
    _
  $region7: #{forward_pallas.6} parent=0 // pred_check_branch
    %13 = sbr.rel (0) target = $region9
  $region8: #{forward_pallas.6} parent=0 // pred_region
    _
  $region9: #{forward_pallas.6} parent=0 // pred_fallthru
    _
  // Predicated region
  $region10: #{forward_pallas.6} parent=0 // pred_check
    _
  $region11: #{forward_pallas.6} parent=0 // pred_check_branch
    %15 = sbr.rel (0) target = $region13
  $region12: #{forward_pallas.6} parent=0 // pred_region
    _
  $region13: #{forward_pallas.6} parent=0 // pred_fallthru
    _
  // Predicated region
  $region14: #{forward_pallas.6} parent=0 // pred_check
    _
  $region15: #{forward_pallas.6} parent=0 // pred_check_branch
    %17 = sbr.rel (0) target = $region17
  $region16: #{forward_pallas.6} parent=0 // pred_region
    _
  $region17: #{forward_pallas.6} parent=0 // pred_fallthru
    _
  // Predicated region
  $region18: #{forward_pallas.6} parent=0 // pred_check
    _
  $region19: #{forward_pallas.6} parent=0 // pred_check_branch
    %19 = sbr.rel (0) target = $region21
  $region20: #{forward_pallas.6} parent=0 // pred_region
    _
  $region21: #{forward_pallas.6} parent=0 // pred_fallthru
    _
  %v20 = vld [vmem:[%s0] sm:$0xf]
  %v21 = vld [vmem:[%s0 + $0x4] sm:$0xf]
  %v22 = vld [vmem:[%s0 + $0x8] sm:$0xf]
  %v23 = vld [vmem:[%s0 + $0xc] sm:$0xf]
  %v24 = vld [vmem:[%s1] sm:$0xf]
  %v25 = vld [vmem:[%s1 + $0x4] sm:$0xf]
  %v26 = vld [vmem:[%s1 + $0x8] sm:$0xf]
  %v27 = vld [vmem:[%s1 + $0xc] sm:$0xf]
  %v28 = vld [vmem:[%s2] sm:$0xf]
  %v29 = vld [vmem:[%s2 + $0x4] sm:$0xf]
  %v30 = vld [vmem:[%s2 + $0x8] sm:$0xf]
  %v31 = vld [vmem:[%s2 + $0xc] sm:$0xf]
  %vm32 = vcmask 519168
  %v33 = vsel %vm32, %v24, 0.0
  %v34 = vsel %vm32, %v25, 0.0
  %v35 = vadd.f32 %v33, %v34
  %v36 = vsel %vm32, %v26, 0.0
  %v37 = vadd.f32 %v35, %v36
  %v38 = vsel %vm32, %v27, 0.0
  %v39 = vadd.f32 %v37, %v38
  %v40 = vrcp.pop 4.0
  %v41 = vmul.f32 4.0, %v40
  %v42 = vsub.f32 1.0, %v41
  %v43 = vmul.f32 %v40, %v42
  %v44 = vadd.f32 %v40, %v43
  %vm45 = vweird.f32 %v40
  %v46 = vsel %vm45, %v40, %v44
  %v47 = vmul.f32 %v39, %v46
  %v48 = vsel %vm32, %v28, 0.0
  %v49 = vsel %vm32, %v29, 0.0
  %v50 = vadd.f32 %v48, %v49
  %v51 = vsel %vm32, %v30, 0.0
  %v52 = vadd.f32 %v50, %v51
  %v53 = vsel %vm32, %v31, 0.0
  %v54 = vadd.f32 %v52, %v53
  %v55 = vmul.f32 %v54, %v46
  %v56 = vmul.f32 %v47, 0.45
  %v57 = vmul.f32 %v55, 0.4
  %v58 = vadd.f32 %v56, %v57
  %v59 = vmul.f32 %v58, 0.15
  %v60 = vadd.f32 %v59, 1.0
  %v61 = vrcp.pop %v60
  %v62 = vmul.f32 %v60, %v61
  %v63 = vsub.f32 1.0, %v62
  %v64 = vmul.f32 %v61, %v63
  %v65 = vadd.f32 %v61, %v64
  %vm66 = vweird.f32 %v60
  %vm67 = vweird.f32 %v61
  %vm68 = vmor %vm66, %vm67
  %v69 = vsel %vm68, %v61, %v65
  %v70 = vand.u32 2147483647, %v60
  %vm71 = vcmp.eq.f32.partialorder %v70, 8.507059e+37
  %v72 = vand.u32 %v60, 2147483648
  %v73 = vor.u32 1.1754944e-38, %v72
  %v74 = vsel %vm71, %v73, %v69
  %v75 = vmul.f32 %v20, %v74
  %v76 = vmul.f32 %v21, %v74
  %v77 = vmul.f32 %v22, %v74
  %v78 = vmul.f32 %v23, %v74
  %v79 = vsel %vm32, %v75, 0.0
  %80 = vadd.xlane.f32.xlu0 %v79
  %v81 = vpop.xlane.xlu0 %80
  %v82 = vsel %vm32, %v76, 0.0
  %83 = vadd.xlane.f32.xlu0 %v82
  %v84 = vpop.xlane.xlu0 %83
  %v85 = vsel %vm32, %v77, 0.0
  %86 = vadd.xlane.f32.xlu0 %v85
  %v87 = vpop.xlane.xlu0 %86
  %v88 = vsel %vm32, %v78, 0.0
  %89 = vadd.xlane.f32.xlu0 %v88
  %v90 = vpop.xlane.xlu0 %89
  %p91 = scmp.eq.s32.totalorder 0, 0
  // Predicated region
  $region22: #{forward_pallas.6} parent=0 // pred_check
    %p92 = pneg %p91
  $region23: #{forward_pallas.6} parent=0 // pred_check_branch
    %94 = sbr.rel (%p92) target = $region25
  $region24: #{forward_pallas.6} parent=0 // pred_region
    %vm95 = vcmask 27648
    %96 = vst.msk [vmem:[#allocation2] sm:$0xf] %vm95, 0.0
  $region25: #{forward_pallas.6} parent=0 // pred_fallthru
    _
  %v97 = vld [vmem:[#allocation2] sm:$0xf]
  %v102 = vlaneseq
  %v103 = vand.u32 %v102, 127
  %v104 = vperm.slane %v81, %v103
  %v105 = vperm.slane %v84, %v103
  %v106 = vperm.slane %v87, %v103
  %v107 = vperm.slane %v90, %v103
  %vm108 = vcmask 1041409
  %v109 = vsel %vm108, %v105, %v104
  %vm110 = vcmask 1042434
  %v111 = vsel %vm110, %v106, %v109
  %vm112 = vcmask 1043459
  %v113 = vsel %vm112, %v107, %v111
  %v115 = vadd.f32 %v97, %v113
  %vm116 = vcmask 27648
  %117 = vst.msk [vmem:[#allocation2] sm:$0xf] %vm116, %v115
  // Predicated region
  $region26: #{forward_pallas.6} parent=0 // pred_check
    %p118 = pneg %p91
  $region27: #{forward_pallas.6} parent=0 // pred_check_branch
    %120 = sbr.rel (%p118) target = $region29
  $region28: #{forward_pallas.6} parent=0 // pred_region
    %v121 = vld [vmem:[#allocation2] sm:$0xf]
    %v122 = vmul.f32 %v121, 0.015625
    %v123 = vld [vmem:[%s3] sm:$0x7]
    %v124 = vld [vmem:[%s4] sm:$0x7]
    %126 = vset.pattern.permute.xlu0 0
    %127 = vperm.xlu0 %126, %v124
    %v128 = vpop.permute.xlu0 %127
    %vm130 = vcmask 31744
    %v132 = vsel %vm130, %v123, 0
    %vm134 = vcmask 1043456
    %v136 = vsel %vm134, %v122, 0
    %138 = vmatpush.msra.mxu0 0.0
    %139 = vmatpush.msra.mxu0 0.0
    %140 = vmatpush.msra.mxu0 0.0
    %141 = vmatpush.msra.mxu0 0.0
    %142 = vmatpush.msra.mxu0 0.0
    %143 = vmatpush.msra.mxu0 0.0
    %144 = vmatpush.msra.mxu0 0.0
    %145 = vmatpush.msra.mxu0 0.0
    %146 = vmatpush.msra.mxu0 0.0
    %147 = vmatpush.msra.mxu0 0.0
    %148 = vmatpush.msra.mxu0 0.0
    %149 = vmatpush.msra.mxu0 0.0
    %150 = vmatpush.msra.mxu0 0.0
    %151 = vmatpush.msra.mxu0 0.0
    %152 = vmatpush.msra.mxu0 0.0
    %153 = vmatpush.msra.mxu0 %v136
    %154 = vmatmul.f32.gmra.mxu0 %v132
    %v155 = vpop.f32.mrf.mxu0
    %v156 = vadd.f32 %v128, %v155
    %157 = vdwg.mxu0
    %vm158 = vcmask 26624
    %v159 = vsel %vm158, %v156, -inf
    %v160 = vrot.slane %v159, 4
    %v161 = vmax.f32 %v159, %v160
    %v162 = vrot.slane %v161, 2
    %v163 = vmax.f32 %v161, %v162
    %v164 = vrot.slane %v163, 1
    %v165 = vmax.f32 %v163, %v164
    %v166 = vsub.f32 %v156, %v165
    %v167 = vmul.f32 %v166, 1.442695
    %v168 = vpow.pop %v167
    %v169 = vsel %vm158, %v168, 0.0
    %v170 = vrot.slane %v169, 4
    %v171 = vadd.f32 %v169, %v170
    %v172 = vrot.slane %v171, 2
    %v173 = vadd.f32 %v171, %v172
    %v174 = vrot.slane %v173, 1
    %v175 = vadd.f32 %v173, %v174
    %v176 = vrcp.pop %v175
    %v177 = vmul.f32 %v175, %v176
    %v178 = vsub.f32 1.0, %v177
    %v179 = vmul.f32 %v176, %v178
    %v180 = vadd.f32 %v176, %v179
    %vm181 = vweird.f32 %v175
    %vm182 = vweird.f32 %v176
    %vm183 = vmor %vm181, %vm182
    %v184 = vsel %vm183, %v176, %v180
    %v185 = vand.u32 2147483647, %v175
    %vm186 = vcmp.eq.f32.partialorder %v185, 8.507059e+37
    %v187 = vand.u32 %v175, 2147483648
    %v188 = vor.u32 1.1754944e-38, %v187
    %v189 = vsel %vm186, %v188, %v184
    %v190 = vmul.f32 %v168, %v189
    %191 = vst.msk [vmem:[%s5] sm:$0x7] %vm158, %v190
  $region29: #{forward_pallas.6} parent=0 // pred_fallthru
    _
  // Predicated region
  $region30: #{forward_pallas.6} parent=0 // pred_check
    _
  $region31: #{forward_pallas.6} parent=0 // pred_check_branch
    %193 = sbr.rel (0) target = $region33
  $region32: #{forward_pallas.6} parent=0 // pred_region
    _
  $region33: #{forward_pallas.6} parent=0 // pred_fallthru
    _
  // Predicated region
  $region34: #{forward_pallas.6} parent=0 // pred_check
    _
  $region35: #{forward_pallas.6} parent=0 // pred_check_branch
    %195 = sbr.rel (0) target = $region37
  $region36: #{forward_pallas.6} parent=0 // pred_region
    _
  $region37: #{forward_pallas.6} parent=0 // pred_fallthru
    _

// kernel: forward_pallas.7
$region0: #{forward_pallas.7}
  #allocation0 [shape = 'u32[]', space=smem, size = 0x4, offset = 0x4, fixed_abs, tag = 'smem constant byte address 0x4 - core index']
  #allocation1 [shape = 'u32[72,128]{1,0:T(1,128)}', space=vmem, size = 0x9000, scoped, tag = 'internal scratch']
  %s0 = inlined_call_operand.vmem [shape: f32[4,256], index: 0, kind: input, shape index: {}]
  %s1 = inlined_call_operand.vmem [shape: f32[4,256], index: 1, kind: input, shape index: {}]
  %s2 = inlined_call_operand.vmem [shape: f32[4,256], index: 2, kind: input, shape index: {}]
  %s3 = inlined_call_operand.vmem [shape: f32[4,3], index: 3, kind: input, shape index: {}]
  %s4 = inlined_call_operand.vmem [shape: f32[4,256], index: 4, kind: output, shape index: {}]
  %s5 = sld [smem:[#allocation0]]
  $region49: #{forward_pallas.7} parent=0
    _
  %s7 = ssub.s32 1, %s5
  %s8 = scalar_select 0, %s7, %s5
  loop: start=0, step=1, limit=4
  $region2: #{forward_pallas.7} parent=0 // loop_pre_header
    _
  $region3: #{forward_pallas.7} parent=0 // loop_header
    %s10 = sphi 0, %s14
    %p11 = scmp.ge.s32.totalorder %s10, 4
    %s20 = sphi 0, %s22
    %s23 = sphi 0, %s20
    %s24 = sphi 0, %s23
    %s40 = sphi 0, %s24
    %s46 = sphi 0, %s48
    %s49 = sphi 0, %s46
    %s50 = sphi 0, %s49
    %s66 = sphi 0, %s50
    %s72 = sphi 0, %s74
    %s75 = sphi 0, %s72
    %s76 = sphi 0, %s75
    %s92 = sphi 0, %s76
    %s96 = sphi 0, %s96
    %s98 = sphi 0, %s96
    %s99 = sphi 0, %s98
    %s113 = sphi 0, %s99
    %s119 = sphi 0, %s121
    %s122 = sphi 0, %s119
    %s123 = sphi 0, %s122
    %s139 = sphi 0, %s123
  $region4: #{forward_pallas.7} parent=0 // loop_header_branch
    %13 = sbr.rel (%p11) target = $region8
  $region5: #{forward_pallas.7} parent=0 // loop_body
    %s15 = ssub.s32 %s10, 1
    %s16 = ssub.s32 %s10, 2
    %s17 = sadd.s32 %s10, 1
    %s18 = ssub.s32 %s10, %s17
    %p19 = scmp.eq.s32.totalorder %s18, 0
    %s21 = sadd.s32 %s20, 1
    %s22 = scalar_select %p19, %s20, %s21
    %p25 = pneg %p19
    %p26 = scmp.eq.s32.totalorder %s10, 1
    %p27 = por %p25, %p26
    %p28 = scmp.ne.s32.totalorder %s20, %s23
    %p29 = scmp.eq.s32.totalorder %s10, 0
    %p30 = por %p28, %p29
    %p31 = scmp.ne.s32.totalorder %s20, %s23
    %p32 = scmp.eq.s32.totalorder %s15, 1
    %p33 = por %p31, %p32
    %p34 = scmp.ne.s32.totalorder %s23, %s24
    %p35 = scmp.eq.s32.totalorder %s15, 0
    %p36 = por %p34, %p35
    %p37 = scmp.ne.s32.totalorder %s23, %s24
    %p38 = scmp.eq.s32.totalorder %s16, 1
    %p39 = por %p37, %p38
    %p41 = scmp.ne.s32.totalorder %s24, %s40
    %p42 = scmp.eq.s32.totalorder %s16, 0
    %p43 = por %p41, %p42
    %s44 = ssub.s32 %s10, %s17
    %p45 = scmp.eq.s32.totalorder %s44, 0
    %s47 = sadd.s32 %s46, 1
    %s48 = scalar_select %p45, %s46, %s47
    %p51 = pneg %p45
    %p52 = scmp.eq.s32.totalorder %s10, 1
    %p53 = por %p51, %p52
    %p54 = scmp.ne.s32.totalorder %s46, %s49
    %p55 = scmp.eq.s32.totalorder %s10, 0
    %p56 = por %p54, %p55
    %p57 = scmp.ne.s32.totalorder %s46, %s49
    %p58 = scmp.eq.s32.totalorder %s15, 1
    %p59 = por %p57, %p58
    %p60 = scmp.ne.s32.totalorder %s49, %s50
    %p61 = scmp.eq.s32.totalorder %s15, 0
    %p62 = por %p60, %p61
    %p63 = scmp.ne.s32.totalorder %s49, %s50
    %p64 = scmp.eq.s32.totalorder %s16, 1
    %p65 = por %p63, %p64
    %p67 = scmp.ne.s32.totalorder %s50, %s66
    %p68 = scmp.eq.s32.totalorder %s16, 0
    %p69 = por %p67, %p68
    %s70 = ssub.s32 %s10, %s17
    %p71 = scmp.eq.s32.totalorder %s70, 0
    %s73 = sadd.s32 %s72, 1
    %s74 = scalar_select %p71, %s72, %s73
    %p77 = pneg %p71
    %p78 = scmp.eq.s32.totalorder %s10, 1
    %p79 = por %p77, %p78
    %p80 = scmp.ne.s32.totalorder %s72, %s75
    %p81 = scmp.eq.s32.totalorder %s10, 0
    %p82 = por %p80, %p81
    %p83 = scmp.ne.s32.totalorder %s72, %s75
    %p84 = scmp.eq.s32.totalorder %s15, 1
    %p85 = por %p83, %p84
    %p86 = scmp.ne.s32.totalorder %s75, %s76
    %p87 = scmp.eq.s32.totalorder %s15, 0
    %p88 = por %p86, %p87
    %p89 = scmp.ne.s32.totalorder %s75, %s76
    %p90 = scmp.eq.s32.totalorder %s16, 1
    %p91 = por %p89, %p90
    %p93 = scmp.ne.s32.totalorder %s76, %s92
    %p94 = scmp.eq.s32.totalorder %s16, 0
    %p95 = por %p93, %p94
    %s97 = sadd.s32 %s96, 1
    %p100 = scmp.eq.s32.totalorder %s10, 1
    %p101 = scmp.ne.s32.totalorder %s96, %s98
    %p102 = scmp.eq.s32.totalorder %s10, 0
    %p103 = por %p101, %p102
    %p104 = scmp.ne.s32.totalorder %s96, %s98
    %p105 = scmp.eq.s32.totalorder %s15, 1
    %p106 = por %p104, %p105
    %p107 = scmp.ne.s32.totalorder %s98, %s99
    %p108 = scmp.eq.s32.totalorder %s15, 0
    %p109 = por %p107, %p108
    %p110 = scmp.ne.s32.totalorder %s98, %s99
    %p111 = scmp.eq.s32.totalorder %s16, 1
    %p112 = por %p110, %p111
    %p114 = scmp.ne.s32.totalorder %s99, %s113
    %p115 = scmp.eq.s32.totalorder %s16, 0
    %p116 = por %p114, %p115
    %s117 = ssub.s32 %s10, %s17
    %p118 = scmp.eq.s32.totalorder %s117, 0
    %s120 = sadd.s32 %s119, 1
    %s121 = scalar_select %p118, %s119, %s120
    %p124 = pneg %p118
    %p125 = scmp.eq.s32.totalorder %s10, 1
    %p126 = por %p124, %p125
    %p127 = scmp.ne.s32.totalorder %s119, %s122
    %p128 = scmp.eq.s32.totalorder %s10, 0
    %p129 = por %p127, %p128
    %p130 = scmp.ne.s32.totalorder %s119, %s122
    %p131 = scmp.eq.s32.totalorder %s15, 1
    %p132 = por %p130, %p131
    %p133 = scmp.ne.s32.totalorder %s122, %s123
    %p134 = scmp.eq.s32.totalorder %s15, 0
    %p135 = por %p133, %p134
    %p136 = scmp.ne.s32.totalorder %s122, %s123
    %p137 = scmp.eq.s32.totalorder %s16, 1
    %p138 = por %p136, %p137
    %p140 = scmp.ne.s32.totalorder %s123, %s139
    %p141 = scmp.eq.s32.totalorder %s16, 0
    %p142 = por %p140, %p141
    %p143 = scmp.le.s32.totalorder 1, %s10
    %p144 = scmp.lt.s32.totalorder %s10, 3
    %p145 = pnand %p143, %p144
    %p146 = pneg %p145
    // Predicated region
    $region9: #{forward_pallas.7} parent=5 // pred_check
      _
    $region10: #{forward_pallas.7} parent=5 // pred_check_branch
      %148 = sbr.rel (%p145) target = $region12
    $region11: #{forward_pallas.7} parent=5 // pred_region
      %s149 = ssub.s32 %s10, 1
      // Predicated region
      $region13: #{forward_pallas.7} parent=11 // pred_check
        %p150 = pneg %p109
      $region14: #{forward_pallas.7} parent=11 // pred_check_branch
        %152 = sbr.rel (%p150) target = $region16
      $region15: #{forward_pallas.7} parent=11 // pred_region
        _
      $region16: #{forward_pallas.7} parent=11 // pred_fallthru
        _
    $region12: #{forward_pallas.7} parent=5 // pred_fallthru
      _
    %p153 = scmp.lt.s32.totalorder %s10, 2
    // Predicated region
    $region17: #{forward_pallas.7} parent=5 // pred_check
      %p154 = pneg %p153
    $region18: #{forward_pallas.7} parent=5 // pred_check_branch
      %156 = sbr.rel (%p154) target = $region20
    $region19: #{forward_pallas.7} parent=5 // pred_region
      // Predicated region
      $region21: #{forward_pallas.7} parent=19 // pred_check
        %p157 = pneg %p30
      $region22: #{forward_pallas.7} parent=19 // pred_check_branch
        %159 = sbr.rel (%p157) target = $region24
      $region23: #{forward_pallas.7} parent=19 // pred_region
        %p160 = scmp.lt.s32.totalorder %s10, 1
        %s161 = scalar_select %p160, %s10, 1
        %s162 = smul.addr %s161, 4
        %s163 = scalar_lea.vmem %s0, %s162
      $region24: #{forward_pallas.7} parent=19 // pred_fallthru
        _
      // Predicated region
      $region25: #{forward_pallas.7} parent=19 // pred_check
        %p164 = pneg %p56
      $region26: #{forward_pallas.7} parent=19 // pred_check_branch
        %166 = sbr.rel (%p164) target = $region28
      $region27: #{forward_pallas.7} parent=19 // pred_region
        %p167 = scmp.lt.s32.totalorder %s10, 1
        %s168 = scalar_select %p167, %s10, 1
        %s169 = smul.addr %s168, 4
        %s170 = scalar_lea.vmem %s1, %s169
      $region28: #{forward_pallas.7} parent=19 // pred_fallthru
        _
      // Predicated region
      $region29: #{forward_pallas.7} parent=19 // pred_check
        %p171 = pneg %p82
      $region30: #{forward_pallas.7} parent=19 // pred_check_branch
        %173 = sbr.rel (%p171) target = $region32
      $region31: #{forward_pallas.7} parent=19 // pred_region
        %p174 = scmp.lt.s32.totalorder %s10, 1
        %s175 = scalar_select %p174, %s10, 1
        %s176 = smul.addr %s175, 4
        %s177 = scalar_lea.vmem %s2, %s176
      $region32: #{forward_pallas.7} parent=19 // pred_fallthru
        _
    $region20: #{forward_pallas.7} parent=5 // pred_fallthru
      _
    %p178 = scmp.le.s32.totalorder 1, %s10
    %p179 = scmp.lt.s32.totalorder %s10, 3
    %p180 = pnand %p178, %p179
    %p181 = pneg %p180
    // Predicated region
    $region33: #{forward_pallas.7} parent=5 // pred_check
      _
    $region34: #{forward_pallas.7} parent=5 // pred_check_branch
      %183 = sbr.rel (%p180) target = $region36
    $region35: #{forward_pallas.7} parent=5 // pred_region
      %s184 = ssub.s32 %s10, 1
      %p185 = scmp.lt.s32.totalorder %s15, 1
      %s186 = scalar_select %p185, %s15, 1
      %s187 = smul.addr %s186, 4
      %s188 = scalar_lea.vmem %s0, %s187
      %p189 = pneg %p36
      %p190 = pneg %p33
      %p191 = scmp.lt.s32.totalorder %s15, 1
      %s192 = scalar_select %p191, %s15, 1
      %s193 = smul.addr %s192, 4
      %s194 = scalar_lea.vmem %s1, %s193
      %p195 = pneg %p62
      %p196 = pneg %p59
      %p197 = scmp.lt.s32.totalorder %s15, 1
      %s198 = scalar_select %p197, %s15, 1
      %s199 = smul.addr %s198, 4
      %s200 = scalar_lea.vmem %s2, %s199
      %p201 = pneg %p88
      %p202 = pneg %p85
      %p203 = pneg %p109
      %p204 = pneg %p106
      %p205 = pneg %p135
      %p206 = pneg %p132
      %p207 = scmp.lt.s32.totalorder %s15, 1
      %s208 = scalar_select %p207, %s15, 1
      %s209 = smul.addr %s208, 4
      %s210 = scalar_lea.vmem %s4, %s209
      %p211 = scmp.lt.s32.totalorder %s15, 1
      %s212 = scalar_select %p211, %s15, 1
      %s213 = smul.addr %s212, 4
      %s214 = scalar_lea.vmem %s0, %s213
      %p215 = scmp.lt.s32.totalorder %s15, 1
      %s216 = scalar_select %p215, %s15, 1
      %s217 = smul.addr %s216, 4
      %s218 = scalar_lea.vmem %s1, %s217
      %p219 = scmp.lt.s32.totalorder %s15, 1
      %s220 = scalar_select %p219, %s15, 1
      %s221 = smul.addr %s220, 4
      %s222 = scalar_lea.vmem %s2, %s221
      %p223 = scmp.lt.s32.totalorder %s15, 1
      %s224 = scalar_select %p223, %s15, 1
      %s225 = smul.addr %s224, 4
      %s226 = scalar_lea.vmem %s4, %s225
      %v227 = vld [vmem:[%s214] sm:$0xf]
      %v228 = vld [vmem:[%s218] sm:$0xf]
      %v229 = vld [vmem:[%s222] sm:$0xf]
      %vm230 = vcmask 1043456
      %v231 = vsel %vm230, %v227, 0.0
      %v232 = vrot.slane %v231, 4
      %v233 = vadd.f32 %v231, %v232
      %v234 = vrot.slane %v233, 2
      %v235 = vadd.f32 %v233, %v234
      %v236 = vrot.slane %v235, 1
      %v237 = vadd.f32 %v235, %v236
      %v238 = vrcp.pop 4.0
      %v239 = vmul.f32 4.0, %v238
      %v240 = vsub.f32 1.0, %v239
      %v241 = vmul.f32 %v238, %v240
      %v242 = vadd.f32 %v238, %v241
      %vm243 = vweird.f32 %v238
      %v244 = vsel %vm243, %v238, %v242
      %v245 = vmul.f32 %v237, %v244
      %v246 = vsel %vm230, %v228, 0.0
      %v247 = vrot.slane %v246, 4
      %v248 = vadd.f32 %v246, %v247
      %v249 = vrot.slane %v248, 2
      %v250 = vadd.f32 %v248, %v249
      %v251 = vrot.slane %v250, 1
      %v252 = vadd.f32 %v250, %v251
      %v253 = vmul.f32 %v252, %v244
      %v254 = vsel %vm230, %v229, 0.0
      %v255 = vrot.slane %v254, 4
      %v256 = vadd.f32 %v254, %v255
      %v257 = vrot.slane %v256, 2
      %v258 = vadd.f32 %v256, %v257
      %v259 = vrot.slane %v258, 1
      %v260 = vadd.f32 %v258, %v259
      %v261 = vmul.f32 %v260, %v244
      %v262 = vmul.f32 %v253, 0.45
      %v263 = vmul.f32 %v261, 0.4
      %v264 = vadd.f32 %v262, %v263
      %v265 = vmul.f32 %v264, 0.15
      %v266 = vadd.f32 %v265, 1.0
      %v267 = vrcp.pop %v266
      %v268 = vmul.f32 %v266, %v267
      %v269 = vsub.f32 1.0, %v268
      %v270 = vmul.f32 %v267, %v269
      %v271 = vadd.f32 %v267, %v270
      %vm272 = vweird.f32 %v266
      %vm273 = vweird.f32 %v267
      %vm274 = vmor %vm272, %vm273
      %v275 = vsel %vm274, %v267, %v271
      %v276 = vand.u32 2147483647, %v266
      %vm277 = vcmp.eq.f32.partialorder %v276, 8.507059e+37
      %v278 = vand.u32 %v266, 2147483648
      %v279 = vor.u32 1.1754944e-38, %v278
      %v280 = vsel %vm277, %v279, %v275
      %v281 = vmul.f32 %v227, %v280
      %v282 = vmul.f32 %v245, 0.5
      %v283 = vadd.f32 %v282, %v263
      %v284 = vmul.f32 %v283, 0.15
      %v285 = vadd.f32 %v284, 1.0
      %v286 = vrcp.pop %v285
      %v287 = vmul.f32 %v285, %v286
      %v288 = vsub.f32 1.0, %v287
      %v289 = vmul.f32 %v286, %v288
      %v290 = vadd.f32 %v286, %v289
      %vm291 = vweird.f32 %v285
      %vm292 = vweird.f32 %v286
      %vm293 = vmor %vm291, %vm292
      %v294 = vsel %vm293, %v286, %v290
      %v295 = vand.u32 2147483647, %v285
      %vm296 = vcmp.eq.f32.partialorder %v295, 8.507059e+37
      %v297 = vand.u32 %v285, 2147483648
      %v298 = vor.u32 1.1754944e-38, %v297
      %v299 = vsel %vm296, %v298, %v294
      %v300 = vmul.f32 %v228, %v299
      %v301 = vadd.f32 %v282, %v262
      %v302 = vmul.f32 %v301, 0.15
      %v303 = vadd.f32 %v302, 1.0
      %v304 = vrcp.pop %v303
      %v305 = vmul.f32 %v303, %v304
      %v306 = vsub.f32 1.0, %v305
      %v307 = vmul.f32 %v304, %v306
      %v308 = vadd.f32 %v304, %v307
      %vm309 = vweird.f32 %v303
      %vm310 = vweird.f32 %v304
      %vm311 = vmor %vm309, %vm310
      %v312 = vsel %vm311, %v304, %v308
      %v313 = vand.u32 2147483647, %v303
      %vm314 = vcmp.eq.f32.partialorder %v313, 8.507059e+37
      %v315 = vand.u32 %v303, 2147483648
      %v316 = vor.u32 1.1754944e-38, %v315
      %v317 = vsel %vm314, %v316, %v312
      %v318 = vmul.f32 %v229, %v317
      %v319 = vld [vmem:[%s3] sm:$0xf]
      %321 = vset.pattern.permute.xlu0 0
      %322 = vperm.xlu0 %321, %v319
      %v323 = vpop.permute.xlu0 %322
      %v325 = vmul.f32 %v281, %v323
      %326 = vset.pattern.permute.xlu0 1
      %327 = vperm.xlu0 %326, %v319
      %v328 = vpop.permute.xlu0 %327
      %v330 = vmul.f32 %v300, %v328
      %v331 = vadd.f32 %v325, %v330
      %332 = vset.pattern.permute.xlu0 2
      %333 = vperm.xlu0 %332, %v319
      %v334 = vpop.permute.xlu0 %333
      %v336 = vmul.f32 %v318, %v334
      %v337 = vadd.f32 %v331, %v336
      %338 = vst [vmem:[%s226] sm:$0xf] %v337
      %p339 = scmp.lt.s32.totalorder %s15, 1
      %s340 = scalar_select %p339, %s15, 1
      %s341 = smul.addr %s340, 4
      %s342 = scalar_lea.vmem %s4, %s341
      // Predicated region
      $region37: #{forward_pallas.7} parent=35 // pred_check
        %p343 = pneg %p132
      $region38: #{forward_pallas.7} parent=35 // pred_check_branch
        %345 = sbr.rel (%p343) target = $region40
      $region39: #{forward_pallas.7} parent=35 // pred_region
        _
      $region40: #{forward_pallas.7} parent=35 // pred_fallthru
        _
    $region36: #{forward_pallas.7} parent=5 // pred_fallthru
      _
    %p346 = scmp.le.s32.totalorder 2, %s10
    // Predicated region
    $region41: #{forward_pallas.7} parent=5 // pred_check
      %p347 = pneg %p346
    $region42: #{forward_pallas.7} parent=5 // pred_check_branch
      %349 = sbr.rel (%p347) target = $region44
    $region43: #{forward_pallas.7} parent=5 // pred_region
      %s350 = ssub.s32 %s10, 2
      // Predicated region
      $region45: #{forward_pallas.7} parent=43 // pred_check
        %p351 = pneg %p138
      $region46: #{forward_pallas.7} parent=43 // pred_check_branch
        %353 = sbr.rel (%p351) target = $region48
      $region47: #{forward_pallas.7} parent=43 // pred_region
        %p354 = scmp.lt.s32.totalorder %s16, 1
        %s355 = scalar_select %p354, %s16, 1
        %s356 = smul.addr %s355, 4
        %s357 = scalar_lea.vmem %s4, %s356
      $region48: #{forward_pallas.7} parent=43 // pred_fallthru
        _
    $region44: #{forward_pallas.7} parent=5 // pred_fallthru
      _
  $region6: #{forward_pallas.7} parent=0 // loop_footer
    %s14 = sadd.s32 1, %s10
  $region7: #{forward_pallas.7} parent=0 // loop_footer_branch
    %9 = sbr.rel target = $region3
  $region8: #{forward_pallas.7} parent=0 // loop_exit
    _

</llo_original>
